<compile_context>
chip_gen: v5e
topology: v5e:2x2
jax: 0.10.0
libtpu: 0.0.40
codegen_flags: <defaults>
</compile_context>

<pallas_src>
import functools

import jax
import jax.numpy as jnp
from jax.experimental import pallas as pl
from jax.experimental.pallas import tpu as pltpu


# ----------------------------------------------------------------------------
# tiling helpers
# ----------------------------------------------------------------------------
def _pick_row_tile(n, cap=512):
    """Largest row tile <= cap dividing n (sublane aligned), else min(n, cap)."""
    for t in (512, 256, 128, 64, 32, 16, 8):
        if t <= cap and n % t == 0:
            return t
    return min(n, cap)


def _pick_vocab_tile(v):
    for t in (1024, 512, 256, 128):
        if v % t == 0:
            return t
    return v  # small / awkward vocab: single full-extent tile


def _pick_time_chunk(t, b, h, budget_bytes=8 << 20):
    """VMEM-budget-driven time chunk for the GRU grid step.

    Streamed (double-buffered) blocks per unit of chunk:
      gates (3, chunk, B, H) bf16  +  out (chunk, B, H) f32
      -> 2 * (3*2 + 4) * B * H = 20 * B * H bytes.
    """
    per_unit = 20 * b * h
    cmax = max(1, budget_bytes // per_unit)
    for c in (64, 32, 16, 8, 4, 2, 1):
        if c <= cmax and t % c == 0:
            return c
    return int(min(t, cmax))


def _batch_split(b):
    # v7x has 2 TensorCores: add a 'parallel' batch-half axis when each half
    # stays sublane-aligned (B/2 % 8 == 0); otherwise keep a single block.
    return 2 if b % 16 == 0 else 1


# ----------------------------------------------------------------------------
# Hoisted GRU input gates:  gates[g] = x @ W_ih[:, g*H:(g+1)*H] + b_ih[g]
# Single bf16 MXU matmul per row tile, output written per-gate as (3, n, H)
# bf16 so the serial GRU loop never slices the lane dimension.
# ----------------------------------------------------------------------------
def _gates_kernel(x_ref, w_ref, b_ref, out_ref):
    h = out_ref.shape[-1]
    z = (jnp.dot(x_ref[...], w_ref[...], preferred_element_type=jnp.float32)
         + b_ref[...])                                   # (tn, 3H) f32
    # lane split happens once per (parallel) row tile, off the serial path
    out_ref[0] = z[:, 0 * h:1 * h].astype(out_ref.dtype)
    out_ref[1] = z[:, 1 * h:2 * h].astype(out_ref.dtype)
    out_ref[2] = z[:, 2 * h:3 * h].astype(out_ref.dtype)


def input_gates(x_bf16, w_ih_bf16, b_ih, hidden):
    n, e = x_bf16.shape
    g3 = w_ih_bf16.shape[-1]
    tn = _pick_row_tile(n)
    return pl.pallas_call(
        _gates_kernel,
        out_shape=jax.ShapeDtypeStruct((3, n, hidden), jnp.bfloat16),
        grid=(pl.cdiv(n, tn),),
        in_specs=[
            pl.BlockSpec((tn, e), lambda i: (i, 0)),
            pl.BlockSpec((e, g3), lambda i: (0, 0)),
            pl.BlockSpec((1, g3), lambda i: (0, 0)),
        ],
        out_specs=pl.BlockSpec((3, tn, hidden), lambda i: (0, i, 0)),
        compiler_params=pltpu.CompilerParams(dimension_semantics=("parallel",)),
    )(x_bf16, w_ih_bf16, b_ih)


# ----------------------------------------------------------------------------
# GRU recurrence: grid = (batch_halves, time_chunks).  Inside, a fully
# unrolled fori_loop runs the per-step recurrent matmuls (bf16 MXU) + f32
# gating with the hidden state carried in VMEM scratch.  Pad handling
# (packed-sequence emulation) is done in-kernel from `lengths > t`.
# ----------------------------------------------------------------------------
def _gru_chunk_kernel(gates_ref, len_ref, h0_ref, whh_ref, bhh_ref, out_ref,
                      h_scratch):
    c = pl.program_id(1)
    chunk = out_ref.shape[0]

    @pl.when(c == 0)
    def _():
        h_scratch[...] = h0_ref[...]

    lengths = len_ref[...]                      # (Bb, 1) int32
    w_r, w_z, w_n = whh_ref[0], whh_ref[1], whh_ref[2]   # (H, H) bf16, resident
    b_r, b_z, b_n = bhh_ref[0], bhh_ref[1], bhh_ref[2]   # (1, H) f32
    t0 = c * chunk

    def step(i, h):
        hb = h.astype(jnp.bfloat16)
        gh_r = jnp.dot(hb, w_r, preferred_element_type=jnp.float32) + b_r
        gh_z = jnp.dot(hb, w_z, preferred_element_type=jnp.float32) + b_z
        gh_n = jnp.dot(hb, w_n, preferred_element_type=jnp.float32) + b_n
        gi_r = gates_ref[0, i].astype(jnp.float32)        # (Bb, H)
        gi_z = gates_ref[1, i].astype(jnp.float32)
        gi_n = gates_ref[2, i].astype(jnp.float32)
        r = jax.nn.sigmoid(gi_r + gh_r)
        z = jax.nn.sigmoid(gi_z + gh_z)
        n = jnp.tanh(gi_n + r * gh_n)
        h_new = (1.0 - z) * n + z * h
        # packed-sequence emulation: freeze hidden & zero outputs at pads.
        m = (lengths > (t0 + i)).astype(jnp.float32)      # (Bb, 1)
        h_new = m * h_new + (1.0 - m) * h
        out_ref[i] = h_new * m
        return h_new

    # unroll=True: expose the whole chunk schedule to the LLO packer so the
    # VPU gating / stores of step i overlap step i+1's MXU push.
    h_scratch[...] = jax.lax.fori_loop(0, chunk, step, h_scratch[...],
                                       unroll=True)


def gru_forward(gates_3tbh, lengths_b1, h0, w_hh_bf16, b_hh):
    _, T, B, H = gates_3tbh.shape
    nb = _batch_split(B)
    Bb = B // nb
    chunk = _pick_time_chunk(T, Bb, H)
    return pl.pallas_call(
        _gru_chunk_kernel,
        out_shape=jax.ShapeDtypeStruct((T, B, H), jnp.float32),
        grid=(nb, pl.cdiv(T, chunk)),
        in_specs=[
            pl.BlockSpec((3, chunk, Bb, H), lambda b, c: (0, c, b, 0)),
            pl.BlockSpec((Bb, 1), lambda b, c: (b, 0)),
            pl.BlockSpec((Bb, H), lambda b, c: (b, 0)),
            pl.BlockSpec((3, H, H), lambda b, c: (0, 0, 0)),
            pl.BlockSpec((3, 1, H), lambda b, c: (0, 0, 0)),
        ],
        out_specs=pl.BlockSpec((chunk, Bb, H), lambda b, c: (c, b, 0)),
        scratch_shapes=[pltpu.VMEM((Bb, H), jnp.float32)],
        compiler_params=pltpu.CompilerParams(
            dimension_semantics=("parallel", "arbitrary")),
    )(gates_3tbh, lengths_b1, h0, w_hh_bf16, b_hh)


# ----------------------------------------------------------------------------
# Classifier.generate: structured self-attention, time-major input,
# masked (exact) softmax over time.  Optional batch-half parallel axis.
# ----------------------------------------------------------------------------
def _attn_kernel(h_ref, m_ref, w1_ref, w2_ref, content_ref, score_ref, *, reverse):
    h = h_ref[...]                               # (T, Bb, R) f32
    T, Bb, R = h.shape
    hops = w2_ref.shape[-1]

    hb = h.astype(jnp.bfloat16).reshape(T * Bb, R)
    u = jnp.tanh(jnp.dot(hb, w1_ref[...], preferred_element_type=jnp.float32))
    s = jnp.dot(u, w2_ref[...], preferred_element_type=jnp.float32)
    s = s.reshape(T, Bb, hops)
    if reverse:                                  # attend to non-style ("content") tokens
        s = -s
    s = jnp.where(m_ref[...] > 0.0, s, jnp.full_like(s, -1e30))

    s_max = jnp.max(s, axis=0, keepdims=True)
    e = jnp.exp(s - s_max)
    denom = jnp.sum(e, axis=0, keepdims=True)
    a = e / denom                                # exact: `a` is returned as w_score
    score_ref[...] = a

    # content = mean over hops of attention-pooled hidden states.
    a_sum = jnp.sum(a, axis=-1, keepdims=True)                   # (T, Bb, 1)
    content_ref[...] = jnp.sum(a_sum * h, axis=0) * (1.0 / hops)  # (Bb, R)


def attention_pool(h_tbr, mask_tb1, w1_bf16, w2, *, reverse):
    T, B, R = h_tbr.shape
    A = w1_bf16.shape[-1]
    hops = w2.shape[-1]
    nb = _batch_split(B)
    Bb = B // nb
    kernel = functools.partial(_attn_kernel, reverse=reverse)
    content, score = pl.pallas_call(
        kernel,
        out_shape=(jax.ShapeDtypeStruct((B, R), jnp.float32),
                   jax.ShapeDtypeStruct((T, B, hops), jnp.float32)),
        grid=(nb,),
        in_specs=[
            pl.BlockSpec((T, Bb, R), lambda b: (0, b, 0)),
            pl.BlockSpec((T, Bb, 1), lambda b: (0, b, 0)),
            pl.BlockSpec((R, A), lambda b: (0, 0)),
            pl.BlockSpec((A, hops), lambda b: (0, 0)),
        ],
        out_specs=(pl.BlockSpec((Bb, R), lambda b: (b, 0)),
                   pl.BlockSpec((T, Bb, hops), lambda b: (0, b, 0))),
        compiler_params=pltpu.CompilerParams(dimension_semantics=("parallel",)),
    )(h_tbr, mask_tb1, w1_bf16, w2)
    return content, score


# ----------------------------------------------------------------------------
# Decoder vocab projection + log-softmax, tiled over rows AND vocab:
#   pass 1 streams V tiles with a running (max, sumexp) -> per-row lse
#   pass 2 recomputes each logits tile and writes logits - lse.
# The (H, V) weight (bf16) is never fully resident in VMEM.
# ----------------------------------------------------------------------------
def _lse_kernel(h_ref, w_ref, b_ref, lse_ref, m_sc, s_sc):
    j = pl.program_id(1)

    @pl.when(j == 0)
    def _():
        m_sc[...] = jnp.full(m_sc.shape, -jnp.inf, m_sc.dtype)
        s_sc[...] = jnp.zeros(s_sc.shape, s_sc.dtype)

    logits = (jnp.dot(h_ref[...], w_ref[...], preferred_element_type=jnp.float32)
              + b_ref[...])                                # (tn, tv) f32
    m_prev = m_sc[...]
    m_new = jnp.maximum(m_prev, jnp.max(logits, axis=-1, keepdims=True))
    s_sc[...] = (s_sc[...] * jnp.exp(m_prev - m_new)
                 + jnp.sum(jnp.exp(logits - m_new), axis=-1, keepdims=True))
    m_sc[...] = m_new

    @pl.when(j == pl.num_programs(1) - 1)
    def _():
        lse_ref[...] = m_sc[...] + jnp.log(s_sc[...])


def _proj_norm_kernel(h_ref, w_ref, b_ref, lse_ref, out_ref):
    logits = (jnp.dot(h_ref[...], w_ref[...], preferred_element_type=jnp.float32)
              + b_ref[...])
    out_ref[...] = logits - lse_ref[...]


def vocab_log_softmax(h_bf16, w_out_bf16, b_out):
    n, H = h_bf16.shape
    V = w_out_bf16.shape[-1]
    tn = _pick_row_tile(n)
    tv = _pick_vocab_tile(V)
    gi = pl.cdiv(n, tn)
    gj = pl.cdiv(V, tv)

    lse = pl.pallas_call(
        _lse_kernel,
        out_shape=jax.ShapeDtypeStruct((n, 1), jnp.float32),
        grid=(gi, gj),
        in_specs=[
            pl.BlockSpec((tn, H), lambda i, j: (i, 0)),
            pl.BlockSpec((H, tv), lambda i, j: (0, j)),
            pl.BlockSpec((1, tv), lambda i, j: (0, j)),
        ],
        out_specs=pl.BlockSpec((tn, 1), lambda i, j: (i, 0)),
        scratch_shapes=[pltpu.VMEM((tn, 1), jnp.float32),
                        pltpu.VMEM((tn, 1), jnp.float32)],
        compiler_params=pltpu.CompilerParams(
            dimension_semantics=("parallel", "arbitrary")),
    )(h_bf16, w_out_bf16, b_out)

    return pl.pallas_call(
        _proj_norm_kernel,
        out_shape=jax.ShapeDtypeStruct((n, V), jnp.float32),
        grid=(gi, gj),
        in_specs=[
            pl.BlockSpec((tn, H), lambda i, j: (i, 0)),
            pl.BlockSpec((H, tv), lambda i, j: (0, j)),
            pl.BlockSpec((1, tv), lambda i, j: (0, j)),
            pl.BlockSpec((tn, 1), lambda i, j: (i, 0)),
        ],
        out_specs=pl.BlockSpec((tn, tv), lambda i, j: (i, j)),
        compiler_params=pltpu.CompilerParams(
            dimension_semantics=("parallel", "parallel")),
    )(h_bf16, w_out_bf16, b_out, lse)


# ----------------------------------------------------------------------------
# Parameters (deterministic synthetic init — no checkpoint loading).
# Weights are stored f32; they are cast to bf16 at the kernel boundary.
# ----------------------------------------------------------------------------
def _normal(key, shape, scale=0.1):
    return scale * jax.random.normal(key, shape, dtype=jnp.float32)


def init_rnn_block(key, emb_size, vocab_size, rnn_size, with_out_proj):
    ks = jax.random.split(key, 6)
    p = {
        "embedding": _normal(ks[0], (vocab_size, emb_size)).at[0].set(0.0),  # padding_idx=0
        "w_ih": _normal(ks[1], (emb_size, 3 * rnn_size)),
        "b_ih": _normal(ks[2], (1, 3 * rnn_size)),
        "w_hh": _normal(ks[3], (3, rnn_size, rnn_size)),   # per-gate [r, z, n]
        "b_hh": _normal(ks[4], (3, 1, rnn_size)),
    }
    if with_out_proj:
        ko1, ko2 = jax.random.split(ks[5])
        p["w_out"] = _normal(ko1, (rnn_size, vocab_size))
        p["b_out"] = _normal(ko2, (1, vocab_size))
    return p


def init_params(key, emb_size, vocab_size, rnn_size, attn_dim, attn_hops):
    k_enc, k_cls, k_d1, k_d2 = jax.random.split(key, 4)
    kc1, kc2 = jax.random.split(k_cls)
    return {
        "encoder": init_rnn_block(k_enc, emb_size, vocab_size, rnn_size, False),
        "classifier": {
            "w1": _normal(kc1, (rnn_size, attn_dim)),
            "w2": _normal(kc2, (attn_dim, attn_hops)),
            # TODO(synk): classifier_dim FC head only used in classify(), not forward()
        },
        "decoder1": init_rnn_block(k_d1, emb_size, vocab_size, rnn_size, True),
        "decoder2": init_rnn_block(k_d2, emb_size, vocab_size, rnn_size, True),
    }


# ----------------------------------------------------------------------------
# TransferNet.forward
# ----------------------------------------------------------------------------
def transfer_net_forward(params, inputs, input_lengths, decoder_idx):
    assert decoder_idx == 1 or decoder_idx == 2
    B, T = inputs.shape
    enc = params["encoder"]
    H = enc["w_hh"].shape[-1]

    lengths = input_lengths.astype(jnp.int32)
    lengths_b1 = lengths.reshape(B, 1)
    ids_tb = jnp.transpose(inputs)                    # transpose tiny int32 ids, not activations
    mask_tb1 = (jnp.arange(T, dtype=jnp.int32)[:, None]
                < lengths[None, :]).astype(jnp.float32)[:, :, None]   # (T, B, 1)

    def run_rnn(block, h0):
        # TODO(synk): embedding gather could be fused into the gates kernel
        # (scalar-prefetched ids + in-kernel gather) to skip the (T,B,E) HBM trip.
        x = jnp.take(block["embedding"].astype(jnp.bfloat16), ids_tb, axis=0)  # (T,B,E) bf16
        E = x.shape[-1]
        gates = input_gates(x.reshape(T * B, E),
                            block["w_ih"].astype(jnp.bfloat16),
                            block["b_ih"], H).reshape(3, T, B, H)
        return gru_forward(gates, lengths_b1, h0,
                           block["w_hh"].astype(jnp.bfloat16), block["b_hh"])

    # --- encoder ---
    h0 = jnp.zeros((B, H), dtype=jnp.float32)
    enc_out_tbh = run_rnn(enc, h0)                                     # (T, B, H)

    # --- classifier.generate(reverse=True), consumes time-major directly ---
    cls = params["classifier"]
    content_hidden, score_tbh = attention_pool(
        enc_out_tbh, mask_tb1, cls["w1"].astype(jnp.bfloat16), cls["w2"],
        reverse=True)
    w_score = jnp.transpose(score_tbh, (1, 0, 2))                      # (B, T, hops) tiny

    # --- decoder (teacher forcing on `inputs`, init hidden = content_hidden) ---
    # TODO(synk): reference DecoderRNN may shift inputs (BOS + inputs[:-1]); kept unshifted.
    dec = params["decoder1"] if decoder_idx == 1 else params["decoder2"]
    dec_out_tbh = run_rnn(dec, content_hidden)                         # (T, B, H)

    # TODO(synk): this small (T,B,H) transpose could be absorbed into the
    # projection index maps; never transpose the (B,T,V) logits.
    dec_out_bth = jnp.transpose(dec_out_tbh, (1, 0, 2))                # (B, T, H)
    V = dec["w_out"].shape[-1]
    h_flat_bf16 = dec_out_bth.reshape(B * T, H).astype(jnp.bfloat16)
    logits = vocab_log_softmax(h_flat_bf16,
                               dec["w_out"].astype(jnp.bfloat16),
                               dec["b_out"]).reshape(B, T, V)
    return logits, w_score


if __name__ == "__main__":
    emb_size, vocab_size, rnn_size = 16, 32, 32
    attn_dim, attn_hops, classifier_dim = 16, 2, 16
    B, T = 2, 8

    key = jax.random.PRNGKey(0)
    k_params, k_tok = jax.random.split(key)
    params = init_params(k_params, emb_size, vocab_size, rnn_size, attn_dim, attn_hops)

    input_lengths = jnp.array([8, 5], dtype=jnp.int32)
    tokens = jax.random.randint(k_tok, (B, T), 1, vocab_size, dtype=jnp.int32)
    pos = jnp.arange(T, dtype=jnp.int32)[None, :]
    inputs = jnp.where(pos < input_lengths[:, None], tokens, 0)   # 0 = padding_idx

    forward = jax.jit(transfer_net_forward, static_argnums=(3,))
    decoded, w_score = forward(params, inputs, input_lengths, 1)
    jax.block_until_ready((decoded, w_score))

    assert decoded.shape == (B, T, vocab_size)
    assert w_score.shape == (B, T, attn_hops)
    print("KERNEL_OK")
</pallas_src>

<mosaic_0001>
module attributes {stable_mosaic.version = 11 : i64} {
  func.func @_gates_kernel(%arg0: i32, %arg1: memref<16x16xbf16, #tpu.memory_space<vmem>>, %arg2: memref<16x96xbf16, #tpu.memory_space<vmem>>, %arg3: memref<1x96xf32, #tpu.memory_space<vmem>>, %arg4: memref<3x16x32xbf16, #tpu.memory_space<vmem>>) attributes {dimension_semantics = [#tpu.dimension_semantics<parallel>], iteration_bounds = array<i64: 1>, scalar_prefetch = 0 : i64, scratch_operands = 0 : i64, tpu.core_type = #tpu.core_type<tc>, window_params = [{transform_indices = @transform_0, window_bounds = array<i64: 16, 16>}, {pipeline_mode = #tpu.pipeline_mode<synchronous>, transform_indices = @transform_1, window_bounds = array<i64: 16, 96>}, {pipeline_mode = #tpu.pipeline_mode<synchronous>, transform_indices = @transform_2, window_bounds = array<i64: 1, 96>}, {transform_indices = @transform_3, window_bounds = array<i64: 3, 16, 32>}]} {
    %c0 = arith.constant 0 : index
    %c0_0 = arith.constant 0 : index
    %0 = vector.load %arg1[%c0, %c0_0] : memref<16x16xbf16, #tpu.memory_space<vmem>>, vector<16x16xbf16>
    %c0_1 = arith.constant 0 : index
    %c0_2 = arith.constant 0 : index
    %1 = vector.load %arg2[%c0_1, %c0_2] : memref<16x96xbf16, #tpu.memory_space<vmem>>, vector<16x96xbf16>
    %cst = arith.constant dense<0.000000e+00> : vector<16x96xf32>
    %2 = tpu.matmul %0, %1, %cst {dimension_numbers = #tpu.dot_dimension_numbers<[1], [0], [0], [1], [0, 0, 1, 1], [], []>} : vector<16x16xbf16>, vector<16x96xbf16>, vector<16x96xf32> -> vector<16x96xf32>
    %c0_3 = arith.constant 0 : index
    %c0_4 = arith.constant 0 : index
    %3 = vector.load %arg3[%c0_3, %c0_4] : memref<1x96xf32, #tpu.memory_space<vmem>>, vector<1x96xf32>
    %4 = vector.broadcast %3 : vector<1x96xf32> to vector<16x96xf32>
    %5 = arith.addf %2, %4 : vector<16x96xf32>
    %6 = vector.extract_strided_slice %5 {offsets = [0, 0], sizes = [16, 32], strides = [1, 1]} : vector<16x96xf32> to vector<16x32xf32>
    %7 = arith.truncf %6 : vector<16x32xf32> to vector<16x32xbf16>
    %c0_5 = arith.constant 0 : index
    %c0_6 = arith.constant 0 : index
    %c0_7 = arith.constant 0 : index
    %8 = vector.load %arg4[%c0_5, %c0_6, %c0_7] : memref<3x16x32xbf16, #tpu.memory_space<vmem>>, vector<1x16x32xbf16>
    %9 = vector.shape_cast %8 : vector<1x16x32xbf16> to vector<16x32xbf16>
    %10 = vector.shape_cast %7 : vector<16x32xbf16> to vector<1x16x32xbf16>
    tpu.vector_store %arg4[%c0_5, %c0_6, %c0_7], %10 {strides = array<i32>} : memref<3x16x32xbf16, #tpu.memory_space<vmem>>, vector<1x16x32xbf16>,
    %11 = vector.extract_strided_slice %5 {offsets = [0, 32], sizes = [16, 32], strides = [1, 1]} : vector<16x96xf32> to vector<16x32xf32>
    %12 = arith.truncf %11 : vector<16x32xf32> to vector<16x32xbf16>
    %c1 = arith.constant 1 : index
    %c0_8 = arith.constant 0 : index
    %c0_9 = arith.constant 0 : index
    %13 = vector.load %arg4[%c1, %c0_8, %c0_9] : memref<3x16x32xbf16, #tpu.memory_space<vmem>>, vector<1x16x32xbf16>
    %14 = vector.shape_cast %13 : vector<1x16x32xbf16> to vector<16x32xbf16>
    %15 = vector.shape_cast %12 : vector<16x32xbf16> to vector<1x16x32xbf16>
    tpu.vector_store %arg4[%c1, %c0_8, %c0_9], %15 {strides = array<i32>} : memref<3x16x32xbf16, #tpu.memory_space<vmem>>, vector<1x16x32xbf16>,
    %16 = vector.extract_strided_slice %5 {offsets = [0, 64], sizes = [16, 32], strides = [1, 1]} : vector<16x96xf32> to vector<16x32xf32>
    %17 = arith.truncf %16 : vector<16x32xf32> to vector<16x32xbf16>
    %c2 = arith.constant 2 : index
    %c0_10 = arith.constant 0 : index
    %c0_11 = arith.constant 0 : index
    %18 = vector.load %arg4[%c2, %c0_10, %c0_11] : memref<3x16x32xbf16, #tpu.memory_space<vmem>>, vector<1x16x32xbf16>
    %19 = vector.shape_cast %18 : vector<1x16x32xbf16> to vector<16x32xbf16>
    %20 = vector.shape_cast %17 : vector<16x32xbf16> to vector<1x16x32xbf16>
    tpu.vector_store %arg4[%c2, %c0_10, %c0_11], %20 {strides = array<i32>} : memref<3x16x32xbf16, #tpu.memory_space<vmem>>, vector<1x16x32xbf16>,
    return
  }
  func.func @transform_0(%arg0: i32) -> (i32, i32) {
    %c0_i32 = arith.constant 0 : i32
    %c0_i32_0 = arith.constant 0 : i32
    return %arg0, %c0_i32 : i32, i32
  }
  func.func @transform_1(%arg0: i32) -> (i32, i32) {
    %c0_i32 = arith.constant 0 : i32
    %c0_i32_0 = arith.constant 0 : i32
    %c0_i32_1 = arith.constant 0 : i32
    return %c0_i32, %c0_i32_0 : i32, i32
  }
  func.func @transform_2(%arg0: i32) -> (i32, i32) {
    %c0_i32 = arith.constant 0 : i32
    %c0_i32_0 = arith.constant 0 : i32
    %c0_i32_1 = arith.constant 0 : i32
    return %c0_i32, %c0_i32_0 : i32, i32
  }
  func.func @transform_3(%arg0: i32) -> (i32, i32, i32) {
    %c0_i32 = arith.constant 0 : i32
    %c0_i32_0 = arith.constant 0 : i32
    %c0_i32_1 = arith.constant 0 : i32
    return %c0_i32, %arg0, %c0_i32_0 : i32, i32, i32
  }
}

module attributes {stable_mosaic.version = 11 : i64} {
  func.func @_gru_chunk_kernel(%arg0: i32, %arg1: i32, %arg2: memref<3x8x2x32xbf16, #tpu.memory_space<vmem>>, %arg3: memref<2x1xi32, #tpu.memory_space<vmem>>, %arg4: memref<2x32xf32, #tpu.memory_space<vmem>>, %arg5: memref<3x32x32xbf16, #tpu.memory_space<vmem>>, %arg6: memref<3x1x32xf32, #tpu.memory_space<vmem>>, %arg7: memref<8x2x32xf32, #tpu.memory_space<vmem>>, %arg8: memref<2x32xf32, #tpu.memory_space<vmem>>) attributes {dimension_semantics = [#tpu.dimension_semantics<parallel>, #tpu.dimension_semantics<arbitrary>], iteration_bounds = array<i64: 1, 1>, scalar_prefetch = 0 : i64, scratch_operands = 1 : i64, tpu.core_type = #tpu.core_type<tc>, window_params = [{transform_indices = @transform_0, window_bounds = array<i64: 3, 8, 2, 32>}, {transform_indices = @transform_1, window_bounds = array<i64: 2, 1>}, {transform_indices = @transform_2, window_bounds = array<i64: 2, 32>}, {pipeline_mode = #tpu.pipeline_mode<synchronous>, transform_indices = @transform_3, window_bounds = array<i64: 3, 32, 32>}, {pipeline_mode = #tpu.pipeline_mode<synchronous>, transform_indices = @transform_4, window_bounds = array<i64: 3, 1, 32>}, {transform_indices = @transform_5, window_bounds = array<i64: 8, 2, 32>}]} {
    %c0_i32 = arith.constant 0 : i32
    %0 = arith.cmpi eq, %arg1, %c0_i32 : i32
    %1 = arith.extui %0 : i1 to i32
    %c0_i32_0 = arith.constant 0 : i32
    %2 = arith.cmpi ne, %1, %c0_i32_0 : i32
    scf.if %2 {
      %c0_167 = arith.constant 0 : index
      %c0_168 = arith.constant 0 : index
      %499 = vector.load %arg4[%c0_167, %c0_168] : memref<2x32xf32, #tpu.memory_space<vmem>>, vector<2x32xf32>
      %c0_169 = arith.constant 0 : index
      %c0_170 = arith.constant 0 : index
      %500 = vector.load %arg8[%c0_169, %c0_170] : memref<2x32xf32, #tpu.memory_space<vmem>>, vector<2x32xf32>
      tpu.vector_store %arg8[%c0_169, %c0_170], %499 {strides = array<i32>} : memref<2x32xf32, #tpu.memory_space<vmem>>, vector<2x32xf32>,
    } else {
    }
    %c0 = arith.constant 0 : index
    %c0_1 = arith.constant 0 : index
    %3 = vector.load %arg3[%c0, %c0_1] : memref<2x1xi32, #tpu.memory_space<vmem>>, vector<2x1xi32>
    %c0_2 = arith.constant 0 : index
    %c0_3 = arith.constant 0 : index
    %c0_4 = arith.constant 0 : index
    %4 = vector.load %arg5[%c0_2, %c0_3, %c0_4] : memref<3x32x32xbf16, #tpu.memory_space<vmem>>, vector<1x32x32xbf16>
    %5 = vector.shape_cast %4 : vector<1x32x32xbf16> to vector<32x32xbf16>
    %c1 = arith.constant 1 : index
    %c0_5 = arith.constant 0 : index
    %c0_6 = arith.constant 0 : index
    %6 = vector.load %arg5[%c1, %c0_5, %c0_6] : memref<3x32x32xbf16, #tpu.memory_space<vmem>>, vector<1x32x32xbf16>
    %7 = vector.shape_cast %6 : vector<1x32x32xbf16> to vector<32x32xbf16>
    %c2 = arith.constant 2 : index
    %c0_7 = arith.constant 0 : index
    %c0_8 = arith.constant 0 : index
    %8 = vector.load %arg5[%c2, %c0_7, %c0_8] : memref<3x32x32xbf16, #tpu.memory_space<vmem>>, vector<1x32x32xbf16>
    %9 = vector.shape_cast %8 : vector<1x32x32xbf16> to vector<32x32xbf16>
    %c0_9 = arith.constant 0 : index
    %c0_10 = arith.constant 0 : index
    %c0_11 = arith.constant 0 : index
    %10 = vector.load %arg6[%c0_9, %c0_10, %c0_11] : memref<3x1x32xf32, #tpu.memory_space<vmem>>, vector<1x1x32xf32>
    %11 = vector.shape_cast %10 : vector<1x1x32xf32> to vector<1x32xf32>
    %c1_12 = arith.constant 1 : index
    %c0_13 = arith.constant 0 : index
    %c0_14 = arith.constant 0 : index
    %12 = vector.load %arg6[%c1_12, %c0_13, %c0_14] : memref<3x1x32xf32, #tpu.memory_space<vmem>>, vector<1x1x32xf32>
    %13 = vector.shape_cast %12 : vector<1x1x32xf32> to vector<1x32xf32>
    %c2_15 = arith.constant 2 : index
    %c0_16 = arith.constant 0 : index
    %c0_17 = arith.constant 0 : index
    %14 = vector.load %arg6[%c2_15, %c0_16, %c0_17] : memref<3x1x32xf32, #tpu.memory_space<vmem>>, vector<1x1x32xf32>
    %15 = vector.shape_cast %14 : vector<1x1x32xf32> to vector<1x32xf32>
    %c8_i32 = arith.constant 8 : i32
    %16 = arith.muli %arg1, %c8_i32 : i32
    %c0_18 = arith.constant 0 : index
    %c0_19 = arith.constant 0 : index
    %17 = vector.load %arg8[%c0_18, %c0_19] : memref<2x32xf32, #tpu.memory_space<vmem>>, vector<2x32xf32>
    %c0_i32_20 = arith.constant 0 : i32
    %18 = arith.truncf %17 : vector<2x32xf32> to vector<2x32xbf16>
    %cst = arith.constant dense<0.000000e+00> : vector<2x32xf32>
    %19 = tpu.matmul %18, %5, %cst {dimension_numbers = #tpu.dot_dimension_numbers<[1], [0], [0], [1], [0, 0, 1, 1], [], []>} : vector<2x32xbf16>, vector<32x32xbf16>, vector<2x32xf32> -> vector<2x32xf32>
    %20 = vector.broadcast %11 : vector<1x32xf32> to vector<2x32xf32>
    %21 = arith.addf %19, %20 : vector<2x32xf32>
    %cst_21 = arith.constant dense<0.000000e+00> : vector<2x32xf32>
    %22 = tpu.matmul %18, %7, %cst_21 {dimension_numbers = #tpu.dot_dimension_numbers<[1], [0], [0], [1], [0, 0, 1, 1], [], []>} : vector<2x32xbf16>, vector<32x32xbf16>, vector<2x32xf32> -> vector<2x32xf32>
    %23 = vector.broadcast %13 : vector<1x32xf32> to vector<2x32xf32>
    %24 = arith.addf %22, %23 : vector<2x32xf32>
    %cst_22 = arith.constant dense<0.000000e+00> : vector<2x32xf32>
    %25 = tpu.matmul %18, %9, %cst_22 {dimension_numbers = #tpu.dot_dimension_numbers<[1], [0], [0], [1], [0, 0, 1, 1], [], []>} : vector<2x32xbf16>, vector<32x32xbf16>, vector<2x32xf32> -> vector<2x32xf32>
    %26 = vector.broadcast %15 : vector<1x32xf32> to vector<2x32xf32>
    %27 = arith.addf %25, %26 : vector<2x32xf32>
    %c0_23 = arith.constant 0 : index
    %28 = arith.index_cast %c0_i32_20 : i32 to index
    %c0_24 = arith.constant 0 : index
    %c0_25 = arith.constant 0 : index
    %29 = vector.load %arg2[%c0_23, %28, %c0_24, %c0_25] : memref<3x8x2x32xbf16, #tpu.memory_space<vmem>>, vector<1x1x2x32xbf16>
    %30 = vector.shape_cast %29 : vector<1x1x2x32xbf16> to vector<2x32xbf16>
    %31 = arith.extf %30 : vector<2x32xbf16> to vector<2x32xf32>
    %c1_26 = arith.constant 1 : index
    %32 = arith.index_cast %c0_i32_20 : i32 to index
    %c0_27 = arith.constant 0 : index
    %c0_28 = arith.constant 0 : index
    %33 = vector.load %arg2[%c1_26, %32, %c0_27, %c0_28] : memref<3x8x2x32xbf16, #tpu.memory_space<vmem>>, vector<1x1x2x32xbf16>
    %34 = vector.shape_cast %33 : vector<1x1x2x32xbf16> to vector<2x32xbf16>
    %35 = arith.extf %34 : vector<2x32xbf16> to vector<2x32xf32>
    %c2_29 = arith.constant 2 : index
    %36 = arith.index_cast %c0_i32_20 : i32 to index
    %c0_30 = arith.constant 0 : index
    %c0_31 = arith.constant 0 : index
    %37 = vector.load %arg2[%c2_29, %36, %c0_30, %c0_31] : memref<3x8x2x32xbf16, #tpu.memory_space<vmem>>, vector<1x1x2x32xbf16>
    %38 = vector.shape_cast %37 : vector<1x1x2x32xbf16> to vector<2x32xbf16>
    %39 = arith.extf %38 : vector<2x32xbf16> to vector<2x32xf32>
    %40 = arith.addf %31, %21 : vector<2x32xf32>
    %41 = arith.negf %40 : vector<2x32xf32>
    %42 = math.exp %41 : vector<2x32xf32>
    %cst_32 = arith.constant 1.000000e+00 : f32
    %43 = vector.broadcast %cst_32 : f32 to vector<2x32xf32>
    %44 = arith.addf %43, %42 : vector<2x32xf32>
    %45 = arith.divf %43, %44 : vector<2x32xf32>
    %46 = arith.addf %35, %24 : vector<2x32xf32>
    %47 = arith.negf %46 : vector<2x32xf32>
    %48 = math.exp %47 : vector<2x32xf32>
    %cst_33 = arith.constant 1.000000e+00 : f32
    %49 = vector.broadcast %cst_33 : f32 to vector<2x32xf32>
    %50 = arith.addf %49, %48 : vector<2x32xf32>
    %51 = arith.divf %49, %50 : vector<2x32xf32>
    %52 = arith.mulf %45, %27 : vector<2x32xf32>
    %53 = arith.addf %39, %52 : vector<2x32xf32>
    %54 = math.tanh %53 : vector<2x32xf32>
    %cst_34 = arith.constant 1.000000e+00 : f32
    %55 = vector.broadcast %cst_34 : f32 to vector<2x32xf32>
    %56 = arith.subf %55, %51 : vector<2x32xf32>
    %57 = arith.mulf %56, %54 : vector<2x32xf32>
    %58 = arith.mulf %51, %17 : vector<2x32xf32>
    %59 = arith.addf %57, %58 : vector<2x32xf32>
    %60 = arith.addi %16, %c0_i32_20 : i32
    %61 = vector.broadcast %60 : i32 to vector<2x1xi32>
    %62 = arith.cmpi sgt, %3, %61 : vector<2x1xi32>
    %63 = arith.extui %62 : vector<2x1xi1> to vector<2x1xi32>
    %64 = arith.sitofp %63 : vector<2x1xi32> to vector<2x1xf32>
    %65 = vector.broadcast %64 : vector<2x1xf32> to vector<2x32xf32>
    %66 = arith.mulf %65, %59 : vector<2x32xf32>
    %cst_35 = arith.constant 1.000000e+00 : f32
    %67 = vector.broadcast %cst_35 : f32 to vector<2x1xf32>
    %68 = arith.subf %67, %64 : vector<2x1xf32>
    %69 = vector.broadcast %68 : vector<2x1xf32> to vector<2x32xf32>
    %70 = arith.mulf %69, %17 : vector<2x32xf32>
    %71 = arith.addf %66, %70 : vector<2x32xf32>
    %72 = vector.broadcast %64 : vector<2x1xf32> to vector<2x32xf32>
    %73 = arith.mulf %71, %72 : vector<2x32xf32>
    %74 = arith.index_cast %c0_i32_20 : i32 to index
    %c0_36 = arith.constant 0 : index
    %c0_37 = arith.constant 0 : index
    %75 = vector.load %arg7[%74, %c0_36, %c0_37] : memref<8x2x32xf32, #tpu.memory_space<vmem>>, vector<1x2x32xf32>
    %76 = vector.shape_cast %75 : vector<1x2x32xf32> to vector<2x32xf32>
    %77 = vector.shape_cast %73 : vector<2x32xf32> to vector<1x2x32xf32>
    tpu.vector_store %arg7[%74, %c0_36, %c0_37], %77 {strides = array<i32>} : memref<8x2x32xf32, #tpu.memory_space<vmem>>, vector<1x2x32xf32>,
    %c1_i32 = arith.constant 1 : i32
    %78 = arith.truncf %71 : vector<2x32xf32> to vector<2x32xbf16>
    %cst_38 = arith.constant dense<0.000000e+00> : vector<2x32xf32>
    %79 = tpu.matmul %78, %5, %cst_38 {dimension_numbers = #tpu.dot_dimension_numbers<[1], [0], [0], [1], [0, 0, 1, 1], [], []>} : vector<2x32xbf16>, vector<32x32xbf16>, vector<2x32xf32> -> vector<2x32xf32>
    %80 = vector.broadcast %11 : vector<1x32xf32> to vector<2x32xf32>
    %81 = arith.addf %79, %80 : vector<2x32xf32>
    %cst_39 = arith.constant dense<0.000000e+00> : vector<2x32xf32>
    %82 = tpu.matmul %78, %7, %cst_39 {dimension_numbers = #tpu.dot_dimension_numbers<[1], [0], [0], [1], [0, 0, 1, 1], [], []>} : vector<2x32xbf16>, vector<32x32xbf16>, vector<2x32xf32> -> vector<2x32xf32>
    %83 = vector.broadcast %13 : vector<1x32xf32> to vector<2x32xf32>
    %84 = arith.addf %82, %83 : vector<2x32xf32>
    %cst_40 = arith.constant dense<0.000000e+00> : vector<2x32xf32>
    %85 = tpu.matmul %78, %9, %cst_40 {dimension_numbers = #tpu.dot_dimension_numbers<[1], [0], [0], [1], [0, 0, 1, 1], [], []>} : vector<2x32xbf16>, vector<32x32xbf16>, vector<2x32xf32> -> vector<2x32xf32>
    %86 = vector.broadcast %15 : vector<1x32xf32> to vector<2x32xf32>
    %87 = arith.addf %85, %86 : vector<2x32xf32>
    %c0_41 = arith.constant 0 : index
    %88 = arith.index_cast %c1_i32 : i32 to index
    %c0_42 = arith.constant 0 : index
    %c0_43 = arith.constant 0 : index
    %89 = vector.load %arg2[%c0_41, %88, %c0_42, %c0_43] : memref<3x8x2x32xbf16, #tpu.memory_space<vmem>>, vector<1x1x2x32xbf16>
    %90 = vector.shape_cast %89 : vector<1x1x2x32xbf16> to vector<2x32xbf16>
    %91 = arith.extf %90 : vector<2x32xbf16> to vector<2x32xf32>
    %c1_44 = arith.constant 1 : index
    %92 = arith.index_cast %c1_i32 : i32 to index
    %c0_45 = arith.constant 0 : index
    %c0_46 = arith.constant 0 : index
    %93 = vector.load %arg2[%c1_44, %92, %c0_45, %c0_46] : memref<3x8x2x32xbf16, #tpu.memory_space<vmem>>, vector<1x1x2x32xbf16>
    %94 = vector.shape_cast %93 : vector<1x1x2x32xbf16> to vector<2x32xbf16>
    %95 = arith.extf %94 : vector<2x32xbf16> to vector<2x32xf32>
    %c2_47 = arith.constant 2 : index
    %96 = arith.index_cast %c1_i32 : i32 to index
    %c0_48 = arith.constant 0 : index
    %c0_49 = arith.constant 0 : index
    %97 = vector.load %arg2[%c2_47, %96, %c0_48, %c0_49] : memref<3x8x2x32xbf16, #tpu.memory_space<vmem>>, vector<1x1x2x32xbf16>
    %98 = vector.shape_cast %97 : vector<1x1x2x32xbf16> to vector<2x32xbf16>
    %99 = arith.extf %98 : vector<2x32xbf16> to vector<2x32xf32>
    %100 = arith.addf %91, %81 : vector<2x32xf32>
    %101 = arith.negf %100 : vector<2x32xf32>
    %102 = math.exp %101 : vector<2x32xf32>
    %cst_50 = arith.constant 1.000000e+00 : f32
    %103 = vector.broadcast %cst_50 : f32 to vector<2x32xf32>
    %104 = arith.addf %103, %102 : vector<2x32xf32>
    %105 = arith.divf %103, %104 : vector<2x32xf32>
    %106 = arith.addf %95, %84 : vector<2x32xf32>
    %107 = arith.negf %106 : vector<2x32xf32>
    %108 = math.exp %107 : vector<2x32xf32>
    %cst_51 = arith.constant 1.000000e+00 : f32
    %109 = vector.broadcast %cst_51 : f32 to vector<2x32xf32>
    %110 = arith.addf %109, %108 : vector<2x32xf32>
    %111 = arith.divf %109, %110 : vector<2x32xf32>
    %112 = arith.mulf %105, %87 : vector<2x32xf32>
    %113 = arith.addf %99, %112 : vector<2x32xf32>
    %114 = math.tanh %113 : vector<2x32xf32>
    %cst_52 = arith.constant 1.000000e+00 : f32
    %115 = vector.broadcast %cst_52 : f32 to vector<2x32xf32>
    %116 = arith.subf %115, %111 : vector<2x32xf32>
    %117 = arith.mulf %116, %114 : vector<2x32xf32>
    %118 = arith.mulf %111, %71 : vector<2x32xf32>
    %119 = arith.addf %117, %118 : vector<2x32xf32>
    %120 = arith.addi %16, %c1_i32 : i32
    %121 = vector.broadcast %120 : i32 to vector<2x1xi32>
    %122 = arith.cmpi sgt, %3, %121 : vector<2x1xi32>
    %123 = arith.extui %122 : vector<2x1xi1> to vector<2x1xi32>
    %124 = arith.sitofp %123 : vector<2x1xi32> to vector<2x1xf32>
    %125 = vector.broadcast %124 : vector<2x1xf32> to vector<2x32xf32>
    %126 = arith.mulf %125, %119 : vector<2x32xf32>
    %cst_53 = arith.constant 1.000000e+00 : f32
    %127 = vector.broadcast %cst_53 : f32 to vector<2x1xf32>
    %128 = arith.subf %127, %124 : vector<2x1xf32>
    %129 = vector.broadcast %128 : vector<2x1xf32> to vector<2x32xf32>
    %130 = arith.mulf %129, %71 : vector<2x32xf32>
    %131 = arith.addf %126, %130 : vector<2x32xf32>
    %132 = vector.broadcast %124 : vector<2x1xf32> to vector<2x32xf32>
    %133 = arith.mulf %131, %132 : vector<2x32xf32>
    %134 = arith.index_cast %c1_i32 : i32 to index
    %c0_54 = arith.constant 0 : index
    %c0_55 = arith.constant 0 : index
    %135 = vector.load %arg7[%134, %c0_54, %c0_55] : memref<8x2x32xf32, #tpu.memory_space<vmem>>, vector<1x2x32xf32>
    %136 = vector.shape_cast %135 : vector<1x2x32xf32> to vector<2x32xf32>
    %137 = vector.shape_cast %133 : vector<2x32xf32> to vector<1x2x32xf32>
    tpu.vector_store %arg7[%134, %c0_54, %c0_55], %137 {strides = array<i32>} : memref<8x2x32xf32, #tpu.memory_space<vmem>>, vector<1x2x32xf32>,
    %c2_i32 = arith.constant 2 : i32
    %138 = arith.truncf %131 : vector<2x32xf32> to vector<2x32xbf16>
    %cst_56 = arith.constant dense<0.000000e+00> : vector<2x32xf32>
    %139 = tpu.matmul %138, %5, %cst_56 {dimension_numbers = #tpu.dot_dimension_numbers<[1], [0], [0], [1], [0, 0, 1, 1], [], []>} : vector<2x32xbf16>, vector<32x32xbf16>, vector<2x32xf32> -> vector<2x32xf32>
    %140 = vector.broadcast %11 : vector<1x32xf32> to vector<2x32xf32>
    %141 = arith.addf %139, %140 : vector<2x32xf32>
    %cst_57 = arith.constant dense<0.000000e+00> : vector<2x32xf32>
    %142 = tpu.matmul %138, %7, %cst_57 {dimension_numbers = #tpu.dot_dimension_numbers<[1], [0], [0], [1], [0, 0, 1, 1], [], []>} : vector<2x32xbf16>, vector<32x32xbf16>, vector<2x32xf32> -> vector<2x32xf32>
    %143 = vector.broadcast %13 : vector<1x32xf32> to vector<2x32xf32>
    %144 = arith.addf %142, %143 : vector<2x32xf32>
    %cst_58 = arith.constant dense<0.000000e+00> : vector<2x32xf32>
    %145 = tpu.matmul %138, %9, %cst_58 {dimension_numbers = #tpu.dot_dimension_numbers<[1], [0], [0], [1], [0, 0, 1, 1], [], []>} : vector<2x32xbf16>, vector<32x32xbf16>, vector<2x32xf32> -> vector<2x32xf32>
    %146 = vector.broadcast %15 : vector<1x32xf32> to vector<2x32xf32>
    %147 = arith.addf %145, %146 : vector<2x32xf32>
    %c0_59 = arith.constant 0 : index
    %148 = arith.index_cast %c2_i32 : i32 to index
    %c0_60 = arith.constant 0 : index
    %c0_61 = arith.constant 0 : index
    %149 = vector.load %arg2[%c0_59, %148, %c0_60, %c0_61] : memref<3x8x2x32xbf16, #tpu.memory_space<vmem>>, vector<1x1x2x32xbf16>
    %150 = vector.shape_cast %149 : vector<1x1x2x32xbf16> to vector<2x32xbf16>
    %151 = arith.extf %150 : vector<2x32xbf16> to vector<2x32xf32>
    %c1_62 = arith.constant 1 : index
    %152 = arith.index_cast %c2_i32 : i32 to index
    %c0_63 = arith.constant 0 : index
    %c0_64 = arith.constant 0 : index
    %153 = vector.load %arg2[%c1_62, %152, %c0_63, %c0_64] : memref<3x8x2x32xbf16, #tpu.memory_space<vmem>>, vector<1x1x2x32xbf16>
    %154 = vector.shape_cast %153 : vector<1x1x2x32xbf16> to vector<2x32xbf16>
    %155 = arith.extf %154 : vector<2x32xbf16> to vector<2x32xf32>
    %c2_65 = arith.constant 2 : index
    %156 = arith.index_cast %c2_i32 : i32 to index
    %c0_66 = arith.constant 0 : index
    %c0_67 = arith.constant 0 : index
    %157 = vector.load %arg2[%c2_65, %156, %c0_66, %c0_67] : memref<3x8x2x32xbf16, #tpu.memory_space<vmem>>, vector<1x1x2x32xbf16>
    %158 = vector.shape_cast %157 : vector<1x1x2x32xbf16> to vector<2x32xbf16>
    %159 = arith.extf %158 : vector<2x32xbf16> to vector<2x32xf32>
    %160 = arith.addf %151, %141 : vector<2x32xf32>
    %161 = arith.negf %160 : vector<2x32xf32>
    %162 = math.exp %161 : vector<2x32xf32>
    %cst_68 = arith.constant 1.000000e+00 : f32
    %163 = vector.broadcast %cst_68 : f32 to vector<2x32xf32>
    %164 = arith.addf %163, %162 : vector<2x32xf32>
    %165 = arith.divf %163, %164 : vector<2x32xf32>
    %166 = arith.addf %155, %144 : vector<2x32xf32>
    %167 = arith.negf %166 : vector<2x32xf32>
    %168 = math.exp %167 : vector<2x32xf32>
    %cst_69 = arith.constant 1.000000e+00 : f32
    %169 = vector.broadcast %cst_69 : f32 to vector<2x32xf32>
    %170 = arith.addf %169, %168 : vector<2x32xf32>
    %171 = arith.divf %169, %170 : vector<2x32xf32>
    %172 = arith.mulf %165, %147 : vector<2x32xf32>
    %173 = arith.addf %159, %172 : vector<2x32xf32>
    %174 = math.tanh %173 : vector<2x32xf32>
    %cst_70 = arith.constant 1.000000e+00 : f32
    %175 = vector.broadcast %cst_70 : f32 to vector<2x32xf32>
    %176 = arith.subf %175, %171 : vector<2x32xf32>
    %177 = arith.mulf %176, %174 : vector<2x32xf32>
    %178 = arith.mulf %171, %131 : vector<2x32xf32>
    %179 = arith.addf %177, %178 : vector<2x32xf32>
    %180 = arith.addi %16, %c2_i32 : i32
    %181 = vector.broadcast %180 : i32 to vector<2x1xi32>
    %182 = arith.cmpi sgt, %3, %181 : vector<2x1xi32>
    %183 = arith.extui %182 : vector<2x1xi1> to vector<2x1xi32>
    %184 = arith.sitofp %183 : vector<2x1xi32> to vector<2x1xf32>
    %185 = vector.broadcast %184 : vector<2x1xf32> to vector<2x32xf32>
    %186 = arith.mulf %185, %179 : vector<2x32xf32>
    %cst_71 = arith.constant 1.000000e+00 : f32
    %187 = vector.broadcast %cst_71 : f32 to vector<2x1xf32>
    %188 = arith.subf %187, %184 : vector<2x1xf32>
    %189 = vector.broadcast %188 : vector<2x1xf32> to vector<2x32xf32>
    %190 = arith.mulf %189, %131 : vector<2x32xf32>
    %191 = arith.addf %186, %190 : vector<2x32xf32>
    %192 = vector.broadcast %184 : vector<2x1xf32> to vector<2x32xf32>
    %193 = arith.mulf %191, %192 : vector<2x32xf32>
    %194 = arith.index_cast %c2_i32 : i32 to index
    %c0_72 = arith.constant 0 : index
    %c0_73 = arith.constant 0 : index
    %195 = vector.load %arg7[%194, %c0_72, %c0_73] : memref<8x2x32xf32, #tpu.memory_space<vmem>>, vector<1x2x32xf32>
    %196 = vector.shape_cast %195 : vector<1x2x32xf32> to vector<2x32xf32>
    %197 = vector.shape_cast %193 : vector<2x32xf32> to vector<1x2x32xf32>
    tpu.vector_store %arg7[%194, %c0_72, %c0_73], %197 {strides = array<i32>} : memref<8x2x32xf32, #tpu.memory_space<vmem>>, vector<1x2x32xf32>,
    %c3_i32 = arith.constant 3 : i32
    %198 = arith.truncf %191 : vector<2x32xf32> to vector<2x32xbf16>
    %cst_74 = arith.constant dense<0.000000e+00> : vector<2x32xf32>
    %199 = tpu.matmul %198, %5, %cst_74 {dimension_numbers = #tpu.dot_dimension_numbers<[1], [0], [0], [1], [0, 0, 1, 1], [], []>} : vector<2x32xbf16>, vector<32x32xbf16>, vector<2x32xf32> -> vector<2x32xf32>
    %200 = vector.broadcast %11 : vector<1x32xf32> to vector<2x32xf32>
    %201 = arith.addf %199, %200 : vector<2x32xf32>
    %cst_75 = arith.constant dense<0.000000e+00> : vector<2x32xf32>
    %202 = tpu.matmul %198, %7, %cst_75 {dimension_numbers = #tpu.dot_dimension_numbers<[1], [0], [0], [1], [0, 0, 1, 1], [], []>} : vector<2x32xbf16>, vector<32x32xbf16>, vector<2x32xf32> -> vector<2x32xf32>
    %203 = vector.broadcast %13 : vector<1x32xf32> to vector<2x32xf32>
    %204 = arith.addf %202, %203 : vector<2x32xf32>
    %cst_76 = arith.constant dense<0.000000e+00> : vector<2x32xf32>
    %205 = tpu.matmul %198, %9, %cst_76 {dimension_numbers = #tpu.dot_dimension_numbers<[1], [0], [0], [1], [0, 0, 1, 1], [], []>} : vector<2x32xbf16>, vector<32x32xbf16>, vector<2x32xf32> -> vector<2x32xf32>
    %206 = vector.broadcast %15 : vector<1x32xf32> to vector<2x32xf32>
    %207 = arith.addf %205, %206 : vector<2x32xf32>
    %c0_77 = arith.constant 0 : index
    %208 = arith.index_cast %c3_i32 : i32 to index
    %c0_78 = arith.constant 0 : index
    %c0_79 = arith.constant 0 : index
    %209 = vector.load %arg2[%c0_77, %208, %c0_78, %c0_79] : memref<3x8x2x32xbf16, #tpu.memory_space<vmem>>, vector<1x1x2x32xbf16>
    %210 = vector.shape_cast %209 : vector<1x1x2x32xbf16> to vector<2x32xbf16>
    %211 = arith.extf %210 : vector<2x32xbf16> to vector<2x32xf32>
    %c1_80 = arith.constant 1 : index
    %212 = arith.index_cast %c3_i32 : i32 to index
    %c0_81 = arith.constant 0 : index
    %c0_82 = arith.constant 0 : index
    %213 = vector.load %arg2[%c1_80, %212, %c0_81, %c0_82] : memref<3x8x2x32xbf16, #tpu.memory_space<vmem>>, vector<1x1x2x32xbf16>
    %214 = vector.shape_cast %213 : vector<1x1x2x32xbf16> to vector<2x32xbf16>
    %215 = arith.extf %214 : vector<2x32xbf16> to vector<2x32xf32>
    %c2_83 = arith.constant 2 : index
    %216 = arith.index_cast %c3_i32 : i32 to index
    %c0_84 = arith.constant 0 : index
    %c0_85 = arith.constant 0 : index
    %217 = vector.load %arg2[%c2_83, %216, %c0_84, %c0_85] : memref<3x8x2x32xbf16, #tpu.memory_space<vmem>>, vector<1x1x2x32xbf16>
    %218 = vector.shape_cast %217 : vector<1x1x2x32xbf16> to vector<2x32xbf16>
    %219 = arith.extf %218 : vector<2x32xbf16> to vector<2x32xf32>
    %220 = arith.addf %211, %201 : vector<2x32xf32>
    %221 = arith.negf %220 : vector<2x32xf32>
    %222 = math.exp %221 : vector<2x32xf32>
    %cst_86 = arith.constant 1.000000e+00 : f32
    %223 = vector.broadcast %cst_86 : f32 to vector<2x32xf32>
    %224 = arith.addf %223, %222 : vector<2x32xf32>
    %225 = arith.divf %223, %224 : vector<2x32xf32>
    %226 = arith.addf %215, %204 : vector<2x32xf32>
    %227 = arith.negf %226 : vector<2x32xf32>
    %228 = math.exp %227 : vector<2x32xf32>
    %cst_87 = arith.constant 1.000000e+00 : f32
    %229 = vector.broadcast %cst_87 : f32 to vector<2x32xf32>
    %230 = arith.addf %229, %228 : vector<2x32xf32>
    %231 = arith.divf %229, %230 : vector<2x32xf32>
    %232 = arith.mulf %225, %207 : vector<2x32xf32>
    %233 = arith.addf %219, %232 : vector<2x32xf32>
    %234 = math.tanh %233 : vector<2x32xf32>
    %cst_88 = arith.constant 1.000000e+00 : f32
    %235 = vector.broadcast %cst_88 : f32 to vector<2x32xf32>
    %236 = arith.subf %235, %231 : vector<2x32xf32>
    %237 = arith.mulf %236, %234 : vector<2x32xf32>
    %238 = arith.mulf %231, %191 : vector<2x32xf32>
    %239 = arith.addf %237, %238 : vector<2x32xf32>
    %240 = arith.addi %16, %c3_i32 : i32
    %241 = vector.broadcast %240 : i32 to vector<2x1xi32>
    %242 = arith.cmpi sgt, %3, %241 : vector<2x1xi32>
    %243 = arith.extui %242 : vector<2x1xi1> to vector<2x1xi32>
    %244 = arith.sitofp %243 : vector<2x1xi32> to vector<2x1xf32>
    %245 = vector.broadcast %244 : vector<2x1xf32> to vector<2x32xf32>
    %246 = arith.mulf %245, %239 : vector<2x32xf32>
    %cst_89 = arith.constant 1.000000e+00 : f32
    %247 = vector.broadcast %cst_89 : f32 to vector<2x1xf32>
    %248 = arith.subf %247, %244 : vector<2x1xf32>
    %249 = vector.broadcast %248 : vector<2x1xf32> to vector<2x32xf32>
    %250 = arith.mulf %249, %191 : vector<2x32xf32>
    %251 = arith.addf %246, %250 : vector<2x32xf32>
    %252 = vector.broadcast %244 : vector<2x1xf32> to vector<2x32xf32>
    %253 = arith.mulf %251, %252 : vector<2x32xf32>
    %254 = arith.index_cast %c3_i32 : i32 to index
    %c0_90 = arith.constant 0 : index
    %c0_91 = arith.constant 0 : index
    %255 = vector.load %arg7[%254, %c0_90, %c0_91] : memref<8x2x32xf32, #tpu.memory_space<vmem>>, vector<1x2x32xf32>
    %256 = vector.shape_cast %255 : vector<1x2x32xf32> to vector<2x32xf32>
    %257 = vector.shape_cast %253 : vector<2x32xf32> to vector<1x2x32xf32>
    tpu.vector_store %arg7[%254, %c0_90, %c0_91], %257 {strides = array<i32>} : memref<8x2x32xf32, #tpu.memory_space<vmem>>, vector<1x2x32xf32>,
    %c4_i32 = arith.constant 4 : i32
    %258 = arith.truncf %251 : vector<2x32xf32> to vector<2x32xbf16>
    %cst_92 = arith.constant dense<0.000000e+00> : vector<2x32xf32>
    %259 = tpu.matmul %258, %5, %cst_92 {dimension_numbers = #tpu.dot_dimension_numbers<[1], [0], [0], [1], [0, 0, 1, 1], [], []>} : vector<2x32xbf16>, vector<32x32xbf16>, vector<2x32xf32> -> vector<2x32xf32>
    %260 = vector.broadcast %11 : vector<1x32xf32> to vector<2x32xf32>
    %261 = arith.addf %259, %260 : vector<2x32xf32>
    %cst_93 = arith.constant dense<0.000000e+00> : vector<2x32xf32>
    %262 = tpu.matmul %258, %7, %cst_93 {dimension_numbers = #tpu.dot_dimension_numbers<[1], [0], [0], [1], [0, 0, 1, 1], [], []>} : vector<2x32xbf16>, vector<32x32xbf16>, vector<2x32xf32> -> vector<2x32xf32>
    %263 = vector.broadcast %13 : vector<1x32xf32> to vector<2x32xf32>
    %264 = arith.addf %262, %263 : vector<2x32xf32>
    %cst_94 = arith.constant dense<0.000000e+00> : vector<2x32xf32>
    %265 = tpu.matmul %258, %9, %cst_94 {dimension_numbers = #tpu.dot_dimension_numbers<[1], [0], [0], [1], [0, 0, 1, 1], [], []>} : vector<2x32xbf16>, vector<32x32xbf16>, vector<2x32xf32> -> vector<2x32xf32>
    %266 = vector.broadcast %15 : vector<1x32xf32> to vector<2x32xf32>
    %267 = arith.addf %265, %266 : vector<2x32xf32>
    %c0_95 = arith.constant 0 : index
    %268 = arith.index_cast %c4_i32 : i32 to index
    %c0_96 = arith.constant 0 : index
    %c0_97 = arith.constant 0 : index
    %269 = vector.load %arg2[%c0_95, %268, %c0_96, %c0_97] : memref<3x8x2x32xbf16, #tpu.memory_space<vmem>>, vector<1x1x2x32xbf16>
    %270 = vector.shape_cast %269 : vector<1x1x2x32xbf16> to vector<2x32xbf16>
    %271 = arith.extf %270 : vector<2x32xbf16> to vector<2x32xf32>
    %c1_98 = arith.constant 1 : index
    %272 = arith.index_cast %c4_i32 : i32 to index
    %c0_99 = arith.constant 0 : index
    %c0_100 = arith.constant 0 : index
    %273 = vector.load %arg2[%c1_98, %272, %c0_99, %c0_100] : memref<3x8x2x32xbf16, #tpu.memory_space<vmem>>, vector<1x1x2x32xbf16>
    %274 = vector.shape_cast %273 : vector<1x1x2x32xbf16> to vector<2x32xbf16>
    %275 = arith.extf %274 : vector<2x32xbf16> to vector<2x32xf32>
    %c2_101 = arith.constant 2 : index
    %276 = arith.index_cast %c4_i32 : i32 to index
    %c0_102 = arith.constant 0 : index
    %c0_103 = arith.constant 0 : index
    %277 = vector.load %arg2[%c2_101, %276, %c0_102, %c0_103] : memref<3x8x2x32xbf16, #tpu.memory_space<vmem>>, vector<1x1x2x32xbf16>
    %278 = vector.shape_cast %277 : vector<1x1x2x32xbf16> to vector<2x32xbf16>
    %279 = arith.extf %278 : vector<2x32xbf16> to vector<2x32xf32>
    %280 = arith.addf %271, %261 : vector<2x32xf32>
    %281 = arith.negf %280 : vector<2x32xf32>
    %282 = math.exp %281 : vector<2x32xf32>
    %cst_104 = arith.constant 1.000000e+00 : f32
    %283 = vector.broadcast %cst_104 : f32 to vector<2x32xf32>
    %284 = arith.addf %283, %282 : vector<2x32xf32>
    %285 = arith.divf %283, %284 : vector<2x32xf32>
    %286 = arith.addf %275, %264 : vector<2x32xf32>
    %287 = arith.negf %286 : vector<2x32xf32>
    %288 = math.exp %287 : vector<2x32xf32>
    %cst_105 = arith.constant 1.000000e+00 : f32
    %289 = vector.broadcast %cst_105 : f32 to vector<2x32xf32>
    %290 = arith.addf %289, %288 : vector<2x32xf32>
    %291 = arith.divf %289, %290 : vector<2x32xf32>
    %292 = arith.mulf %285, %267 : vector<2x32xf32>
    %293 = arith.addf %279, %292 : vector<2x32xf32>
    %294 = math.tanh %293 : vector<2x32xf32>
    %cst_106 = arith.constant 1.000000e+00 : f32
    %295 = vector.broadcast %cst_106 : f32 to vector<2x32xf32>
    %296 = arith.subf %295, %291 : vector<2x32xf32>
    %297 = arith.mulf %296, %294 : vector<2x32xf32>
    %298 = arith.mulf %291, %251 : vector<2x32xf32>
    %299 = arith.addf %297, %298 : vector<2x32xf32>
    %300 = arith.addi %16, %c4_i32 : i32
    %301 = vector.broadcast %300 : i32 to vector<2x1xi32>
    %302 = arith.cmpi sgt, %3, %301 : vector<2x1xi32>
    %303 = arith.extui %302 : vector<2x1xi1> to vector<2x1xi32>
    %304 = arith.sitofp %303 : vector<2x1xi32> to vector<2x1xf32>
    %305 = vector.broadcast %304 : vector<2x1xf32> to vector<2x32xf32>
    %306 = arith.mulf %305, %299 : vector<2x32xf32>
    %cst_107 = arith.constant 1.000000e+00 : f32
    %307 = vector.broadcast %cst_107 : f32 to vector<2x1xf32>
    %308 = arith.subf %307, %304 : vector<2x1xf32>
    %309 = vector.broadcast %308 : vector<2x1xf32> to vector<2x32xf32>
    %310 = arith.mulf %309, %251 : vector<2x32xf32>
    %311 = arith.addf %306, %310 : vector<2x32xf32>
    %312 = vector.broadcast %304 : vector<2x1xf32> to vector<2x32xf32>
    %313 = arith.mulf %311, %312 : vector<2x32xf32>
    %314 = arith.index_cast %c4_i32 : i32 to index
    %c0_108 = arith.constant 0 : index
    %c0_109 = arith.constant 0 : index
    %315 = vector.load %arg7[%314, %c0_108, %c0_109] : memref<8x2x32xf32, #tpu.memory_space<vmem>>, vector<1x2x32xf32>
    %316 = vector.shape_cast %315 : vector<1x2x32xf32> to vector<2x32xf32>
    %317 = vector.shape_cast %313 : vector<2x32xf32> to vector<1x2x32xf32>
    tpu.vector_store %arg7[%314, %c0_108, %c0_109], %317 {strides = array<i32>} : memref<8x2x32xf32, #tpu.memory_space<vmem>>, vector<1x2x32xf32>,
    %c5_i32 = arith.constant 5 : i32
    %318 = arith.truncf %311 : vector<2x32xf32> to vector<2x32xbf16>
    %cst_110 = arith.constant dense<0.000000e+00> : vector<2x32xf32>
    %319 = tpu.matmul %318, %5, %cst_110 {dimension_numbers = #tpu.dot_dimension_numbers<[1], [0], [0], [1], [0, 0, 1, 1], [], []>} : vector<2x32xbf16>, vector<32x32xbf16>, vector<2x32xf32> -> vector<2x32xf32>
    %320 = vector.broadcast %11 : vector<1x32xf32> to vector<2x32xf32>
    %321 = arith.addf %319, %320 : vector<2x32xf32>
    %cst_111 = arith.constant dense<0.000000e+00> : vector<2x32xf32>
    %322 = tpu.matmul %318, %7, %cst_111 {dimension_numbers = #tpu.dot_dimension_numbers<[1], [0], [0], [1], [0, 0, 1, 1], [], []>} : vector<2x32xbf16>, vector<32x32xbf16>, vector<2x32xf32> -> vector<2x32xf32>
    %323 = vector.broadcast %13 : vector<1x32xf32> to vector<2x32xf32>
    %324 = arith.addf %322, %323 : vector<2x32xf32>
    %cst_112 = arith.constant dense<0.000000e+00> : vector<2x32xf32>
    %325 = tpu.matmul %318, %9, %cst_112 {dimension_numbers = #tpu.dot_dimension_numbers<[1], [0], [0], [1], [0, 0, 1, 1], [], []>} : vector<2x32xbf16>, vector<32x32xbf16>, vector<2x32xf32> -> vector<2x32xf32>
    %326 = vector.broadcast %15 : vector<1x32xf32> to vector<2x32xf32>
    %327 = arith.addf %325, %326 : vector<2x32xf32>
    %c0_113 = arith.constant 0 : index
    %328 = arith.index_cast %c5_i32 : i32 to index
    %c0_114 = arith.constant 0 : index
    %c0_115 = arith.constant 0 : index
    %329 = vector.load %arg2[%c0_113, %328, %c0_114, %c0_115] : memref<3x8x2x32xbf16, #tpu.memory_space<vmem>>, vector<1x1x2x32xbf16>
    %330 = vector.shape_cast %329 : vector<1x1x2x32xbf16> to vector<2x32xbf16>
    %331 = arith.extf %330 : vector<2x32xbf16> to vector<2x32xf32>
    %c1_116 = arith.constant 1 : index
    %332 = arith.index_cast %c5_i32 : i32 to index
    %c0_117 = arith.constant 0 : index
    %c0_118 = arith.constant 0 : index
    %333 = vector.load %arg2[%c1_116, %332, %c0_117, %c0_118] : memref<3x8x2x32xbf16, #tpu.memory_space<vmem>>, vector<1x1x2x32xbf16>
    %334 = vector.shape_cast %333 : vector<1x1x2x32xbf16> to vector<2x32xbf16>
    %335 = arith.extf %334 : vector<2x32xbf16> to vector<2x32xf32>
    %c2_119 = arith.constant 2 : index
    %336 = arith.index_cast %c5_i32 : i32 to index
    %c0_120 = arith.constant 0 : index
    %c0_121 = arith.constant 0 : index
    %337 = vector.load %arg2[%c2_119, %336, %c0_120, %c0_121] : memref<3x8x2x32xbf16, #tpu.memory_space<vmem>>, vector<1x1x2x32xbf16>
    %338 = vector.shape_cast %337 : vector<1x1x2x32xbf16> to vector<2x32xbf16>
    %339 = arith.extf %338 : vector<2x32xbf16> to vector<2x32xf32>
    %340 = arith.addf %331, %321 : vector<2x32xf32>
    %341 = arith.negf %340 : vector<2x32xf32>
    %342 = math.exp %341 : vector<2x32xf32>
    %cst_122 = arith.constant 1.000000e+00 : f32
    %343 = vector.broadcast %cst_122 : f32 to vector<2x32xf32>
    %344 = arith.addf %343, %342 : vector<2x32xf32>
    %345 = arith.divf %343, %344 : vector<2x32xf32>
    %346 = arith.addf %335, %324 : vector<2x32xf32>
    %347 = arith.negf %346 : vector<2x32xf32>
    %348 = math.exp %347 : vector<2x32xf32>
    %cst_123 = arith.constant 1.000000e+00 : f32
    %349 = vector.broadcast %cst_123 : f32 to vector<2x32xf32>
    %350 = arith.addf %349, %348 : vector<2x32xf32>
    %351 = arith.divf %349, %350 : vector<2x32xf32>
    %352 = arith.mulf %345, %327 : vector<2x32xf32>
    %353 = arith.addf %339, %352 : vector<2x32xf32>
    %354 = math.tanh %353 : vector<2x32xf32>
    %cst_124 = arith.constant 1.000000e+00 : f32
    %355 = vector.broadcast %cst_124 : f32 to vector<2x32xf32>
    %356 = arith.subf %355, %351 : vector<2x32xf32>
    %357 = arith.mulf %356, %354 : vector<2x32xf32>
    %358 = arith.mulf %351, %311 : vector<2x32xf32>
    %359 = arith.addf %357, %358 : vector<2x32xf32>
    %360 = arith.addi %16, %c5_i32 : i32
    %361 = vector.broadcast %360 : i32 to vector<2x1xi32>
    %362 = arith.cmpi sgt, %3, %361 : vector<2x1xi32>
    %363 = arith.extui %362 : vector<2x1xi1> to vector<2x1xi32>
    %364 = arith.sitofp %363 : vector<2x1xi32> to vector<2x1xf32>
    %365 = vector.broadcast %364 : vector<2x1xf32> to vector<2x32xf32>
    %366 = arith.mulf %365, %359 : vector<2x32xf32>
    %cst_125 = arith.constant 1.000000e+00 : f32
    %367 = vector.broadcast %cst_125 : f32 to vector<2x1xf32>
    %368 = arith.subf %367, %364 : vector<2x1xf32>
    %369 = vector.broadcast %368 : vector<2x1xf32> to vector<2x32xf32>
    %370 = arith.mulf %369, %311 : vector<2x32xf32>
    %371 = arith.addf %366, %370 : vector<2x32xf32>
    %372 = vector.broadcast %364 : vector<2x1xf32> to vector<2x32xf32>
    %373 = arith.mulf %371, %372 : vector<2x32xf32>
    %374 = arith.index_cast %c5_i32 : i32 to index
    %c0_126 = arith.constant 0 : index
    %c0_127 = arith.constant 0 : index
    %375 = vector.load %arg7[%374, %c0_126, %c0_127] : memref<8x2x32xf32, #tpu.memory_space<vmem>>, vector<1x2x32xf32>
    %376 = vector.shape_cast %375 : vector<1x2x32xf32> to vector<2x32xf32>
    %377 = vector.shape_cast %373 : vector<2x32xf32> to vector<1x2x32xf32>
    tpu.vector_store %arg7[%374, %c0_126, %c0_127], %377 {strides = array<i32>} : memref<8x2x32xf32, #tpu.memory_space<vmem>>, vector<1x2x32xf32>,
    %c6_i32 = arith.constant 6 : i32
    %378 = arith.truncf %371 : vector<2x32xf32> to vector<2x32xbf16>
    %cst_128 = arith.constant dense<0.000000e+00> : vector<2x32xf32>
    %379 = tpu.matmul %378, %5, %cst_128 {dimension_numbers = #tpu.dot_dimension_numbers<[1], [0], [0], [1], [0, 0, 1, 1], [], []>} : vector<2x32xbf16>, vector<32x32xbf16>, vector<2x32xf32> -> vector<2x32xf32>
    %380 = vector.broadcast %11 : vector<1x32xf32> to vector<2x32xf32>
    %381 = arith.addf %379, %380 : vector<2x32xf32>
    %cst_129 = arith.constant dense<0.000000e+00> : vector<2x32xf32>
    %382 = tpu.matmul %378, %7, %cst_129 {dimension_numbers = #tpu.dot_dimension_numbers<[1], [0], [0], [1], [0, 0, 1, 1], [], []>} : vector<2x32xbf16>, vector<32x32xbf16>, vector<2x32xf32> -> vector<2x32xf32>
    %383 = vector.broadcast %13 : vector<1x32xf32> to vector<2x32xf32>
    %384 = arith.addf %382, %383 : vector<2x32xf32>
    %cst_130 = arith.constant dense<0.000000e+00> : vector<2x32xf32>
    %385 = tpu.matmul %378, %9, %cst_130 {dimension_numbers = #tpu.dot_dimension_numbers<[1], [0], [0], [1], [0, 0, 1, 1], [], []>} : vector<2x32xbf16>, vector<32x32xbf16>, vector<2x32xf32> -> vector<2x32xf32>
    %386 = vector.broadcast %15 : vector<1x32xf32> to vector<2x32xf32>
    %387 = arith.addf %385, %386 : vector<2x32xf32>
    %c0_131 = arith.constant 0 : index
    %388 = arith.index_cast %c6_i32 : i32 to index
    %c0_132 = arith.constant 0 : index
    %c0_133 = arith.constant 0 : index
    %389 = vector.load %arg2[%c0_131, %388, %c0_132, %c0_133] : memref<3x8x2x32xbf16, #tpu.memory_space<vmem>>, vector<1x1x2x32xbf16>
    %390 = vector.shape_cast %389 : vector<1x1x2x32xbf16> to vector<2x32xbf16>
    %391 = arith.extf %390 : vector<2x32xbf16> to vector<2x32xf32>
    %c1_134 = arith.constant 1 : index
    %392 = arith.index_cast %c6_i32 : i32 to index
    %c0_135 = arith.constant 0 : index
    %c0_136 = arith.constant 0 : index
    %393 = vector.load %arg2[%c1_134, %392, %c0_135, %c0_136] : memref<3x8x2x32xbf16, #tpu.memory_space<vmem>>, vector<1x1x2x32xbf16>
    %394 = vector.shape_cast %393 : vector<1x1x2x32xbf16> to vector<2x32xbf16>
    %395 = arith.extf %394 : vector<2x32xbf16> to vector<2x32xf32>
    %c2_137 = arith.constant 2 : index
    %396 = arith.index_cast %c6_i32 : i32 to index
    %c0_138 = arith.constant 0 : index
    %c0_139 = arith.constant 0 : index
    %397 = vector.load %arg2[%c2_137, %396, %c0_138, %c0_139] : memref<3x8x2x32xbf16, #tpu.memory_space<vmem>>, vector<1x1x2x32xbf16>
    %398 = vector.shape_cast %397 : vector<1x1x2x32xbf16> to vector<2x32xbf16>
    %399 = arith.extf %398 : vector<2x32xbf16> to vector<2x32xf32>
    %400 = arith.addf %391, %381 : vector<2x32xf32>
    %401 = arith.negf %400 : vector<2x32xf32>
    %402 = math.exp %401 : vector<2x32xf32>
    %cst_140 = arith.constant 1.000000e+00 : f32
    %403 = vector.broadcast %cst_140 : f32 to vector<2x32xf32>
    %404 = arith.addf %403, %402 : vector<2x32xf32>
    %405 = arith.divf %403, %404 : vector<2x32xf32>
    %406 = arith.addf %395, %384 : vector<2x32xf32>
    %407 = arith.negf %406 : vector<2x32xf32>
    %408 = math.exp %407 : vector<2x32xf32>
    %cst_141 = arith.constant 1.000000e+00 : f32
    %409 = vector.broadcast %cst_141 : f32 to vector<2x32xf32>
    %410 = arith.addf %409, %408 : vector<2x32xf32>
    %411 = arith.divf %409, %410 : vector<2x32xf32>
    %412 = arith.mulf %405, %387 : vector<2x32xf32>
    %413 = arith.addf %399, %412 : vector<2x32xf32>
    %414 = math.tanh %413 : vector<2x32xf32>
    %cst_142 = arith.constant 1.000000e+00 : f32
    %415 = vector.broadcast %cst_142 : f32 to vector<2x32xf32>
    %416 = arith.subf %415, %411 : vector<2x32xf32>
    %417 = arith.mulf %416, %414 : vector<2x32xf32>
    %418 = arith.mulf %411, %371 : vector<2x32xf32>
    %419 = arith.addf %417, %418 : vector<2x32xf32>
    %420 = arith.addi %16, %c6_i32 : i32
    %421 = vector.broadcast %420 : i32 to vector<2x1xi32>
    %422 = arith.cmpi sgt, %3, %421 : vector<2x1xi32>
    %423 = arith.extui %422 : vector<2x1xi1> to vector<2x1xi32>
    %424 = arith.sitofp %423 : vector<2x1xi32> to vector<2x1xf32>
    %425 = vector.broadcast %424 : vector<2x1xf32> to vector<2x32xf32>
    %426 = arith.mulf %425, %419 : vector<2x32xf32>
    %cst_143 = arith.constant 1.000000e+00 : f32
    %427 = vector.broadcast %cst_143 : f32 to vector<2x1xf32>
    %428 = arith.subf %427, %424 : vector<2x1xf32>
    %429 = vector.broadcast %428 : vector<2x1xf32> to vector<2x32xf32>
    %430 = arith.mulf %429, %371 : vector<2x32xf32>
    %431 = arith.addf %426, %430 : vector<2x32xf32>
    %432 = vector.broadcast %424 : vector<2x1xf32> to vector<2x32xf32>
    %433 = arith.mulf %431, %432 : vector<2x32xf32>
    %434 = arith.index_cast %c6_i32 : i32 to index
    %c0_144 = arith.constant 0 : index
    %c0_145 = arith.constant 0 : index
    %435 = vector.load %arg7[%434, %c0_144, %c0_145] : memref<8x2x32xf32, #tpu.memory_space<vmem>>, vector<1x2x32xf32>
    %436 = vector.shape_cast %435 : vector<1x2x32xf32> to vector<2x32xf32>
    %437 = vector.shape_cast %433 : vector<2x32xf32> to vector<1x2x32xf32>
    tpu.vector_store %arg7[%434, %c0_144, %c0_145], %437 {strides = array<i32>} : memref<8x2x32xf32, #tpu.memory_space<vmem>>, vector<1x2x32xf32>,
    %c7_i32 = arith.constant 7 : i32
    %438 = arith.truncf %431 : vector<2x32xf32> to vector<2x32xbf16>
    %cst_146 = arith.constant dense<0.000000e+00> : vector<2x32xf32>
    %439 = tpu.matmul %438, %5, %cst_146 {dimension_numbers = #tpu.dot_dimension_numbers<[1], [0], [0], [1], [0, 0, 1, 1], [], []>} : vector<2x32xbf16>, vector<32x32xbf16>, vector<2x32xf32> -> vector<2x32xf32>
    %440 = vector.broadcast %11 : vector<1x32xf32> to vector<2x32xf32>
    %441 = arith.addf %439, %440 : vector<2x32xf32>
    %cst_147 = arith.constant dense<0.000000e+00> : vector<2x32xf32>
    %442 = tpu.matmul %438, %7, %cst_147 {dimension_numbers = #tpu.dot_dimension_numbers<[1], [0], [0], [1], [0, 0, 1, 1], [], []>} : vector<2x32xbf16>, vector<32x32xbf16>, vector<2x32xf32> -> vector<2x32xf32>
    %443 = vector.broadcast %13 : vector<1x32xf32> to vector<2x32xf32>
    %444 = arith.addf %442, %443 : vector<2x32xf32>
    %cst_148 = arith.constant dense<0.000000e+00> : vector<2x32xf32>
    %445 = tpu.matmul %438, %9, %cst_148 {dimension_numbers = #tpu.dot_dimension_numbers<[1], [0], [0], [1], [0, 0, 1, 1], [], []>} : vector<2x32xbf16>, vector<32x32xbf16>, vector<2x32xf32> -> vector<2x32xf32>
    %446 = vector.broadcast %15 : vector<1x32xf32> to vector<2x32xf32>
    %447 = arith.addf %445, %446 : vector<2x32xf32>
    %c0_149 = arith.constant 0 : index
    %448 = arith.index_cast %c7_i32 : i32 to index
    %c0_150 = arith.constant 0 : index
    %c0_151 = arith.constant 0 : index
    %449 = vector.load %arg2[%c0_149, %448, %c0_150, %c0_151] : memref<3x8x2x32xbf16, #tpu.memory_space<vmem>>, vector<1x1x2x32xbf16>
    %450 = vector.shape_cast %449 : vector<1x1x2x32xbf16> to vector<2x32xbf16>
    %451 = arith.extf %450 : vector<2x32xbf16> to vector<2x32xf32>
    %c1_152 = arith.constant 1 : index
    %452 = arith.index_cast %c7_i32 : i32 to index
    %c0_153 = arith.constant 0 : index
    %c0_154 = arith.constant 0 : index
    %453 = vector.load %arg2[%c1_152, %452, %c0_153, %c0_154] : memref<3x8x2x32xbf16, #tpu.memory_space<vmem>>, vector<1x1x2x32xbf16>
    %454 = vector.shape_cast %453 : vector<1x1x2x32xbf16> to vector<2x32xbf16>
    %455 = arith.extf %454 : vector<2x32xbf16> to vector<2x32xf32>
    %c2_155 = arith.constant 2 : index
    %456 = arith.index_cast %c7_i32 : i32 to index
    %c0_156 = arith.constant 0 : index
    %c0_157 = arith.constant 0 : index
    %457 = vector.load %arg2[%c2_155, %456, %c0_156, %c0_157] : memref<3x8x2x32xbf16, #tpu.memory_space<vmem>>, vector<1x1x2x32xbf16>
    %458 = vector.shape_cast %457 : vector<1x1x2x32xbf16> to vector<2x32xbf16>
    %459 = arith.extf %458 : vector<2x32xbf16> to vector<2x32xf32>
    %460 = arith.addf %451, %441 : vector<2x32xf32>
    %461 = arith.negf %460 : vector<2x32xf32>
    %462 = math.exp %461 : vector<2x32xf32>
    %cst_158 = arith.constant 1.000000e+00 : f32
    %463 = vector.broadcast %cst_158 : f32 to vector<2x32xf32>
    %464 = arith.addf %463, %462 : vector<2x32xf32>
    %465 = arith.divf %463, %464 : vector<2x32xf32>
    %466 = arith.addf %455, %444 : vector<2x32xf32>
    %467 = arith.negf %466 : vector<2x32xf32>
    %468 = math.exp %467 : vector<2x32xf32>
    %cst_159 = arith.constant 1.000000e+00 : f32
    %469 = vector.broadcast %cst_159 : f32 to vector<2x32xf32>
    %470 = arith.addf %469, %468 : vector<2x32xf32>
    %471 = arith.divf %469, %470 : vector<2x32xf32>
    %472 = arith.mulf %465, %447 : vector<2x32xf32>
    %473 = arith.addf %459, %472 : vector<2x32xf32>
    %474 = math.tanh %473 : vector<2x32xf32>
    %cst_160 = arith.constant 1.000000e+00 : f32
    %475 = vector.broadcast %cst_160 : f32 to vector<2x32xf32>
    %476 = arith.subf %475, %471 : vector<2x32xf32>
    %477 = arith.mulf %476, %474 : vector<2x32xf32>
    %478 = arith.mulf %471, %431 : vector<2x32xf32>
    %479 = arith.addf %477, %478 : vector<2x32xf32>
    %480 = arith.addi %16, %c7_i32 : i32
    %481 = vector.broadcast %480 : i32 to vector<2x1xi32>
    %482 = arith.cmpi sgt, %3, %481 : vector<2x1xi32>
    %483 = arith.extui %482 : vector<2x1xi1> to vector<2x1xi32>
    %484 = arith.sitofp %483 : vector<2x1xi32> to vector<2x1xf32>
    %485 = vector.broadcast %484 : vector<2x1xf32> to vector<2x32xf32>
    %486 = arith.mulf %485, %479 : vector<2x32xf32>
    %cst_161 = arith.constant 1.000000e+00 : f32
    %487 = vector.broadcast %cst_161 : f32 to vector<2x1xf32>
    %488 = arith.subf %487, %484 : vector<2x1xf32>
    %489 = vector.broadcast %488 : vector<2x1xf32> to vector<2x32xf32>
    %490 = arith.mulf %489, %431 : vector<2x32xf32>
    %491 = arith.addf %486, %490 : vector<2x32xf32>
    %492 = vector.broadcast %484 : vector<2x1xf32> to vector<2x32xf32>
    %493 = arith.mulf %491, %492 : vector<2x32xf32>
    %494 = arith.index_cast %c7_i32 : i32 to index
    %c0_162 = arith.constant 0 : index
    %c0_163 = arith.constant 0 : index
    %495 = vector.load %arg7[%494, %c0_162, %c0_163] : memref<8x2x32xf32, #tpu.memory_space<vmem>>, vector<1x2x32xf32>
    %496 = vector.shape_cast %495 : vector<1x2x32xf32> to vector<2x32xf32>
    %497 = vector.shape_cast %493 : vector<2x32xf32> to vector<1x2x32xf32>
    tpu.vector_store %arg7[%494, %c0_162, %c0_163], %497 {strides = array<i32>} : memref<8x2x32xf32, #tpu.memory_space<vmem>>, vector<1x2x32xf32>,
    %c8_i32_164 = arith.constant 8 : i32
    %c0_165 = arith.constant 0 : index
    %c0_166 = arith.constant 0 : index
    %498 = vector.load %arg8[%c0_165, %c0_166] : memref<2x32xf32, #tpu.memory_space<vmem>>, vector<2x32xf32>
    tpu.vector_store %arg8[%c0_165, %c0_166], %491 {strides = array<i32>} : memref<2x32xf32, #tpu.memory_space<vmem>>, vector<2x32xf32>,
    return
  }
  func.func @transform_0(%arg0: i32, %arg1: i32) -> (i32, i32, i32, i32) {
    %c0_i32 = arith.constant 0 : i32
    %c0_i32_0 = arith.constant 0 : i32
    %c0_i32_1 = arith.constant 0 : i32
    return %c0_i32, %arg1, %arg0, %c0_i32_0 : i32, i32, i32, i32
  }
  func.func @transform_1(%arg0: i32, %arg1: i32) -> (i32, i32) {
    %c0_i32 = arith.constant 0 : i32
    %c0_i32_0 = arith.constant 0 : i32
    return %arg0, %c0_i32 : i32, i32
  }
  func.func @transform_2(%arg0: i32, %arg1: i32) -> (i32, i32) {
    %c0_i32 = arith.constant 0 : i32
    %c0_i32_0 = arith.constant 0 : i32
    return %arg0, %c0_i32 : i32, i32
  }
  func.func @transform_3(%arg0: i32, %arg1: i32) -> (i32, i32, i32) {
    %c0_i32 = arith.constant 0 : i32
    %c0_i32_0 = arith.constant 0 : i32
    %c0_i32_1 = arith.constant 0 : i32
    %c0_i32_2 = arith.constant 0 : i32
    return %c0_i32, %c0_i32_0, %c0_i32_1 : i32, i32, i32
  }
  func.func @transform_4(%arg0: i32, %arg1: i32) -> (i32, i32, i32) {
    %c0_i32 = arith.constant 0 : i32
    %c0_i32_0 = arith.constant 0 : i32
    %c0_i32_1 = arith.constant 0 : i32
    %c0_i32_2 = arith.constant 0 : i32
    return %c0_i32, %c0_i32_0, %c0_i32_1 : i32, i32, i32
  }
  func.func @transform_5(%arg0: i32, %arg1: i32) -> (i32, i32, i32) {
    %c0_i32 = arith.constant 0 : i32
    %c0_i32_0 = arith.constant 0 : i32
    return %arg1, %arg0, %c0_i32 : i32, i32, i32
  }
}

module attributes {stable_mosaic.version = 11 : i64} {
  func.func @_attn_kernel(%arg0: i32, %arg1: memref<8x2x32xf32, #tpu.memory_space<vmem>>, %arg2: memref<8x2x1xf32, #tpu.memory_space<vmem>>, %arg3: memref<32x16xbf16, #tpu.memory_space<vmem>>, %arg4: memref<16x2xf32, #tpu.memory_space<vmem>>, %arg5: memref<2x32xf32, #tpu.memory_space<vmem>>, %arg6: memref<8x2x2xf32, #tpu.memory_space<vmem>>) attributes {dimension_semantics = [#tpu.dimension_semantics<parallel>], iteration_bounds = array<i64: 1>, scalar_prefetch = 0 : i64, scratch_operands = 0 : i64, tpu.core_type = #tpu.core_type<tc>, window_params = [{transform_indices = @transform_0, window_bounds = array<i64: 8, 2, 32>}, {transform_indices = @transform_1, window_bounds = array<i64: 8, 2, 1>}, {pipeline_mode = #tpu.pipeline_mode<synchronous>, transform_indices = @transform_2, window_bounds = array<i64: 32, 16>}, {pipeline_mode = #tpu.pipeline_mode<synchronous>, transform_indices = @transform_3, window_bounds = array<i64: 16, 2>}, {transform_indices = @transform_4, window_bounds = array<i64: 2, 32>}, {transform_indices = @transform_5, window_bounds = array<i64: 8, 2, 2>}]} {
    %c0 = arith.constant 0 : index
    %c0_0 = arith.constant 0 : index
    %c0_1 = arith.constant 0 : index
    %0 = vector.load %arg1[%c0, %c0_0, %c0_1] : memref<8x2x32xf32, #tpu.memory_space<vmem>>, vector<8x2x32xf32>
    %1 = arith.truncf %0 : vector<8x2x32xf32> to vector<8x2x32xbf16>
    %2 = vector.shape_cast %1 : vector<8x2x32xbf16> to vector<16x32xbf16>
    %c0_2 = arith.constant 0 : index
    %c0_3 = arith.constant 0 : index
    %3 = vector.load %arg3[%c0_2, %c0_3] : memref<32x16xbf16, #tpu.memory_space<vmem>>, vector<32x16xbf16>
    %cst = arith.constant dense<0.000000e+00> : vector<16x16xf32>
    %4 = tpu.matmul %2, %3, %cst {dimension_numbers = #tpu.dot_dimension_numbers<[1], [0], [0], [1], [0, 0, 1, 1], [], []>} : vector<16x32xbf16>, vector<32x16xbf16>, vector<16x16xf32> -> vector<16x16xf32>
    %5 = math.tanh %4 : vector<16x16xf32>
    %c0_4 = arith.constant 0 : index
    %c0_5 = arith.constant 0 : index
    %6 = vector.load %arg4[%c0_4, %c0_5] : memref<16x2xf32, #tpu.memory_space<vmem>>, vector<16x2xf32>
    %cst_6 = arith.constant dense<0.000000e+00> : vector<16x2xf32>
    %7 = tpu.matmul %5, %6, %cst_6 {dimension_numbers = #tpu.dot_dimension_numbers<[1], [0], [0], [1], [0, 0, 1, 1], [], []>} : vector<16x16xf32>, vector<16x2xf32>, vector<16x2xf32> -> vector<16x2xf32>
    %8 = vector.shape_cast %7 : vector<16x2xf32> to vector<8x2x2xf32>
    %cst_7 = arith.constant 0.000000e+00 : f32
    %9 = vector.broadcast %cst_7 : f32 to vector<8x2x2xf32>
    %10 = arith.subf %9, %8 : vector<8x2x2xf32>
    %c0_8 = arith.constant 0 : index
    %c0_9 = arith.constant 0 : index
    %c0_10 = arith.constant 0 : index
    %11 = vector.load %arg2[%c0_8, %c0_9, %c0_10] : memref<8x2x1xf32, #tpu.memory_space<vmem>>, vector<8x2x1xf32>
    %cst_11 = arith.constant 0.000000e+00 : f32
    %12 = vector.broadcast %cst_11 : f32 to vector<8x2x1xf32>
    %13 = arith.cmpf ogt, %11, %12 : vector<8x2x1xf32>
    %cst_12 = arith.constant -1.000000e+30 : f32
    %14 = vector.broadcast %cst_12 : f32 to vector<8x2x2xf32>
    %15 = vector.shape_cast %13 : vector<8x2x1xi1> to vector<8x2x1xi1>
    %16 = vector.broadcast %15 : vector<8x2x1xi1> to vector<8x2x2xi1>
    %17 = arith.select %16, %10, %14 : vector<8x2x2xi1>, vector<8x2x2xf32>
    %cst_13 = arith.constant dense<0xFF800000> : vector<2x2xf32>
    %18 = vector.multi_reduction <maximumf>, %17, %cst_13 [0] : vector<8x2x2xf32> to vector<2x2xf32>
    %19 = vector.shape_cast %18 : vector<2x2xf32> to vector<1x2x2xf32>
    %20 = vector.broadcast %19 : vector<1x2x2xf32> to vector<8x2x2xf32>
    %21 = arith.subf %17, %20 : vector<8x2x2xf32>
    %22 = math.exp %21 : vector<8x2x2xf32>
    %cst_14 = arith.constant dense<0.000000e+00> : vector<2x2xf32>
    %23 = vector.multi_reduction <add>, %22, %cst_14 [0] : vector<8x2x2xf32> to vector<2x2xf32>
    %24 = vector.shape_cast %23 : vector<2x2xf32> to vector<1x2x2xf32>
    %25 = vector.broadcast %24 : vector<1x2x2xf32> to vector<8x2x2xf32>
    %26 = arith.divf %22, %25 : vector<8x2x2xf32>
    %c0_15 = arith.constant 0 : index
    %c0_16 = arith.constant 0 : index
    %c0_17 = arith.constant 0 : index
    %27 = vector.load %arg6[%c0_15, %c0_16, %c0_17] : memref<8x2x2xf32, #tpu.memory_space<vmem>>, vector<8x2x2xf32>
    tpu.vector_store %arg6[%c0_15, %c0_16, %c0_17], %26 {strides = array<i32>} : memref<8x2x2xf32, #tpu.memory_space<vmem>>, vector<8x2x2xf32>,
    %cst_18 = arith.constant dense<0.000000e+00> : vector<8x2xf32>
    %28 = vector.multi_reduction <add>, %26, %cst_18 [2] : vector<8x2x2xf32> to vector<8x2xf32>
    %29 = vector.shape_cast %28 : vector<8x2xf32> to vector<8x2x1xf32>
    %30 = vector.broadcast %29 : vector<8x2x1xf32> to vector<8x2x32xf32>
    %31 = arith.mulf %30, %0 : vector<8x2x32xf32>
    %cst_19 = arith.constant dense<0.000000e+00> : vector<2x32xf32>
    %32 = vector.multi_reduction <add>, %31, %cst_19 [0] : vector<8x2x32xf32> to vector<2x32xf32>
    %cst_20 = arith.constant 5.000000e-01 : f32
    %33 = vector.broadcast %cst_20 : f32 to vector<2x32xf32>
    %34 = arith.mulf %32, %33 : vector<2x32xf32>
    %c0_21 = arith.constant 0 : index
    %c0_22 = arith.constant 0 : index
    %35 = vector.load %arg5[%c0_21, %c0_22] : memref<2x32xf32, #tpu.memory_space<vmem>>, vector<2x32xf32>
    tpu.vector_store %arg5[%c0_21, %c0_22], %34 {strides = array<i32>} : memref<2x32xf32, #tpu.memory_space<vmem>>, vector<2x32xf32>,
    return
  }
  func.func @transform_0(%arg0: i32) -> (i32, i32, i32) {
    %c0_i32 = arith.constant 0 : i32
    %c0_i32_0 = arith.constant 0 : i32
    %c0_i32_1 = arith.constant 0 : i32
    return %c0_i32, %arg0, %c0_i32_0 : i32, i32, i32
  }
  func.func @transform_1(%arg0: i32) -> (i32, i32, i32) {
    %c0_i32 = arith.constant 0 : i32
    %c0_i32_0 = arith.constant 0 : i32
    %c0_i32_1 = arith.constant 0 : i32
    return %c0_i32, %arg0, %c0_i32_0 : i32, i32, i32
  }
  func.func @transform_2(%arg0: i32) -> (i32, i32) {
    %c0_i32 = arith.constant 0 : i32
    %c0_i32_0 = arith.constant 0 : i32
    %c0_i32_1 = arith.constant 0 : i32
    return %c0_i32, %c0_i32_0 : i32, i32
  }
  func.func @transform_3(%arg0: i32) -> (i32, i32) {
    %c0_i32 = arith.constant 0 : i32
    %c0_i32_0 = arith.constant 0 : i32
    %c0_i32_1 = arith.constant 0 : i32
    return %c0_i32, %c0_i32_0 : i32, i32
  }
  func.func @transform_4(%arg0: i32) -> (i32, i32) {
    %c0_i32 = arith.constant 0 : i32
    %c0_i32_0 = arith.constant 0 : i32
    return %arg0, %c0_i32 : i32, i32
  }
  func.func @transform_5(%arg0: i32) -> (i32, i32, i32) {
    %c0_i32 = arith.constant 0 : i32
    %c0_i32_0 = arith.constant 0 : i32
    %c0_i32_1 = arith.constant 0 : i32
    return %c0_i32, %arg0, %c0_i32_0 : i32, i32, i32
  }
}

module attributes {stable_mosaic.version = 11 : i64} {
  func.func @_lse_kernel(%arg0: i32, %arg1: i32, %arg2: memref<16x32xbf16, #tpu.memory_space<vmem>>, %arg3: memref<32x32xbf16, #tpu.memory_space<vmem>>, %arg4: memref<1x32xf32, #tpu.memory_space<vmem>>, %arg5: memref<16x1xf32, #tpu.memory_space<vmem>>, %arg6: memref<16x1xf32, #tpu.memory_space<vmem>>, %arg7: memref<16x1xf32, #tpu.memory_space<vmem>>) attributes {dimension_semantics = [#tpu.dimension_semantics<parallel>, #tpu.dimension_semantics<arbitrary>], iteration_bounds = array<i64: 1, 1>, scalar_prefetch = 0 : i64, scratch_operands = 2 : i64, tpu.core_type = #tpu.core_type<tc>, window_params = [{transform_indices = @transform_0, window_bounds = array<i64: 16, 32>}, {transform_indices = @transform_1, window_bounds = array<i64: 32, 32>}, {transform_indices = @transform_2, window_bounds = array<i64: 1, 32>}, {transform_indices = @transform_3, window_bounds = array<i64: 16, 1>}]} {
    %c0_i32 = arith.constant 0 : i32
    %0 = arith.cmpi eq, %arg1, %c0_i32 : i32
    %1 = arith.extui %0 : i1 to i32
    %c0_i32_0 = arith.constant 0 : i32
    %2 = arith.cmpi ne, %1, %c0_i32_0 : i32
    scf.if %2 {
      %cst_18 = arith.constant 0xFF800000 : f32
      %28 = vector.broadcast %cst_18 : f32 to vector<16x1xf32>
      %c0_19 = arith.constant 0 : index
      %c0_20 = arith.constant 0 : index
      %29 = vector.load %arg6[%c0_19, %c0_20] : memref<16x1xf32, #tpu.memory_space<vmem>>, vector<16x1xf32>
      tpu.vector_store %arg6[%c0_19, %c0_20], %28 {strides = array<i32>} : memref<16x1xf32, #tpu.memory_space<vmem>>, vector<16x1xf32>,
      %cst_21 = arith.constant 0.000000e+00 : f32
      %30 = vector.broadcast %cst_21 : f32 to vector<16x1xf32>
      %c0_22 = arith.constant 0 : index
      %c0_23 = arith.constant 0 : index
      %31 = vector.load %arg7[%c0_22, %c0_23] : memref<16x1xf32, #tpu.memory_space<vmem>>, vector<16x1xf32>
      tpu.vector_store %arg7[%c0_22, %c0_23], %30 {strides = array<i32>} : memref<16x1xf32, #tpu.memory_space<vmem>>, vector<16x1xf32>,
    } else {
    }
    %c0 = arith.constant 0 : index
    %c0_1 = arith.constant 0 : index
    %3 = vector.load %arg2[%c0, %c0_1] : memref<16x32xbf16, #tpu.memory_space<vmem>>, vector<16x32xbf16>
    %c0_2 = arith.constant 0 : index
    %c0_3 = arith.constant 0 : index
    %4 = vector.load %arg3[%c0_2, %c0_3] : memref<32x32xbf16, #tpu.memory_space<vmem>>, vector<32x32xbf16>
    %cst = arith.constant dense<0.000000e+00> : vector<16x32xf32>
    %5 = tpu.matmul %3, %4, %cst {dimension_numbers = #tpu.dot_dimension_numbers<[1], [0], [0], [1], [0, 0, 1, 1], [], []>} : vector<16x32xbf16>, vector<32x32xbf16>, vector<16x32xf32> -> vector<16x32xf32>
    %c0_4 = arith.constant 0 : index
    %c0_5 = arith.constant 0 : index
    %6 = vector.load %arg4[%c0_4, %c0_5] : memref<1x32xf32, #tpu.memory_space<vmem>>, vector<1x32xf32>
    %7 = vector.broadcast %6 : vector<1x32xf32> to vector<16x32xf32>
    %8 = arith.addf %5, %7 : vector<16x32xf32>
    %c0_6 = arith.constant 0 : index
    %c0_7 = arith.constant 0 : index
    %9 = vector.load %arg6[%c0_6, %c0_7] : memref<16x1xf32, #tpu.memory_space<vmem>>, vector<16x1xf32>
    %cst_8 = arith.constant dense<0xFF800000> : vector<16xf32>
    %10 = vector.multi_reduction <maximumf>, %8, %cst_8 [1] : vector<16x32xf32> to vector<16xf32>
    %11 = vector.shape_cast %10 : vector<16xf32> to vector<16x1xf32>
    %12 = arith.maximumf %9, %11 : vector<16x1xf32>
    %c0_9 = arith.constant 0 : index
    %c0_10 = arith.constant 0 : index
    %13 = vector.load %arg7[%c0_9, %c0_10] : memref<16x1xf32, #tpu.memory_space<vmem>>, vector<16x1xf32>
    %14 = arith.subf %9, %12 : vector<16x1xf32>
    %15 = math.exp %14 : vector<16x1xf32>
    %16 = arith.mulf %13, %15 : vector<16x1xf32>
    %17 = vector.broadcast %12 : vector<16x1xf32> to vector<16x32xf32>
    %18 = arith.subf %8, %17 : vector<16x32xf32>
    %19 = math.exp %18 : vector<16x32xf32>
    %cst_11 = arith.constant dense<0.000000e+00> : vector<16xf32>
    %20 = vector.multi_reduction <add>, %19, %cst_11 [1] : vector<16x32xf32> to vector<16xf32>
    %21 = vector.shape_cast %20 : vector<16xf32> to vector<16x1xf32>
    %22 = arith.addf %16, %21 : vector<16x1xf32>
    %c0_12 = arith.constant 0 : index
    %c0_13 = arith.constant 0 : index
    %23 = vector.load %arg7[%c0_12, %c0_13] : memref<16x1xf32, #tpu.memory_space<vmem>>, vector<16x1xf32>
    tpu.vector_store %arg7[%c0_12, %c0_13], %22 {strides = array<i32>} : memref<16x1xf32, #tpu.memory_space<vmem>>, vector<16x1xf32>,
    %c0_14 = arith.constant 0 : index
    %c0_15 = arith.constant 0 : index
    %24 = vector.load %arg6[%c0_14, %c0_15] : memref<16x1xf32, #tpu.memory_space<vmem>>, vector<16x1xf32>
    tpu.vector_store %arg6[%c0_14, %c0_15], %12 {strides = array<i32>} : memref<16x1xf32, #tpu.memory_space<vmem>>, vector<16x1xf32>,
    %c0_i32_16 = arith.constant 0 : i32
    %25 = arith.cmpi eq, %arg1, %c0_i32_16 : i32
    %26 = arith.extui %25 : i1 to i32
    %c0_i32_17 = arith.constant 0 : i32
    %27 = arith.cmpi ne, %26, %c0_i32_17 : i32
    scf.if %27 {
      %c0_18 = arith.constant 0 : index
      %c0_19 = arith.constant 0 : index
      %28 = vector.load %arg6[%c0_18, %c0_19] : memref<16x1xf32, #tpu.memory_space<vmem>>, vector<16x1xf32>
      %c0_20 = arith.constant 0 : index
      %c0_21 = arith.constant 0 : index
      %29 = vector.load %arg7[%c0_20, %c0_21] : memref<16x1xf32, #tpu.memory_space<vmem>>, vector<16x1xf32>
      %30 = math.log %29 : vector<16x1xf32>
      %31 = arith.addf %28, %30 : vector<16x1xf32>
      %c0_22 = arith.constant 0 : index
      %c0_23 = arith.constant 0 : index
      %32 = vector.load %arg5[%c0_22, %c0_23] : memref<16x1xf32, #tpu.memory_space<vmem>>, vector<16x1xf32>
      tpu.vector_store %arg5[%c0_22, %c0_23], %31 {strides = array<i32>} : memref<16x1xf32, #tpu.memory_space<vmem>>, vector<16x1xf32>,
    } else {
    }
    return
  }
  func.func @transform_0(%arg0: i32, %arg1: i32) -> (i32, i32) {
    %c0_i32 = arith.constant 0 : i32
    %c0_i32_0 = arith.constant 0 : i32
    return %arg0, %c0_i32 : i32, i32
  }
  func.func @transform_1(%arg0: i32, %arg1: i32) -> (i32, i32) {
    %c0_i32 = arith.constant 0 : i32
    %c0_i32_0 = arith.constant 0 : i32
    return %c0_i32, %arg1 : i32, i32
  }
  func.func @transform_2(%arg0: i32, %arg1: i32) -> (i32, i32) {
    %c0_i32 = arith.constant 0 : i32
    %c0_i32_0 = arith.constant 0 : i32
    return %c0_i32, %arg1 : i32, i32
  }
  func.func @transform_3(%arg0: i32, %arg1: i32) -> (i32, i32) {
    %c0_i32 = arith.constant 0 : i32
    %c0_i32_0 = arith.constant 0 : i32
    return %arg0, %c0_i32 : i32, i32
  }
}

module attributes {stable_mosaic.version = 11 : i64} {
  func.func @_proj_norm_kernel(%arg0: i32, %arg1: i32, %arg2: memref<16x32xbf16, #tpu.memory_space<vmem>>, %arg3: memref<32x32xbf16, #tpu.memory_space<vmem>>, %arg4: memref<1x32xf32, #tpu.memory_space<vmem>>, %arg5: memref<16x1xf32, #tpu.memory_space<vmem>>, %arg6: memref<16x32xf32, #tpu.memory_space<vmem>>) attributes {dimension_semantics = [#tpu.dimension_semantics<parallel>, #tpu.dimension_semantics<parallel>], iteration_bounds = array<i64: 1, 1>, scalar_prefetch = 0 : i64, scratch_operands = 0 : i64, tpu.core_type = #tpu.core_type<tc>, window_params = [{transform_indices = @transform_0, window_bounds = array<i64: 16, 32>}, {transform_indices = @transform_1, window_bounds = array<i64: 32, 32>}, {transform_indices = @transform_2, window_bounds = array<i64: 1, 32>}, {transform_indices = @transform_3, window_bounds = array<i64: 16, 1>}, {transform_indices = @transform_4, window_bounds = array<i64: 16, 32>}]} {
    %c0 = arith.constant 0 : index
    %c0_0 = arith.constant 0 : index
    %0 = vector.load %arg2[%c0, %c0_0] : memref<16x32xbf16, #tpu.memory_space<vmem>>, vector<16x32xbf16>
    %c0_1 = arith.constant 0 : index
    %c0_2 = arith.constant 0 : index
    %1 = vector.load %arg3[%c0_1, %c0_2] : memref<32x32xbf16, #tpu.memory_space<vmem>>, vector<32x32xbf16>
    %cst = arith.constant dense<0.000000e+00> : vector<16x32xf32>
    %2 = tpu.matmul %0, %1, %cst {dimension_numbers = #tpu.dot_dimension_numbers<[1], [0], [0], [1], [0, 0, 1, 1], [], []>} : vector<16x32xbf16>, vector<32x32xbf16>, vector<16x32xf32> -> vector<16x32xf32>
    %c0_3 = arith.constant 0 : index
    %c0_4 = arith.constant 0 : index
    %3 = vector.load %arg4[%c0_3, %c0_4] : memref<1x32xf32, #tpu.memory_space<vmem>>, vector<1x32xf32>
    %4 = vector.broadcast %3 : vector<1x32xf32> to vector<16x32xf32>
    %5 = arith.addf %2, %4 : vector<16x32xf32>
    %c0_5 = arith.constant 0 : index
    %c0_6 = arith.constant 0 : index
    %6 = vector.load %arg5[%c0_5, %c0_6] : memref<16x1xf32, #tpu.memory_space<vmem>>, vector<16x1xf32>
    %7 = vector.broadcast %6 : vector<16x1xf32> to vector<16x32xf32>
    %8 = arith.subf %5, %7 : vector<16x32xf32>
    %c0_7 = arith.constant 0 : index
    %c0_8 = arith.constant 0 : index
    %9 = vector.load %arg6[%c0_7, %c0_8] : memref<16x32xf32, #tpu.memory_space<vmem>>, vector<16x32xf32>
    tpu.vector_store %arg6[%c0_7, %c0_8], %8 {strides = array<i32>} : memref<16x32xf32, #tpu.memory_space<vmem>>, vector<16x32xf32>,
    return
  }
  func.func @transform_0(%arg0: i32, %arg1: i32) -> (i32, i32) {
    %c0_i32 = arith.constant 0 : i32
    %c0_i32_0 = arith.constant 0 : i32
    return %arg0, %c0_i32 : i32, i32
  }
  func.func @transform_1(%arg0: i32, %arg1: i32) -> (i32, i32) {
    %c0_i32 = arith.constant 0 : i32
    %c0_i32_0 = arith.constant 0 : i32
    return %c0_i32, %arg1 : i32, i32
  }
  func.func @transform_2(%arg0: i32, %arg1: i32) -> (i32, i32) {
    %c0_i32 = arith.constant 0 : i32
    %c0_i32_0 = arith.constant 0 : i32
    return %c0_i32, %arg1 : i32, i32
  }
  func.func @transform_3(%arg0: i32, %arg1: i32) -> (i32, i32) {
    %c0_i32 = arith.constant 0 : i32
    %c0_i32_0 = arith.constant 0 : i32
    return %arg0, %c0_i32 : i32, i32
  }
  func.func @transform_4(%arg0: i32, %arg1: i32) -> (i32, i32) {
    %c0_i32 = arith.constant 0 : i32
    return %arg0, %arg1 : i32, i32
  }
}

</mosaic_0001>

<llo_original>
// kernel: transfer_net_forward.7
$region0: #{transfer_net_forward.7}
  #allocation0 [shape = 'u32[]', space=smem, size = 0x4, offset = 0x4, fixed_abs, tag = 'smem constant byte address 0x4 - core index']
  #allocation1 [shape = 'u32[72,128]{1,0:T(1,128)}', space=vmem, size = 0x9000, scoped, tag = 'internal scratch']
  %s0 = inlined_call_operand.vmem [shape: bf16[16,16], index: 0, kind: input, shape index: {}]
  %s1 = inlined_call_operand.vmem [shape: bf16[16,96], index: 1, kind: input, shape index: {}]
  %s2 = inlined_call_operand.vmem [shape: f32[1,96], index: 2, kind: input, shape index: {}]
  %s3 = inlined_call_operand.vmem [shape: bf16[3,16,32], index: 3, kind: output, shape index: {}]
  %s4 = sld [smem:[#allocation0]]
  $region22: #{transfer_net_forward.7} parent=0
    _
  %s6 = ssub.s32 1, %s4
  %s7 = scalar_select 0, %s6, %s4
  // Predicated region
  $region2: #{transfer_net_forward.7} parent=0 // pred_check
    _
  $region3: #{transfer_net_forward.7} parent=0 // pred_check_branch
    %9 = sbr.rel (0) target = $region5
  $region4: #{transfer_net_forward.7} parent=0 // pred_region
    _
  $region5: #{transfer_net_forward.7} parent=0 // pred_fallthru
    _
  // Predicated region
  $region6: #{transfer_net_forward.7} parent=0 // pred_check
    _
  $region7: #{transfer_net_forward.7} parent=0 // pred_check_branch
    %11 = sbr.rel (0) target = $region9
  $region8: #{transfer_net_forward.7} parent=0 // pred_region
    _
  $region9: #{transfer_net_forward.7} parent=0 // pred_fallthru
    _
  // Predicated region
  $region10: #{transfer_net_forward.7} parent=0 // pred_check
    _
  $region11: #{transfer_net_forward.7} parent=0 // pred_check_branch
    %13 = sbr.rel (0) target = $region13
  $region12: #{transfer_net_forward.7} parent=0 // pred_region
    _
  $region13: #{transfer_net_forward.7} parent=0 // pred_fallthru
    _
  %v15 = vld [vmem:[%s0] sm:$0xf]
  %v16 = vld [vmem:[%s0 + $0x4] sm:$0xf]
  %v17 = vld [vmem:[%s1] sm:$0xf]
  %v18 = vld [vmem:[%s1 + $0x4] sm:$0xf]
  %v19 = vld [vmem:[%s2] sm:$0x1]
  %v21 = vperm.slane %v19, 0
  %v25 = vunpack.c.l.b16 %v15
  %v26 = vunpack.c.l.b16 %v16
  %v27 = vpack.c.b16 %v26, %v25
  %v30 = vunpack.c.l.b16 %v17
  %v31 = vunpack.c.l.b16 %v18
  %v32 = vpack.c.b16 %v31, %v30
  %vm34 = vcmask 130048
  %v36 = vsel %vm34, %v27, 0
  %38 = vmatpush.bf16.msra.mxu0 0
  %39 = vmatpush.bf16.msra.mxu0 0
  %40 = vmatpush.bf16.msra.mxu0 0
  %41 = vmatpush.bf16.msra.mxu0 0
  %42 = vmatpush.bf16.msra.mxu0 0
  %43 = vmatpush.bf16.msra.mxu0 0
  %44 = vmatpush.bf16.msra.mxu0 0
  %45 = vmatpush.bf16.msra.mxu0 %v32
  %46 = vmatmul.bf16.gmra.mxu0 %v36
  %v47 = vpop.f32.mrf.mxu0
  %v48 = vadd.f32 %v21, %v47
  %v49 = vpop.f32.mrf.mxu0
  %v50 = vadd.f32 %v21, %v49
  %51 = vdwg.mxu0
  %v52 = vpack.c.bf16 %v48, %v48
  %v53 = vpack.c.bf16 %v50, %v50
  %vm54 = vcmask 257024
  %55 = vst.msk [vmem:[%s3] sm:$0xf] %vm54, %v52
  %56 = vst.msk [vmem:[%s3 + $0x4] sm:$0xf] %vm54, %v53
  %59 = vrot.lane.b32.xlu0 %v52, 96
  %v60 = vpop.permute.xlu0 %59
  %61 = vrot.lane.b32.xlu0 %v53, 96
  %v62 = vpop.permute.xlu0 %61
  %s65 = scalar_lea.vmem %s3, 8
  %66 = vst.msk [vmem:[%s65] sm:$0xf] %vm54, %v60
  %67 = vst.msk [vmem:[%s65 + $0x4] sm:$0xf] %vm54, %v62
  %68 = vrot.lane.b32.xlu0 %v52, 64
  %v69 = vpop.permute.xlu0 %68
  %70 = vrot.lane.b32.xlu0 %v53, 64
  %v71 = vpop.permute.xlu0 %70
  %s74 = scalar_lea.vmem %s3, 16
  %75 = vst.msk [vmem:[%s74] sm:$0xf] %vm54, %v69
  %76 = vst.msk [vmem:[%s74 + $0x4] sm:$0xf] %vm54, %v71
  // Predicated region
  $region14: #{transfer_net_forward.7} parent=0 // pred_check
    _
  $region15: #{transfer_net_forward.7} parent=0 // pred_check_branch
    %78 = sbr.rel (0) target = $region17
  $region16: #{transfer_net_forward.7} parent=0 // pred_region
    _
  $region17: #{transfer_net_forward.7} parent=0 // pred_fallthru
    _
  // Predicated region
  $region18: #{transfer_net_forward.7} parent=0 // pred_check
    _
  $region19: #{transfer_net_forward.7} parent=0 // pred_check_branch
    %80 = sbr.rel (0) target = $region21
  $region20: #{transfer_net_forward.7} parent=0 // pred_region
    _
  $region21: #{transfer_net_forward.7} parent=0 // pred_fallthru
    _

// kernel: transfer_net_forward.9
$region0: #{transfer_net_forward.9}
  #allocation0 [shape = 'u32[]', space=smem, size = 0x4, offset = 0x4, fixed_abs, tag = 'smem constant byte address 0x4 - core index']
  #allocation1 [shape = 'u32[72,128]{1,0:T(1,128)}', space=vmem, size = 0x9000, scoped, tag = 'internal scratch']
  %s0 = inlined_call_operand.vmem [shape: f32[8,2,32], index: 0, kind: input, shape index: {}]
  %s1 = inlined_call_operand.vmem [shape: f32[8,2,1], index: 1, kind: input, shape index: {}]
  %s2 = inlined_call_operand.vmem [shape: bf16[32,16], index: 2, kind: input, shape index: {}]
  %s3 = inlined_call_operand.vmem [shape: f32[16,2], index: 3, kind: input, shape index: {}]
  %s4 = inlined_call_operand.vmem [shape: f32[2,32], index: 4, kind: output, shape index: {0}]
  %s5 = inlined_call_operand.vmem [shape: f32[8,2,2], index: 5, kind: output, shape index: {1}]
  %6 = xla_tuple %s4, %s5
  %s7 = sld [smem:[#allocation0]]
  $region34: #{transfer_net_forward.9} parent=0
    _
  %s9 = ssub.s32 1, %s7
  %s10 = scalar_select 0, %s9, %s7
  // Predicated region
  $region2: #{transfer_net_forward.9} parent=0 // pred_check
    _
  $region3: #{transfer_net_forward.9} parent=0 // pred_check_branch
    %12 = sbr.rel (0) target = $region5
  $region4: #{transfer_net_forward.9} parent=0 // pred_region
    _
  $region5: #{transfer_net_forward.9} parent=0 // pred_fallthru
    _
  // Predicated region
  $region6: #{transfer_net_forward.9} parent=0 // pred_check
    _
  $region7: #{transfer_net_forward.9} parent=0 // pred_check_branch
    %14 = sbr.rel (0) target = $region9
  $region8: #{transfer_net_forward.9} parent=0 // pred_region
    _
  $region9: #{transfer_net_forward.9} parent=0 // pred_fallthru
    _
  // Predicated region
  $region10: #{transfer_net_forward.9} parent=0 // pred_check
    _
  $region11: #{transfer_net_forward.9} parent=0 // pred_check_branch
    %16 = sbr.rel (0) target = $region13
  $region12: #{transfer_net_forward.9} parent=0 // pred_region
    _
  $region13: #{transfer_net_forward.9} parent=0 // pred_fallthru
    _
  // Predicated region
  $region14: #{transfer_net_forward.9} parent=0 // pred_check
    _
  $region15: #{transfer_net_forward.9} parent=0 // pred_check_branch
    %18 = sbr.rel (0) target = $region17
  $region16: #{transfer_net_forward.9} parent=0 // pred_region
    _
  $region17: #{transfer_net_forward.9} parent=0 // pred_fallthru
    _
  %v20 = vld [vmem:[%s0] sm:$0x3]
  %v21 = vld [vmem:[%s0 + $0x2] sm:$0x3]
  %v22 = vld [vmem:[%s0 + $0x4] sm:$0x3]
  %v23 = vld [vmem:[%s0 + $0x6] sm:$0x3]
  %v24 = vld [vmem:[%s0 + $0x8] sm:$0x3]
  %v25 = vld [vmem:[%s0 + $0xa] sm:$0x3]
  %v26 = vld [vmem:[%s0 + $0xc] sm:$0x3]
  %v27 = vld [vmem:[%s0 + $0xe] sm:$0x3]
  %v28 = vpack.c.bf16 %v20, %v20
  %v29 = vpack.c.bf16 %v21, %v21
  %v30 = vpack.c.bf16 %v22, %v22
  %v31 = vpack.c.bf16 %v23, %v23
  %v32 = vpack.c.bf16 %v24, %v24
  %v33 = vpack.c.bf16 %v25, %v25
  %v34 = vpack.c.bf16 %v26, %v26
  %v35 = vpack.c.bf16 %v27, %v27
  %v36 = vld [vmem:[%s2] sm:$0xf]
  %v37 = vld [vmem:[%s2 + $0x4] sm:$0xf]
  %v38 = vld [vmem:[%s2 + $0x8] sm:$0xf]
  %v39 = vld [vmem:[%s2 + $0xc] sm:$0xf]
  %41 = vst [vmem:[#allocation1] ss:$9 sm:$0xff] %v28
  %s43 = scalar_lea.vmem [#allocation1], 1
  %44 = vst [vmem:[%s43] ss:$9 sm:$0xff] %v29
  %s46 = scalar_lea.vmem [#allocation1], 2
  %47 = vst [vmem:[%s46] ss:$9 sm:$0xff] %v30
  %s49 = scalar_lea.vmem [#allocation1], 3
  %50 = vst [vmem:[%s49] ss:$9 sm:$0xff] %v31
  %s52 = scalar_lea.vmem [#allocation1], 4
  %53 = vst [vmem:[%s52] ss:$9 sm:$0xff] %v32
  %s55 = scalar_lea.vmem [#allocation1], 5
  %56 = vst [vmem:[%s55] ss:$9 sm:$0xff] %v33
  %s58 = scalar_lea.vmem [#allocation1], 6
  %59 = vst [vmem:[%s58] ss:$9 sm:$0xff] %v34
  %s61 = scalar_lea.vmem [#allocation1], 7
  %62 = vst [vmem:[%s61] ss:$9 sm:$0xff] %v35
  %v63 = vld [vmem:[#allocation1] sm:$0xff]
  %v68 = vunpack.c.l.b16 %v36
  %v69 = vunpack.c.l.b16 %v37
  %v70 = vunpack.c.l.b16 %v38
  %v71 = vunpack.c.l.b16 %v39
  %v72 = vpack.c.b16 %v69, %v68
  %v73 = vpack.c.b16 %v71, %v70
  %vm76 = vcmask 261120
  %v77 = vsel %vm76, %v63, 0
  %79 = vmatpush.bf16.msra.mxu0 0
  %80 = vmatpush.bf16.msra.mxu0 0
  %81 = vmatpush.bf16.msra.mxu0 0
  %82 = vmatpush.bf16.msra.mxu0 0
  %83 = vmatpush.bf16.msra.mxu0 0
  %84 = vmatpush.bf16.msra.mxu0 0
  %85 = vmatpush.bf16.msra.mxu0 %v73
  %86 = vmatpush.bf16.msra.mxu0 %v72
  %87 = vmatmul.bf16.gmra.mxu0 %v77
  %v88 = vpop.f32.mrf.mxu0
  %v89 = vadd.f32 0.0, %v88
  %v90 = vpop.f32.mrf.mxu0
  %v91 = vadd.f32 0.0, %v90
  %92 = vdwg.mxu0
  %v93 = vtanh.pop %v89
  %v94 = vtanh.pop %v91
  %v95 = vld [vmem:[%s3] sm:$0xff]
  %v96 = vld [vmem:[%s3 + $0x8] sm:$0xff]
  %vm97 = vcmask 130048
  %v99 = vsel %vm97, %v93, 0
  %v102 = vsel %vm97, %v94, 0
  %104 = vmatpush.msra.mxu0 0.0
  %105 = vmatpush.msra.mxu0 0.0
  %106 = vmatpush.msra.mxu0 0.0
  %107 = vmatpush.msra.mxu0 0.0
  %108 = vmatpush.msra.mxu0 0.0
  %109 = vmatpush.msra.mxu0 0.0
  %110 = vmatpush.msra.mxu0 0.0
  %111 = vmatpush.msra.mxu0 0.0
  %112 = vmatpush.msra.mxu0 0.0
  %113 = vmatpush.msra.mxu0 0.0
  %114 = vmatpush.msra.mxu0 0.0
  %115 = vmatpush.msra.mxu0 0.0
  %116 = vmatpush.msra.mxu0 0.0
  %117 = vmatpush.msra.mxu0 0.0
  %118 = vmatpush.msra.mxu0 %v96
  %119 = vmatpush.msra.mxu0 %v95
  %120 = vmatmul.f32.gmra.mxu0 %v99
  %v121 = vpop.f32.mrf.mxu0
  %v122 = vadd.f32 0.0, %v121
  %123 = vmatmul.f32.gmra.mxu0 %v102
  %v124 = vpop.f32.mrf.mxu0
  %v125 = vadd.f32 0.0, %v124
  %126 = vdwg.mxu0
  %v129 = vrot.slane %v122, 2
  %v130 = vrot.slane %v122, 4
  %v131 = vrot.slane %v122, 6
  %v132 = vrot.slane %v125, 2
  %v133 = vrot.slane %v125, 4
  %v134 = vrot.slane %v125, 6
  %v141 = vsub.f32 0.0, %v122
  %v142 = vsub.f32 0.0, %v129
  %v143 = vsub.f32 0.0, %v130
  %v144 = vsub.f32 0.0, %v131
  %v145 = vsub.f32 0.0, %v125
  %v146 = vsub.f32 0.0, %v132
  %v147 = vsub.f32 0.0, %v133
  %v148 = vsub.f32 0.0, %v134
  %v149 = vld [vmem:[%s1] sm:$0x3]
  %v150 = vld [vmem:[%s1 + $0x2] sm:$0x3]
  %v151 = vld [vmem:[%s1 + $0x4] sm:$0x3]
  %v152 = vld [vmem:[%s1 + $0x6] sm:$0x3]
  %v153 = vld [vmem:[%s1 + $0x8] sm:$0x3]
  %v154 = vld [vmem:[%s1 + $0xa] sm:$0x3]
  %v155 = vld [vmem:[%s1 + $0xc] sm:$0x3]
  %v156 = vld [vmem:[%s1 + $0xe] sm:$0x3]
  %vm157 = vcmp.gt.f32.partialorder %v149, 0.0
  %vm158 = vcmp.gt.f32.partialorder %v150, 0.0
  %vm159 = vcmp.gt.f32.partialorder %v151, 0.0
  %vm160 = vcmp.gt.f32.partialorder %v152, 0.0
  %vm161 = vcmp.gt.f32.partialorder %v153, 0.0
  %vm162 = vcmp.gt.f32.partialorder %v154, 0.0
  %vm163 = vcmp.gt.f32.partialorder %v155, 0.0
  %vm164 = vcmp.gt.f32.partialorder %v156, 0.0
  %v165 = vsel %vm157, 1, 0
  %v166 = vsel %vm158, 1, 0
  %v167 = vsel %vm159, 1, 0
  %v168 = vsel %vm160, 1, 0
  %v169 = vsel %vm161, 1, 0
  %v170 = vsel %vm162, 1, 0
  %v171 = vsel %vm163, 1, 0
  %v172 = vsel %vm164, 1, 0
  %173 = vset.pattern.permute.xlu0 0
  %174 = vperm.xlu0 %173, %v165
  %v175 = vpop.permute.xlu0 %174
  %176 = vset.pattern.permute.xlu0 0
  %177 = vperm.xlu0 %176, %v166
  %v178 = vpop.permute.xlu0 %177
  %179 = vset.pattern.permute.xlu0 0
  %180 = vperm.xlu0 %179, %v167
  %v181 = vpop.permute.xlu0 %180
  %182 = vset.pattern.permute.xlu0 0
  %183 = vperm.xlu0 %182, %v168
  %v184 = vpop.permute.xlu0 %183
  %185 = vset.pattern.permute.xlu0 0
  %186 = vperm.xlu0 %185, %v169
  %v187 = vpop.permute.xlu0 %186
  %188 = vset.pattern.permute.xlu0 0
  %189 = vperm.xlu0 %188, %v170
  %v190 = vpop.permute.xlu0 %189
  %191 = vset.pattern.permute.xlu0 0
  %192 = vperm.xlu0 %191, %v171
  %v193 = vpop.permute.xlu0 %192
  %194 = vset.pattern.permute.xlu0 0
  %195 = vperm.xlu0 %194, %v172
  %v196 = vpop.permute.xlu0 %195
  %vm197 = vcmp.eq.s32.totalorder %v175, 1
  %vm198 = vcmp.eq.s32.totalorder %v178, 1
  %vm199 = vcmp.eq.s32.totalorder %v181, 1
  %vm200 = vcmp.eq.s32.totalorder %v184, 1
  %vm201 = vcmp.eq.s32.totalorder %v187, 1
  %vm202 = vcmp.eq.s32.totalorder %v190, 1
  %vm203 = vcmp.eq.s32.totalorder %v193, 1
  %vm204 = vcmp.eq.s32.totalorder %v196, 1
  %v205 = vsel %vm197, %v141, -1e+30
  %v206 = vsel %vm198, %v142, -1e+30
  %v207 = vsel %vm199, %v143, -1e+30
  %v208 = vsel %vm200, %v144, -1e+30
  %v209 = vsel %vm201, %v145, -1e+30
  %v210 = vsel %vm202, %v146, -1e+30
  %v211 = vsel %vm203, %v147, -1e+30
  %v212 = vsel %vm204, %v148, -1e+30
  %vm213 = vcmask 9216
  %v214 = vsel %vm213, %v205, -inf
  %v215 = vsel %vm213, %v206, -inf
  %v216 = vsel %vm213, %v207, -inf
  %v217 = vsel %vm213, %v208, -inf
  %v218 = vsel %vm213, %v209, -inf
  %v219 = vmax.f32 %v214, %v218
  %v220 = vsel %vm213, %v210, -inf
  %v221 = vmax.f32 %v215, %v220
  %v222 = vsel %vm213, %v211, -inf
  %v223 = vmax.f32 %v216, %v222
  %v224 = vsel %vm213, %v212, -inf
  %v225 = vmax.f32 %v217, %v224
  %v226 = vmax.f32 %v219, %v221
  %v227 = vmax.f32 %v223, %v225
  %v228 = vmax.f32 %v226, %v227
  %v229 = vsub.f32 %v205, %v228
  %v230 = vsub.f32 %v206, %v228
  %v231 = vsub.f32 %v207, %v228
  %v232 = vsub.f32 %v208, %v228
  %v233 = vsub.f32 %v209, %v228
  %v234 = vsub.f32 %v210, %v228
  %v235 = vsub.f32 %v211, %v228
  %v236 = vsub.f32 %v212, %v228
  %v237 = vmul.f32 %v229, 1.442695
  %v238 = vpow.pop %v237
  %v239 = vmul.f32 %v230, 1.442695
  %v240 = vpow.pop %v239
  %v241 = vmul.f32 %v231, 1.442695
  %v242 = vpow.pop %v241
  %v243 = vmul.f32 %v232, 1.442695
  %v244 = vpow.pop %v243
  %v245 = vmul.f32 %v233, 1.442695
  %v246 = vpow.pop %v245
  %v247 = vmul.f32 %v234, 1.442695
  %v248 = vpow.pop %v247
  %v249 = vmul.f32 %v235, 1.442695
  %v250 = vpow.pop %v249
  %v251 = vmul.f32 %v236, 1.442695
  %v252 = vpow.pop %v251
  %v253 = vsel %vm213, %v238, 0.0
  %v254 = vsel %vm213, %v240, 0.0
  %v255 = vadd.f32 %v253, %v254
  %v256 = vsel %vm213, %v242, 0.0
  %v257 = vadd.f32 %v255, %v256
  %v258 = vsel %vm213, %v244, 0.0
  %v259 = vadd.f32 %v257, %v258
  %v260 = vsel %vm213, %v246, 0.0
  %v261 = vadd.f32 %v259, %v260
  %v262 = vsel %vm213, %v248, 0.0
  %v263 = vadd.f32 %v261, %v262
  %v264 = vsel %vm213, %v250, 0.0
  %v265 = vadd.f32 %v263, %v264
  %v266 = vsel %vm213, %v252, 0.0
  %v267 = vadd.f32 %v265, %v266
  %v268 = vrcp.pop %v267
  %v269 = vmul.f32 %v267, %v268
  %v270 = vsub.f32 1.0, %v269
  %v271 = vmul.f32 %v268, %v270
  %v272 = vadd.f32 %v268, %v271
  %vm273 = vweird.f32 %v267
  %vm274 = vweird.f32 %v268
  %vm275 = vmor %vm273, %vm274
  %v276 = vsel %vm275, %v268, %v272
  %v277 = vand.u32 2147483647, %v267
  %vm278 = vcmp.eq.f32.partialorder %v277, 8.507059e+37
  %v279 = vand.u32 %v267, 2147483648
  %v280 = vor.u32 1.1754944e-38, %v279
  %v281 = vsel %vm278, %v280, %v276
  %v282 = vmul.f32 %v238, %v281
  %v283 = vmul.f32 %v240, %v281
  %v284 = vmul.f32 %v242, %v281
  %v285 = vmul.f32 %v244, %v281
  %v286 = vmul.f32 %v246, %v281
  %v287 = vmul.f32 %v248, %v281
  %v288 = vmul.f32 %v250, %v281
  %v289 = vmul.f32 %v252, %v281
  %290 = vst.msk [vmem:[%s5] sm:$0x3] %vm213, %v282
  %291 = vst.msk [vmem:[%s5 + $0x2] sm:$0x3] %vm213, %v283
  %292 = vst.msk [vmem:[%s5 + $0x4] sm:$0x3] %vm213, %v284
  %293 = vst.msk [vmem:[%s5 + $0x6] sm:$0x3] %vm213, %v285
  %294 = vst.msk [vmem:[%s5 + $0x8] sm:$0x3] %vm213, %v286
  %295 = vst.msk [vmem:[%s5 + $0xa] sm:$0x3] %vm213, %v287
  %296 = vst.msk [vmem:[%s5 + $0xc] sm:$0x3] %vm213, %v288
  %297 = vst.msk [vmem:[%s5 + $0xe] sm:$0x3] %vm213, %v289
  %v298 = vsel %vm213, %v282, 0.0
  %299 = vadd.xlane.f32.xlu0 %v298
  %v300 = vpop.xlane.xlu0 %299
  %v301 = vsel %vm213, %v283, 0.0
  %302 = vadd.xlane.f32.xlu0 %v301
  %v303 = vpop.xlane.xlu0 %302
  %v304 = vsel %vm213, %v284, 0.0
  %305 = vadd.xlane.f32.xlu0 %v304
  %v306 = vpop.xlane.xlu0 %305
  %v307 = vsel %vm213, %v285, 0.0
  %308 = vadd.xlane.f32.xlu0 %v307
  %v309 = vpop.xlane.xlu0 %308
  %v310 = vsel %vm213, %v286, 0.0
  %311 = vadd.xlane.f32.xlu0 %v310
  %v312 = vpop.xlane.xlu0 %311
  %v313 = vsel %vm213, %v287, 0.0
  %314 = vadd.xlane.f32.xlu0 %v313
  %v315 = vpop.xlane.xlu0 %314
  %v316 = vsel %vm213, %v288, 0.0
  %317 = vadd.xlane.f32.xlu0 %v316
  %v318 = vpop.xlane.xlu0 %317
  %v319 = vsel %vm213, %v289, 0.0
  %320 = vadd.xlane.f32.xlu0 %v319
  %v321 = vpop.xlane.xlu0 %320
  %v322 = vmul.f32 %v300, %v20
  %v323 = vmul.f32 %v303, %v21
  %v324 = vmul.f32 %v306, %v22
  %v325 = vmul.f32 %v309, %v23
  %v326 = vmul.f32 %v312, %v24
  %v327 = vmul.f32 %v315, %v25
  %v328 = vmul.f32 %v318, %v26
  %v329 = vmul.f32 %v321, %v27
  %vm330 = vcmask 254976
  %v331 = vsel %vm330, %v322, 0.0
  %v332 = vsel %vm330, %v323, 0.0
  %v333 = vadd.f32 %v331, %v332
  %v334 = vsel %vm330, %v324, 0.0
  %v335 = vadd.f32 %v333, %v334
  %v336 = vsel %vm330, %v325, 0.0
  %v337 = vadd.f32 %v335, %v336
  %v338 = vsel %vm330, %v326, 0.0
  %v339 = vadd.f32 %v337, %v338
  %v340 = vsel %vm330, %v327, 0.0
  %v341 = vadd.f32 %v339, %v340
  %v342 = vsel %vm330, %v328, 0.0
  %v343 = vadd.f32 %v341, %v342
  %v344 = vsel %vm330, %v329, 0.0
  %v345 = vadd.f32 %v343, %v344
  %v346 = vmul.f32 %v345, 0.5
  %347 = vst.msk [vmem:[%s4] sm:$0x3] %vm330, %v346
  // Predicated region
  $region18: #{transfer_net_forward.9} parent=0 // pred_check
    _
  $region19: #{transfer_net_forward.9} parent=0 // pred_check_branch
    %349 = sbr.rel (0) target = $region21
  $region20: #{transfer_net_forward.9} parent=0 // pred_region
    _
  $region21: #{transfer_net_forward.9} parent=0 // pred_fallthru
    _
  // Predicated region
  $region22: #{transfer_net_forward.9} parent=0 // pred_check
    _
  $region23: #{transfer_net_forward.9} parent=0 // pred_check_branch
    %351 = sbr.rel (0) target = $region25
  $region24: #{transfer_net_forward.9} parent=0 // pred_region
    _
  $region25: #{transfer_net_forward.9} parent=0 // pred_fallthru
    _
  // Predicated region
  $region26: #{transfer_net_forward.9} parent=0 // pred_check
    _
  $region27: #{transfer_net_forward.9} parent=0 // pred_check_branch
    %353 = sbr.rel (0) target = $region29
  $region28: #{transfer_net_forward.9} parent=0 // pred_region
    _
  $region29: #{transfer_net_forward.9} parent=0 // pred_fallthru
    _
  // Predicated region
  $region30: #{transfer_net_forward.9} parent=0 // pred_check
    _
  $region31: #{transfer_net_forward.9} parent=0 // pred_check_branch
    %355 = sbr.rel (0) target = $region33
  $region32: #{transfer_net_forward.9} parent=0 // pred_region
    _
  $region33: #{transfer_net_forward.9} parent=0 // pred_fallthru
    _

// kernel: transfer_net_forward.12
$region0: #{transfer_net_forward.12}
  #allocation0 [shape = 'u32[]', space=smem, size = 0x4, offset = 0x4, fixed_abs, tag = 'smem constant byte address 0x4 - core index']
  #allocation1 [shape = 'u32[72,128]{1,0:T(1,128)}', space=vmem, size = 0x9000, scoped, tag = 'internal scratch']
  #allocation2 [shape = 'f32[16,1]{1,0:T(8,128)}', space=vmem, size = 0x2000, scoped, tag = 'scratch operand']
  #allocation3 [shape = 'f32[16,1]{1,0:T(8,128)}', space=vmem, size = 0x2000, scoped, tag = 'scratch operand']
  %s0 = inlined_call_operand.vmem [shape: bf16[16,32], index: 0, kind: input, shape index: {}]
  %s1 = inlined_call_operand.vmem [shape: bf16[32,32], index: 1, kind: input, shape index: {}]
  %s2 = inlined_call_operand.vmem [shape: f32[1,32], index: 2, kind: input, shape index: {}]
  %s3 = inlined_call_operand.vmem [shape: f32[16,1], index: 3, kind: output, shape index: {}]
  %s4 = sld [smem:[#allocation0]]
  $region30: #{transfer_net_forward.12} parent=0
    _
  %s6 = ssub.s32 1, %s4
  %s7 = scalar_select 0, %s6, %s4
  // Predicated region
  $region2: #{transfer_net_forward.12} parent=0 // pred_check
    _
  $region3: #{transfer_net_forward.12} parent=0 // pred_check_branch
    %9 = sbr.rel (0) target = $region5
  $region4: #{transfer_net_forward.12} parent=0 // pred_region
    _
  $region5: #{transfer_net_forward.12} parent=0 // pred_fallthru
    _
  // Predicated region
  $region6: #{transfer_net_forward.12} parent=0 // pred_check
    _
  $region7: #{transfer_net_forward.12} parent=0 // pred_check_branch
    %11 = sbr.rel (0) target = $region9
  $region8: #{transfer_net_forward.12} parent=0 // pred_region
    _
  $region9: #{transfer_net_forward.12} parent=0 // pred_fallthru
    _
  // Predicated region
  $region10: #{transfer_net_forward.12} parent=0 // pred_check
    _
  $region11: #{transfer_net_forward.12} parent=0 // pred_check_branch
    %13 = sbr.rel (0) target = $region13
  $region12: #{transfer_net_forward.12} parent=0 // pred_region
    _
  $region13: #{transfer_net_forward.12} parent=0 // pred_fallthru
    _
  %p15 = scmp.eq.s32.totalorder 0, 0
  // Predicated region
  $region14: #{transfer_net_forward.12} parent=0 // pred_check
    %p16 = pneg %p15
  $region15: #{transfer_net_forward.12} parent=0 // pred_check_branch
    %18 = sbr.rel (%p16) target = $region17
  $region16: #{transfer_net_forward.12} parent=0 // pred_region
    %vm19 = vcmask 7168
    %20 = vst.msk [vmem:[#allocation2] sm:$0xff] %vm19, -inf
    %21 = vst.msk [vmem:[#allocation2 + $0x8] sm:$0xff] %vm19, -inf
    %22 = vst.msk [vmem:[#allocation3] sm:$0xff] %vm19, 0.0
    %23 = vst.msk [vmem:[#allocation3 + $0x8] sm:$0xff] %vm19, 0.0
  $region17: #{transfer_net_forward.12} parent=0 // pred_fallthru
    _
  %v24 = vld [vmem:[%s0] sm:$0xf]
  %v25 = vld [vmem:[%s0 + $0x4] sm:$0xf]
  %v26 = vld [vmem:[%s1] sm:$0xf]
  %v27 = vld [vmem:[%s1 + $0x4] sm:$0xf]
  %v28 = vld [vmem:[%s1 + $0x8] sm:$0xf]
  %v29 = vld [vmem:[%s1 + $0xc] sm:$0xf]
  %v30 = vld [vmem:[%s2] sm:$0x1]
  %v32 = vperm.slane %v30, 0
  %v36 = vunpack.c.l.b16 %v24
  %v37 = vunpack.c.l.b16 %v25
  %v38 = vpack.c.b16 %v37, %v36
  %v43 = vunpack.c.l.b16 %v26
  %v44 = vunpack.c.l.b16 %v27
  %v45 = vunpack.c.l.b16 %v28
  %v46 = vunpack.c.l.b16 %v29
  %v47 = vpack.c.b16 %v44, %v43
  %v48 = vpack.c.b16 %v46, %v45
  %vm51 = vcmask 261120
  %v53 = vsel %vm51, %v38, 0
  %55 = vmatpush.bf16.msra.mxu0 0
  %56 = vmatpush.bf16.msra.mxu0 0
  %57 = vmatpush.bf16.msra.mxu0 0
  %58 = vmatpush.bf16.msra.mxu0 0
  %59 = vmatpush.bf16.msra.mxu0 0
  %60 = vmatpush.bf16.msra.mxu0 0
  %61 = vmatpush.bf16.msra.mxu0 %v48
  %62 = vmatpush.bf16.msra.mxu0 %v47
  %63 = vmatmul.bf16.gmra.mxu0 %v53
  %v64 = vpop.f32.mrf.mxu0
  %v65 = vadd.f32 %v32, %v64
  %v66 = vpop.f32.mrf.mxu0
  %v67 = vadd.f32 %v32, %v66
  %68 = vdwg.mxu0
  %v69 = vld [vmem:[#allocation2] sm:$0xff]
  %v70 = vld [vmem:[#allocation2 + $0x8] sm:$0xff]
  %v71 = vsel %vm51, %v65, -inf
  %72 = vmax.xlane.f32.xlu0 %v71
  %v73 = vpop.xlane.xlu0 %72
  %v74 = vsel %vm51, %v67, -inf
  %75 = vmax.xlane.f32.xlu0 %v74
  %v76 = vpop.xlane.xlu0 %75
  %v77 = vmax.f32 %v69, %v73
  %v78 = vmax.f32 %v70, %v76
  %v79 = vld [vmem:[#allocation3] sm:$0xff]
  %v80 = vld [vmem:[#allocation3 + $0x8] sm:$0xff]
  %v81 = vsub.f32 %v69, %v77
  %v82 = vsub.f32 %v70, %v78
  %v83 = vmul.f32 %v81, 1.442695
  %v84 = vpow.pop %v83
  %v85 = vmul.f32 %v82, 1.442695
  %v86 = vpow.pop %v85
  %v87 = vmul.f32 %v79, %v84
  %v88 = vmul.f32 %v80, %v86
  %90 = vset.pattern.permute.xlu0 0
  %91 = vperm.xlu0 %90, %v77
  %v92 = vpop.permute.xlu0 %91
  %95 = vset.pattern.permute.xlu0 0
  %96 = vperm.xlu0 %95, %v78
  %v97 = vpop.permute.xlu0 %96
  %v99 = vsub.f32 %v65, %v92
  %v100 = vsub.f32 %v67, %v97
  %v101 = vmul.f32 %v99, 1.442695
  %v102 = vpow.pop %v101
  %v103 = vmul.f32 %v100, 1.442695
  %v104 = vpow.pop %v103
  %v105 = vsel %vm51, %v102, 0.0
  %106 = vadd.xlane.f32.xlu0 %v105
  %v107 = vpop.xlane.xlu0 %106
  %v108 = vsel %vm51, %v104, 0.0
  %109 = vadd.xlane.f32.xlu0 %v108
  %v110 = vpop.xlane.xlu0 %109
  %v111 = vadd.f32 %v87, %v107
  %v112 = vadd.f32 %v88, %v110
  %vm113 = vcmask 7168
  %114 = vst.msk [vmem:[#allocation3] sm:$0xff] %vm113, %v111
  %115 = vst.msk [vmem:[#allocation3 + $0x8] sm:$0xff] %vm113, %v112
  %116 = vst.msk [vmem:[#allocation2] sm:$0xff] %vm113, %v77
  %117 = vst.msk [vmem:[#allocation2 + $0x8] sm:$0xff] %vm113, %v78
  // Predicated region
  $region18: #{transfer_net_forward.12} parent=0 // pred_check
    %p118 = pneg %p15
  $region19: #{transfer_net_forward.12} parent=0 // pred_check_branch
    %120 = sbr.rel (%p118) target = $region21
  $region20: #{transfer_net_forward.12} parent=0 // pred_region
    %v121 = vld [vmem:[#allocation2] sm:$0xff]
    %v122 = vld [vmem:[#allocation2 + $0x8] sm:$0xff]
    %v123 = vld [vmem:[#allocation3] sm:$0xff]
    %v124 = vld [vmem:[#allocation3 + $0x8] sm:$0xff]
    %v125 = vlog2.pop %v123
    %v126 = vmul.f32 %v125, 0.6931472
    %v127 = vlog2.pop %v124
    %v128 = vmul.f32 %v127, 0.6931472
    %v129 = vadd.f32 %v121, %v126
    %v130 = vadd.f32 %v122, %v128
    %131 = vst.msk [vmem:[%s3] sm:$0xff] %vm113, %v129
    %132 = vst.msk [vmem:[%s3 + $0x8] sm:$0xff] %vm113, %v130
  $region21: #{transfer_net_forward.12} parent=0 // pred_fallthru
    _
  // Predicated region
  $region22: #{transfer_net_forward.12} parent=0 // pred_check
    _
  $region23: #{transfer_net_forward.12} parent=0 // pred_check_branch
    %134 = sbr.rel (0) target = $region25
  $region24: #{transfer_net_forward.12} parent=0 // pred_region
    _
  $region25: #{transfer_net_forward.12} parent=0 // pred_fallthru
    _
  // Predicated region
  $region26: #{transfer_net_forward.12} parent=0 // pred_check
    _
  $region27: #{transfer_net_forward.12} parent=0 // pred_check_branch
    %136 = sbr.rel (0) target = $region29
  $region28: #{transfer_net_forward.12} parent=0 // pred_region
    _
  $region29: #{transfer_net_forward.12} parent=0 // pred_fallthru
    _

// kernel: transfer_net_forward.13
$region0: #{transfer_net_forward.13}
  #allocation0 [shape = 'u32[]', space=smem, size = 0x4, offset = 0x4, fixed_abs, tag = 'smem constant byte address 0x4 - core index']
  #allocation1 [shape = 'u32[72,128]{1,0:T(1,128)}', space=vmem, size = 0x9000, scoped, tag = 'internal scratch']
  %s0 = inlined_call_operand.vmem [shape: bf16[16,32], index: 0, kind: input, shape index: {}]
  %s1 = inlined_call_operand.vmem [shape: bf16[32,32], index: 1, kind: input, shape index: {}]
  %s2 = inlined_call_operand.vmem [shape: f32[1,32], index: 2, kind: input, shape index: {}]
  %s3 = inlined_call_operand.vmem [shape: f32[16,1], index: 3, kind: input, shape index: {}]
  %s4 = inlined_call_operand.hbm [shape: f32[16,32], index: 4, kind: output, shape index: {}]
  %s5 = sld [smem:[#allocation0]]
  $region26: #{transfer_net_forward.13} parent=0
    _
  %s7 = ssub.s32 1, %s5
  %s8 = scalar_select 0, %s7, %s5
  $region1: #{transfer_net_forward.13} parent=0
    #allocation2 [shape = 'u8[8192]{0}', space=vmem, size = 0x2000, scoped, tag = 'output window, operand 0, single buffered']
    #allocation3 [shape = 's32[1]{0}', space=sflag, size = 0x4, scoped, tag = 'scoped memory for transfer_net_forward.13']
    %9 = vsyncpa [#allocation3], 0
    // Predicated region
    $region2: #{transfer_net_forward.13} parent=1 // pred_check
      _
    $region3: #{transfer_net_forward.13} parent=1 // pred_check_branch
      %11 = sbr.rel (0) target = $region5
    $region4: #{transfer_net_forward.13} parent=1 // pred_region
      _
    $region5: #{transfer_net_forward.13} parent=1 // pred_fallthru
      _
    // Predicated region
    $region6: #{transfer_net_forward.13} parent=1 // pred_check
      _
    $region7: #{transfer_net_forward.13} parent=1 // pred_check_branch
      %13 = sbr.rel (0) target = $region9
    $region8: #{transfer_net_forward.13} parent=1 // pred_region
      _
    $region9: #{transfer_net_forward.13} parent=1 // pred_fallthru
      _
    // Predicated region
    $region10: #{transfer_net_forward.13} parent=1 // pred_check
      _
    $region11: #{transfer_net_forward.13} parent=1 // pred_check_branch
      %15 = sbr.rel (0) target = $region13
    $region12: #{transfer_net_forward.13} parent=1 // pred_region
      _
    $region13: #{transfer_net_forward.13} parent=1 // pred_fallthru
      _
    // Predicated region
    $region14: #{transfer_net_forward.13} parent=1 // pred_check
      _
    $region15: #{transfer_net_forward.13} parent=1 // pred_check_branch
      %17 = sbr.rel (0) target = $region17
    $region16: #{transfer_net_forward.13} parent=1 // pred_region
      _
    $region17: #{transfer_net_forward.13} parent=1 // pred_fallthru
      _
    %v19 = vld [vmem:[%s0] sm:$0xf]
    %v20 = vld [vmem:[%s0 + $0x4] sm:$0xf]
    %v21 = vld [vmem:[%s1] sm:$0xf]
    %v22 = vld [vmem:[%s1 + $0x4] sm:$0xf]
    %v23 = vld [vmem:[%s1 + $0x8] sm:$0xf]
    %v24 = vld [vmem:[%s1 + $0xc] sm:$0xf]
    %v25 = vld [vmem:[%s2] sm:$0x1]
    %v27 = vperm.slane %v25, 0
    %v31 = vunpack.c.l.b16 %v19
    %v32 = vunpack.c.l.b16 %v20
    %v33 = vpack.c.b16 %v32, %v31
    %v38 = vunpack.c.l.b16 %v21
    %v39 = vunpack.c.l.b16 %v22
    %v40 = vunpack.c.l.b16 %v23
    %v41 = vunpack.c.l.b16 %v24
    %v42 = vpack.c.b16 %v39, %v38
    %v43 = vpack.c.b16 %v41, %v40
    %vm46 = vcmask 261120
    %v48 = vsel %vm46, %v33, 0
    %50 = vmatpush.bf16.msra.mxu0 0
    %51 = vmatpush.bf16.msra.mxu0 0
    %52 = vmatpush.bf16.msra.mxu0 0
    %53 = vmatpush.bf16.msra.mxu0 0
    %54 = vmatpush.bf16.msra.mxu0 0
    %55 = vmatpush.bf16.msra.mxu0 0
    %56 = vmatpush.bf16.msra.mxu0 %v43
    %57 = vmatpush.bf16.msra.mxu0 %v42
    %58 = vmatmul.bf16.gmra.mxu0 %v48
    %v59 = vpop.f32.mrf.mxu0
    %v60 = vadd.f32 %v27, %v59
    %v61 = vpop.f32.mrf.mxu0
    %v62 = vadd.f32 %v27, %v61
    %63 = vdwg.mxu0
    %v64 = vld [vmem:[%s3] sm:$0xff]
    %v65 = vld [vmem:[%s3 + $0x8] sm:$0xff]
    %67 = vset.pattern.permute.xlu0 0
    %68 = vperm.xlu0 %67, %v64
    %v69 = vpop.permute.xlu0 %68
    %72 = vset.pattern.permute.xlu0 0
    %73 = vperm.xlu0 %72, %v65
    %v74 = vpop.permute.xlu0 %73
    %v76 = vsub.f32 %v60, %v69
    %v77 = vsub.f32 %v62, %v74
    %78 = vst.msk [vmem:[#allocation2] sm:$0xff] %vm46, %v76
    %79 = vst.msk [vmem:[#allocation2 + $0x8] sm:$0xff] %vm46, %v77
    // Predicated region
    $region18: #{transfer_net_forward.13} parent=1 // pred_check
      _
    $region19: #{transfer_net_forward.13} parent=1 // pred_check_branch
      %81 = sbr.rel (0) target = $region21
    $region20: #{transfer_net_forward.13} parent=1 // pred_region
      %83 = vsyncadd [#allocation3], 0
      %s84 = sshll.u32 [#allocation2], 4
      %s85 = int_to_ptr.vmem [resolvable:$true] %s84
      %s86 = sshll.u32 %s4, 4
      %s87 = int_to_ptr.hbm [resolvable:$true] %s86
      %92 = dma.vmem_to_hbm [thread:$0]  %s85, 256, %s87, [#allocation3], 128, 128, 8
    $region21: #{transfer_net_forward.13} parent=1 // pred_fallthru
      _
    // Predicated region
    $region22: #{transfer_net_forward.13} parent=1 // pred_check
      _
    $region23: #{transfer_net_forward.13} parent=1 // pred_check_branch
      %94 = sbr.rel (0) target = $region25
    $region24: #{transfer_net_forward.13} parent=1 // pred_region
      %96 = dma.done [#allocation3], 256
    $region25: #{transfer_net_forward.13} parent=1 // pred_fallthru
      _
    %97 = vsyncpa [#allocation3], 1

// kernel: transfer_net_forward.8
$region0: #{transfer_net_forward.8}
  #allocation0 [shape = 'u32[]', space=smem, size = 0x4, offset = 0x4, fixed_abs, tag = 'smem constant byte address 0x4 - core index']
  #allocation1 [shape = 'u32[72,128]{1,0:T(1,128)}', space=vmem, size = 0x9000, scoped, tag = 'internal scratch']
  #allocation2 [shape = 'f32[2,32]{1,0:T(2,128)}', space=vmem, size = 0x400, scoped, tag = 'scratch operand']
  %s0 = inlined_call_operand.vmem [shape: bf16[3,8,2,32], index: 0, kind: input, shape index: {}]
  %s1 = inlined_call_operand.vmem [shape: s32[2,1], index: 1, kind: input, shape index: {}]
  %s2 = inlined_call_operand.vmem [shape: f32[2,32], index: 2, kind: input, shape index: {}]
  %s3 = inlined_call_operand.vmem [shape: bf16[3,32,32], index: 3, kind: input, shape index: {}]
  %s4 = inlined_call_operand.vmem [shape: f32[3,1,32], index: 4, kind: input, shape index: {}]
  %s5 = inlined_call_operand.vmem [shape: f32[8,2,32], index: 5, kind: output, shape index: {}]
  %s6 = sld [smem:[#allocation0]]
  $region34: #{transfer_net_forward.8} parent=0
    _
  %s8 = ssub.s32 1, %s6
  %s9 = scalar_select 0, %s8, %s6
  // Predicated region
  $region2: #{transfer_net_forward.8} parent=0 // pred_check
    _
  $region3: #{transfer_net_forward.8} parent=0 // pred_check_branch
    %11 = sbr.rel (0) target = $region5
  $region4: #{transfer_net_forward.8} parent=0 // pred_region
    _
  $region5: #{transfer_net_forward.8} parent=0 // pred_fallthru
    _
  // Predicated region
  $region6: #{transfer_net_forward.8} parent=0 // pred_check
    _
  $region7: #{transfer_net_forward.8} parent=0 // pred_check_branch
    %13 = sbr.rel (0) target = $region9
  $region8: #{transfer_net_forward.8} parent=0 // pred_region
    _
  $region9: #{transfer_net_forward.8} parent=0 // pred_fallthru
    _
  // Predicated region
  $region10: #{transfer_net_forward.8} parent=0 // pred_check
    _
  $region11: #{transfer_net_forward.8} parent=0 // pred_check_branch
    %15 = sbr.rel (0) target = $region13
  $region12: #{transfer_net_forward.8} parent=0 // pred_region
    _
  $region13: #{transfer_net_forward.8} parent=0 // pred_fallthru
    _
  // Predicated region
  $region14: #{transfer_net_forward.8} parent=0 // pred_check
    _
  $region15: #{transfer_net_forward.8} parent=0 // pred_check_branch
    %17 = sbr.rel (0) target = $region17
  $region16: #{transfer_net_forward.8} parent=0 // pred_region
    _
  $region17: #{transfer_net_forward.8} parent=0 // pred_fallthru
    _
  // Predicated region
  $region18: #{transfer_net_forward.8} parent=0 // pred_check
    _
  $region19: #{transfer_net_forward.8} parent=0 // pred_check_branch
    %19 = sbr.rel (0) target = $region21
  $region20: #{transfer_net_forward.8} parent=0 // pred_region
    _
  $region21: #{transfer_net_forward.8} parent=0 // pred_fallthru
    _
  %p21 = scmp.eq.s32.totalorder 0, 0
  // Predicated region
  $region22: #{transfer_net_forward.8} parent=0 // pred_check
    %p22 = pneg %p21
  $region23: #{transfer_net_forward.8} parent=0 // pred_check_branch
    %24 = sbr.rel (%p22) target = $region25
  $region24: #{transfer_net_forward.8} parent=0 // pred_region
    %v25 = vld [vmem:[%s2] sm:$0x3]
    %vm26 = vcmask 254976
    %27 = vst.msk [vmem:[#allocation2] sm:$0x3] %vm26, %v25
  $region25: #{transfer_net_forward.8} parent=0 // pred_fallthru
    _
  %v28 = vld [vmem:[%s1] sm:$0x3]
  %v29 = vld [vmem:[%s3] sm:$0xf]
  %v30 = vld [vmem:[%s3 + $0x4] sm:$0xf]
  %v31 = vld [vmem:[%s3 + $0x8] sm:$0xf]
  %v32 = vld [vmem:[%s3 + $0xc] sm:$0xf]
  %s33 = scalar_lea.vmem %s3, 16
  %v34 = vld [vmem:[%s33] sm:$0xf]
  %v35 = vld [vmem:[%s33 + $0x4] sm:$0xf]
  %v36 = vld [vmem:[%s33 + $0x8] sm:$0xf]
  %v37 = vld [vmem:[%s33 + $0xc] sm:$0xf]
  %s38 = scalar_lea.vmem %s3, 32
  %v39 = vld [vmem:[%s38] sm:$0xf]
  %v40 = vld [vmem:[%s38 + $0x4] sm:$0xf]
  %v41 = vld [vmem:[%s38 + $0x8] sm:$0xf]
  %v42 = vld [vmem:[%s38 + $0xc] sm:$0xf]
  %v43 = vld [vmem:[%s4] sm:$0x1]
  %s44 = scalar_lea.vmem %s4, 1
  %v45 = vld [vmem:[%s44] sm:$0x1]
  %s46 = scalar_lea.vmem %s4, 2
  %v47 = vld [vmem:[%s46] sm:$0x1]
  %s48 = smul.u32 0, 8
  %v49 = vld [vmem:[#allocation2] sm:$0x3]
  %v50 = vpack.c.bf16 %v49, %v49
  %v52 = vperm.slane %v43, 0
  %v58 = vunpack.c.l.b16 %v29
  %v59 = vunpack.c.l.b16 %v30
  %v60 = vunpack.c.l.b16 %v31
  %v61 = vunpack.c.l.b16 %v32
  %v62 = vpack.c.b16 %v59, %v58
  %v63 = vpack.c.b16 %v61, %v60
  %vm66 = vcmask 261120
  %v68 = vsel %vm66, %v50, 0
  %70 = vmatpush.bf16.msra.mxu0 0
  %71 = vmatpush.bf16.msra.mxu0 0
  %72 = vmatpush.bf16.msra.mxu0 0
  %73 = vmatpush.bf16.msra.mxu0 0
  %74 = vmatpush.bf16.msra.mxu0 0
  %75 = vmatpush.bf16.msra.mxu0 0
  %76 = vmatpush.bf16.msra.mxu0 %v63
  %77 = vmatpush.bf16.msra.mxu0 %v62
  %78 = vmatmul.bf16.gmra.mxu0 %v68
  %v79 = vpop.f32.mrf.mxu0
  %v80 = vadd.f32 %v52, %v79
  %v81 = vpop.f32.mrf.mxu0
  %82 = vdwg.mxu0
  %v84 = vperm.slane %v45, 0
  %v90 = vunpack.c.l.b16 %v34
  %v91 = vunpack.c.l.b16 %v35
  %v92 = vunpack.c.l.b16 %v36
  %v93 = vunpack.c.l.b16 %v37
  %v94 = vpack.c.b16 %v91, %v90
  %v95 = vpack.c.b16 %v93, %v92
  %98 = vmatpush.bf16.msra.mxu0 0
  %99 = vmatpush.bf16.msra.mxu0 0
  %100 = vmatpush.bf16.msra.mxu0 0
  %101 = vmatpush.bf16.msra.mxu0 0
  %102 = vmatpush.bf16.msra.mxu0 0
  %103 = vmatpush.bf16.msra.mxu0 0
  %104 = vmatpush.bf16.msra.mxu0 %v95
  %105 = vmatpush.bf16.msra.mxu0 %v94
  %106 = vmatmul.bf16.gmra.mxu0 %v68
  %v107 = vpop.f32.mrf.mxu0
  %v108 = vadd.f32 %v84, %v107
  %v109 = vpop.f32.mrf.mxu0
  %110 = vdwg.mxu0
  %v112 = vperm.slane %v47, 0
  %v118 = vunpack.c.l.b16 %v39
  %v119 = vunpack.c.l.b16 %v40
  %v120 = vunpack.c.l.b16 %v41
  %v121 = vunpack.c.l.b16 %v42
  %v122 = vpack.c.b16 %v119, %v118
  %v123 = vpack.c.b16 %v121, %v120
  %126 = vmatpush.bf16.msra.mxu0 0
  %127 = vmatpush.bf16.msra.mxu0 0
  %128 = vmatpush.bf16.msra.mxu0 0
  %129 = vmatpush.bf16.msra.mxu0 0
  %130 = vmatpush.bf16.msra.mxu0 0
  %131 = vmatpush.bf16.msra.mxu0 0
  %132 = vmatpush.bf16.msra.mxu0 %v123
  %133 = vmatpush.bf16.msra.mxu0 %v122
  %134 = vmatmul.bf16.gmra.mxu0 %v68
  %v135 = vpop.f32.mrf.mxu0
  %v136 = vadd.f32 %v112, %v135
  %v137 = vpop.f32.mrf.mxu0
  %138 = vdwg.mxu0
  %v139 = vld [vmem:[%s0] sm:$0x1]
  %v140 = vunpack.c.l.bf16 %v139
  %s141 = scalar_lea.vmem %s0, 8
  %v142 = vld [vmem:[%s141] sm:$0x1]
  %v143 = vunpack.c.l.bf16 %v142
  %s144 = scalar_lea.vmem %s0, 16
  %v145 = vld [vmem:[%s144] sm:$0x1]
  %v146 = vunpack.c.l.bf16 %v145
  %v147 = vadd.f32 %v140, %v80
  %v148 = vxor.u32 %v147, 2147483648
  %v149 = vmul.f32 %v148, 1.442695
  %v150 = vpow.pop %v149
  %v151 = vadd.f32 %v150, 1.0
  %v152 = vrcp.pop %v151
  %v153 = vmul.f32 %v151, %v152
  %v154 = vsub.f32 1.0, %v153
  %v155 = vmul.f32 %v152, %v154
  %v156 = vadd.f32 %v152, %v155
  %vm157 = vweird.f32 %v151
  %vm158 = vweird.f32 %v152
  %vm159 = vmor %vm157, %vm158
  %v160 = vsel %vm159, %v152, %v156
  %v161 = vand.u32 2147483647, %v151
  %vm162 = vcmp.eq.f32.partialorder %v161, 8.507059e+37
  %v163 = vand.u32 %v151, 2147483648
  %v164 = vor.u32 1.1754944e-38, %v163
  %v165 = vsel %vm162, %v164, %v160
  %v166 = vmul.f32 1.0, %v165
  %v167 = vadd.f32 %v143, %v108
  %v168 = vxor.u32 %v167, 2147483648
  %v169 = vmul.f32 %v168, 1.442695
  %v170 = vpow.pop %v169
  %v171 = vadd.f32 %v170, 1.0
  %v172 = vrcp.pop %v171
  %v173 = vmul.f32 %v171, %v172
  %v174 = vsub.f32 1.0, %v173
  %v175 = vmul.f32 %v172, %v174
  %v176 = vadd.f32 %v172, %v175
  %vm177 = vweird.f32 %v171
  %vm178 = vweird.f32 %v172
  %vm179 = vmor %vm177, %vm178
  %v180 = vsel %vm179, %v172, %v176
  %v181 = vand.u32 2147483647, %v171
  %vm182 = vcmp.eq.f32.partialorder %v181, 8.507059e+37
  %v183 = vand.u32 %v171, 2147483648
  %v184 = vor.u32 1.1754944e-38, %v183
  %v185 = vsel %vm182, %v184, %v180
  %v186 = vmul.f32 1.0, %v185
  %v187 = vmul.f32 %v166, %v136
  %v188 = vadd.f32 %v146, %v187
  %v189 = vtanh.pop %v188
  %v190 = vsub.f32 1.0, %v186
  %v191 = vmul.f32 %v190, %v189
  %v192 = vmul.f32 %v186, %v49
  %v193 = vadd.f32 %v191, %v192
  %v194 = vstv %s48
  %vm195 = vcmp.gt.s32.totalorder %v28, %v194
  %v196 = vsel %vm195, 1, 0
  %v197 = vcvt.s32.f32 %v196
  %199 = vset.pattern.permute.xlu0 0
  %200 = vperm.xlu0 %199, %v197
  %v201 = vpop.permute.xlu0 %200
  %v203 = vmul.f32 %v201, %v193
  %v204 = vsub.f32 1.0, %v197
  %206 = vset.pattern.permute.xlu0 0
  %207 = vperm.xlu0 %206, %v204
  %v208 = vpop.permute.xlu0 %207
  %v210 = vmul.f32 %v208, %v49
  %v211 = vadd.f32 %v203, %v210
  %v212 = vmul.f32 %v211, %v201
  %vm213 = vcmask 254976
  %214 = vst.msk [vmem:[%s5] sm:$0x3] %vm213, %v212
  %v215 = vpack.c.bf16 %v211, %v211
  %v217 = vsel %vm66, %v215, 0
  %219 = vmatpush.bf16.msra.mxu0 0
  %220 = vmatpush.bf16.msra.mxu0 0
  %221 = vmatpush.bf16.msra.mxu0 0
  %222 = vmatpush.bf16.msra.mxu0 0
  %223 = vmatpush.bf16.msra.mxu0 0
  %224 = vmatpush.bf16.msra.mxu0 0
  %225 = vmatpush.bf16.msra.mxu0 %v63
  %226 = vmatpush.bf16.msra.mxu0 %v62
  %227 = vmatmul.bf16.gmra.mxu0 %v217
  %v228 = vpop.f32.mrf.mxu0
  %v229 = vadd.f32 %v52, %v228
  %v230 = vpop.f32.mrf.mxu0
  %231 = vdwg.mxu0
  %232 = vmatpush.bf16.msra.mxu0 0
  %233 = vmatpush.bf16.msra.mxu0 0
  %234 = vmatpush.bf16.msra.mxu0 0
  %235 = vmatpush.bf16.msra.mxu0 0
  %236 = vmatpush.bf16.msra.mxu0 0
  %237 = vmatpush.bf16.msra.mxu0 0
  %238 = vmatpush.bf16.msra.mxu0 %v95
  %239 = vmatpush.bf16.msra.mxu0 %v94
  %240 = vmatmul.bf16.gmra.mxu0 %v217
  %v241 = vpop.f32.mrf.mxu0
  %v242 = vadd.f32 %v84, %v241
  %v243 = vpop.f32.mrf.mxu0
  %244 = vdwg.mxu0
  %245 = vmatpush.bf16.msra.mxu0 0
  %246 = vmatpush.bf16.msra.mxu0 0
  %247 = vmatpush.bf16.msra.mxu0 0
  %248 = vmatpush.bf16.msra.mxu0 0
  %249 = vmatpush.bf16.msra.mxu0 0
  %250 = vmatpush.bf16.msra.mxu0 0
  %251 = vmatpush.bf16.msra.mxu0 %v123
  %252 = vmatpush.bf16.msra.mxu0 %v122
  %253 = vmatmul.bf16.gmra.mxu0 %v217
  %v254 = vpop.f32.mrf.mxu0
  %v255 = vadd.f32 %v112, %v254
  %v256 = vpop.f32.mrf.mxu0
  %257 = vdwg.mxu0
  %s258 = scalar_lea.vmem %s0, 1
  %v259 = vld [vmem:[%s258] sm:$0x1]
  %v260 = vunpack.c.l.bf16 %v259
  %s261 = scalar_lea.vmem %s0, 9
  %v262 = vld [vmem:[%s261] sm:$0x1]
  %v263 = vunpack.c.l.bf16 %v262
  %s264 = scalar_lea.vmem %s0, 17
  %v265 = vld [vmem:[%s264] sm:$0x1]
  %v266 = vunpack.c.l.bf16 %v265
  %v267 = vadd.f32 %v260, %v229
  %v268 = vxor.u32 %v267, 2147483648
  %v269 = vmul.f32 %v268, 1.442695
  %v270 = vpow.pop %v269
  %v271 = vadd.f32 %v270, 1.0
  %v272 = vrcp.pop %v271
  %v273 = vmul.f32 %v271, %v272
  %v274 = vsub.f32 1.0, %v273
  %v275 = vmul.f32 %v272, %v274
  %v276 = vadd.f32 %v272, %v275
  %vm277 = vweird.f32 %v271
  %vm278 = vweird.f32 %v272
  %vm279 = vmor %vm277, %vm278
  %v280 = vsel %vm279, %v272, %v276
  %v281 = vand.u32 2147483647, %v271
  %vm282 = vcmp.eq.f32.partialorder %v281, 8.507059e+37
  %v283 = vand.u32 %v271, 2147483648
  %v284 = vor.u32 1.1754944e-38, %v283
  %v285 = vsel %vm282, %v284, %v280
  %v286 = vmul.f32 1.0, %v285
  %v287 = vadd.f32 %v263, %v242
  %v288 = vxor.u32 %v287, 2147483648
  %v289 = vmul.f32 %v288, 1.442695
  %v290 = vpow.pop %v289
  %v291 = vadd.f32 %v290, 1.0
  %v292 = vrcp.pop %v291
  %v293 = vmul.f32 %v291, %v292
  %v294 = vsub.f32 1.0, %v293
  %v295 = vmul.f32 %v292, %v294
  %v296 = vadd.f32 %v292, %v295
  %vm297 = vweird.f32 %v291
  %vm298 = vweird.f32 %v292
  %vm299 = vmor %vm297, %vm298
  %v300 = vsel %vm299, %v292, %v296
  %v301 = vand.u32 2147483647, %v291
  %vm302 = vcmp.eq.f32.partialorder %v301, 8.507059e+37
  %v303 = vand.u32 %v291, 2147483648
  %v304 = vor.u32 1.1754944e-38, %v303
  %v305 = vsel %vm302, %v304, %v300
  %v306 = vmul.f32 1.0, %v305
  %v307 = vmul.f32 %v286, %v255
  %v308 = vadd.f32 %v266, %v307
  %v309 = vtanh.pop %v308
  %v310 = vsub.f32 1.0, %v306
  %v311 = vmul.f32 %v310, %v309
  %v312 = vmul.f32 %v306, %v211
  %v313 = vadd.f32 %v311, %v312
  %s314 = sadd.s32 %s48, 1
  %v315 = vstv %s314
  %vm316 = vcmp.gt.s32.totalorder %v28, %v315
  %v317 = vsel %vm316, 1, 0
  %v318 = vcvt.s32.f32 %v317
  %320 = vset.pattern.permute.xlu0 0
  %321 = vperm.xlu0 %320, %v318
  %v322 = vpop.permute.xlu0 %321
  %v324 = vmul.f32 %v322, %v313
  %v325 = vsub.f32 1.0, %v318
  %327 = vset.pattern.permute.xlu0 0
  %328 = vperm.xlu0 %327, %v325
  %v329 = vpop.permute.xlu0 %328
  %v331 = vmul.f32 %v329, %v211
  %v332 = vadd.f32 %v324, %v331
  %v333 = vmul.f32 %v332, %v322
  %s334 = scalar_lea.vmem %s5, 2
  %335 = vst.msk [vmem:[%s334] sm:$0x3] %vm213, %v333
  %v336 = vpack.c.bf16 %v332, %v332
  %v338 = vsel %vm66, %v336, 0
  %340 = vmatpush.bf16.msra.mxu0 0
  %341 = vmatpush.bf16.msra.mxu0 0
  %342 = vmatpush.bf16.msra.mxu0 0
  %343 = vmatpush.bf16.msra.mxu0 0
  %344 = vmatpush.bf16.msra.mxu0 0
  %345 = vmatpush.bf16.msra.mxu0 0
  %346 = vmatpush.bf16.msra.mxu0 %v63
  %347 = vmatpush.bf16.msra.mxu0 %v62
  %348 = vmatmul.bf16.gmra.mxu0 %v338
  %v349 = vpop.f32.mrf.mxu0
  %v350 = vadd.f32 %v52, %v349
  %v351 = vpop.f32.mrf.mxu0
  %352 = vdwg.mxu0
  %353 = vmatpush.bf16.msra.mxu0 0
  %354 = vmatpush.bf16.msra.mxu0 0
  %355 = vmatpush.bf16.msra.mxu0 0
  %356 = vmatpush.bf16.msra.mxu0 0
  %357 = vmatpush.bf16.msra.mxu0 0
  %358 = vmatpush.bf16.msra.mxu0 0
  %359 = vmatpush.bf16.msra.mxu0 %v95
  %360 = vmatpush.bf16.msra.mxu0 %v94
  %361 = vmatmul.bf16.gmra.mxu0 %v338
  %v362 = vpop.f32.mrf.mxu0
  %v363 = vadd.f32 %v84, %v362
  %v364 = vpop.f32.mrf.mxu0
  %365 = vdwg.mxu0
  %366 = vmatpush.bf16.msra.mxu0 0
  %367 = vmatpush.bf16.msra.mxu0 0
  %368 = vmatpush.bf16.msra.mxu0 0
  %369 = vmatpush.bf16.msra.mxu0 0
  %370 = vmatpush.bf16.msra.mxu0 0
  %371 = vmatpush.bf16.msra.mxu0 0
  %372 = vmatpush.bf16.msra.mxu0 %v123
  %373 = vmatpush.bf16.msra.mxu0 %v122
  %374 = vmatmul.bf16.gmra.mxu0 %v338
  %v375 = vpop.f32.mrf.mxu0
  %v376 = vadd.f32 %v112, %v375
  %v377 = vpop.f32.mrf.mxu0
  %378 = vdwg.mxu0
  %s379 = scalar_lea.vmem %s0, 2
  %v380 = vld [vmem:[%s379] sm:$0x1]
  %v381 = vunpack.c.l.bf16 %v380
  %s382 = scalar_lea.vmem %s0, 10
  %v383 = vld [vmem:[%s382] sm:$0x1]
  %v384 = vunpack.c.l.bf16 %v383
  %s385 = scalar_lea.vmem %s0, 18
  %v386 = vld [vmem:[%s385] sm:$0x1]
  %v387 = vunpack.c.l.bf16 %v386
  %v388 = vadd.f32 %v381, %v350
  %v389 = vxor.u32 %v388, 2147483648
  %v390 = vmul.f32 %v389, 1.442695
  %v391 = vpow.pop %v390
  %v392 = vadd.f32 %v391, 1.0
  %v393 = vrcp.pop %v392
  %v394 = vmul.f32 %v392, %v393
  %v395 = vsub.f32 1.0, %v394
  %v396 = vmul.f32 %v393, %v395
  %v397 = vadd.f32 %v393, %v396
  %vm398 = vweird.f32 %v392
  %vm399 = vweird.f32 %v393
  %vm400 = vmor %vm398, %vm399
  %v401 = vsel %vm400, %v393, %v397
  %v402 = vand.u32 2147483647, %v392
  %vm403 = vcmp.eq.f32.partialorder %v402, 8.507059e+37
  %v404 = vand.u32 %v392, 2147483648
  %v405 = vor.u32 1.1754944e-38, %v404
  %v406 = vsel %vm403, %v405, %v401
  %v407 = vmul.f32 1.0, %v406
  %v408 = vadd.f32 %v384, %v363
  %v409 = vxor.u32 %v408, 2147483648
  %v410 = vmul.f32 %v409, 1.442695
  %v411 = vpow.pop %v410
  %v412 = vadd.f32 %v411, 1.0
  %v413 = vrcp.pop %v412
  %v414 = vmul.f32 %v412, %v413
  %v415 = vsub.f32 1.0, %v414
  %v416 = vmul.f32 %v413, %v415
  %v417 = vadd.f32 %v413, %v416
  %vm418 = vweird.f32 %v412
  %vm419 = vweird.f32 %v413
  %vm420 = vmor %vm418, %vm419
  %v421 = vsel %vm420, %v413, %v417
  %v422 = vand.u32 2147483647, %v412
  %vm423 = vcmp.eq.f32.partialorder %v422, 8.507059e+37
  %v424 = vand.u32 %v412, 2147483648
  %v425 = vor.u32 1.1754944e-38, %v424
  %v426 = vsel %vm423, %v425, %v421
  %v427 = vmul.f32 1.0, %v426
  %v428 = vmul.f32 %v407, %v376
  %v429 = vadd.f32 %v387, %v428
  %v430 = vtanh.pop %v429
  %v431 = vsub.f32 1.0, %v427
  %v432 = vmul.f32 %v431, %v430
  %v433 = vmul.f32 %v427, %v332
  %v434 = vadd.f32 %v432, %v433
  %s435 = sadd.s32 %s48, 2
  %v436 = vstv %s435
  %vm437 = vcmp.gt.s32.totalorder %v28, %v436
  %v438 = vsel %vm437, 1, 0
  %v439 = vcvt.s32.f32 %v438
  %441 = vset.pattern.permute.xlu0 0
  %442 = vperm.xlu0 %441, %v439
  %v443 = vpop.permute.xlu0 %442
  %v445 = vmul.f32 %v443, %v434
  %v446 = vsub.f32 1.0, %v439
  %448 = vset.pattern.permute.xlu0 0
  %449 = vperm.xlu0 %448, %v446
  %v450 = vpop.permute.xlu0 %449
  %v452 = vmul.f32 %v450, %v332
  %v453 = vadd.f32 %v445, %v452
  %v454 = vmul.f32 %v453, %v443
  %s455 = scalar_lea.vmem %s5, 4
  %456 = vst.msk [vmem:[%s455] sm:$0x3] %vm213, %v454
  %v457 = vpack.c.bf16 %v453, %v453
  %v459 = vsel %vm66, %v457, 0
  %461 = vmatpush.bf16.msra.mxu0 0
  %462 = vmatpush.bf16.msra.mxu0 0
  %463 = vmatpush.bf16.msra.mxu0 0
  %464 = vmatpush.bf16.msra.mxu0 0
  %465 = vmatpush.bf16.msra.mxu0 0
  %466 = vmatpush.bf16.msra.mxu0 0
  %467 = vmatpush.bf16.msra.mxu0 %v63
  %468 = vmatpush.bf16.msra.mxu0 %v62
  %469 = vmatmul.bf16.gmra.mxu0 %v459
  %v470 = vpop.f32.mrf.mxu0
  %v471 = vadd.f32 %v52, %v470
  %v472 = vpop.f32.mrf.mxu0
  %473 = vdwg.mxu0
  %474 = vmatpush.bf16.msra.mxu0 0
  %475 = vmatpush.bf16.msra.mxu0 0
  %476 = vmatpush.bf16.msra.mxu0 0
  %477 = vmatpush.bf16.msra.mxu0 0
  %478 = vmatpush.bf16.msra.mxu0 0
  %479 = vmatpush.bf16.msra.mxu0 0
  %480 = vmatpush.bf16.msra.mxu0 %v95
  %481 = vmatpush.bf16.msra.mxu0 %v94
  %482 = vmatmul.bf16.gmra.mxu0 %v459
  %v483 = vpop.f32.mrf.mxu0
  %v484 = vadd.f32 %v84, %v483
  %v485 = vpop.f32.mrf.mxu0
  %486 = vdwg.mxu0
  %487 = vmatpush.bf16.msra.mxu0 0
  %488 = vmatpush.bf16.msra.mxu0 0
  %489 = vmatpush.bf16.msra.mxu0 0
  %490 = vmatpush.bf16.msra.mxu0 0
  %491 = vmatpush.bf16.msra.mxu0 0
  %492 = vmatpush.bf16.msra.mxu0 0
  %493 = vmatpush.bf16.msra.mxu0 %v123
  %494 = vmatpush.bf16.msra.mxu0 %v122
  %495 = vmatmul.bf16.gmra.mxu0 %v459
  %v496 = vpop.f32.mrf.mxu0
  %v497 = vadd.f32 %v112, %v496
  %v498 = vpop.f32.mrf.mxu0
  %499 = vdwg.mxu0
  %s500 = scalar_lea.vmem %s0, 3
  %v501 = vld [vmem:[%s500] sm:$0x1]
  %v502 = vunpack.c.l.bf16 %v501
  %s503 = scalar_lea.vmem %s0, 11
  %v504 = vld [vmem:[%s503] sm:$0x1]
  %v505 = vunpack.c.l.bf16 %v504
  %s506 = scalar_lea.vmem %s0, 19
  %v507 = vld [vmem:[%s506] sm:$0x1]
  %v508 = vunpack.c.l.bf16 %v507
  %v509 = vadd.f32 %v502, %v471
  %v510 = vxor.u32 %v509, 2147483648
  %v511 = vmul.f32 %v510, 1.442695
  %v512 = vpow.pop %v511
  %v513 = vadd.f32 %v512, 1.0
  %v514 = vrcp.pop %v513
  %v515 = vmul.f32 %v513, %v514
  %v516 = vsub.f32 1.0, %v515
  %v517 = vmul.f32 %v514, %v516
  %v518 = vadd.f32 %v514, %v517
  %vm519 = vweird.f32 %v513
  %vm520 = vweird.f32 %v514
  %vm521 = vmor %vm519, %vm520
  %v522 = vsel %vm521, %v514, %v518
  %v523 = vand.u32 2147483647, %v513
  %vm524 = vcmp.eq.f32.partialorder %v523, 8.507059e+37
  %v525 = vand.u32 %v513, 2147483648
  %v526 = vor.u32 1.1754944e-38, %v525
  %v527 = vsel %vm524, %v526, %v522
  %v528 = vmul.f32 1.0, %v527
  %v529 = vadd.f32 %v505, %v484
  %v530 = vxor.u32 %v529, 2147483648
  %v531 = vmul.f32 %v530, 1.442695
  %v532 = vpow.pop %v531
  %v533 = vadd.f32 %v532, 1.0
  %v534 = vrcp.pop %v533
  %v535 = vmul.f32 %v533, %v534
  %v536 = vsub.f32 1.0, %v535
  %v537 = vmul.f32 %v534, %v536
  %v538 = vadd.f32 %v534, %v537
  %vm539 = vweird.f32 %v533
  %vm540 = vweird.f32 %v534
  %vm541 = vmor %vm539, %vm540
  %v542 = vsel %vm541, %v534, %v538
  %v543 = vand.u32 2147483647, %v533
  %vm544 = vcmp.eq.f32.partialorder %v543, 8.507059e+37
  %v545 = vand.u32 %v533, 2147483648
  %v546 = vor.u32 1.1754944e-38, %v545
  %v547 = vsel %vm544, %v546, %v542
  %v548 = vmul.f32 1.0, %v547
  %v549 = vmul.f32 %v528, %v497
  %v550 = vadd.f32 %v508, %v549
  %v551 = vtanh.pop %v550
  %v552 = vsub.f32 1.0, %v548
  %v553 = vmul.f32 %v552, %v551
  %v554 = vmul.f32 %v548, %v453
  %v555 = vadd.f32 %v553, %v554
  %s556 = sadd.s32 %s48, 3
  %v557 = vstv %s556
  %vm558 = vcmp.gt.s32.totalorder %v28, %v557
  %v559 = vsel %vm558, 1, 0
  %v560 = vcvt.s32.f32 %v559
  %562 = vset.pattern.permute.xlu0 0
  %563 = vperm.xlu0 %562, %v560
  %v564 = vpop.permute.xlu0 %563
  %v566 = vmul.f32 %v564, %v555
  %v567 = vsub.f32 1.0, %v560
  %569 = vset.pattern.permute.xlu0 0
  %570 = vperm.xlu0 %569, %v567
  %v571 = vpop.permute.xlu0 %570
  %v573 = vmul.f32 %v571, %v453
  %v574 = vadd.f32 %v566, %v573
  %v575 = vmul.f32 %v574, %v564
  %s576 = scalar_lea.vmem %s5, 6
  %577 = vst.msk [vmem:[%s576] sm:$0x3] %vm213, %v575
  %v578 = vpack.c.bf16 %v574, %v574
  %v580 = vsel %vm66, %v578, 0
  %582 = vmatpush.bf16.msra.mxu0 0
  %583 = vmatpush.bf16.msra.mxu0 0
  %584 = vmatpush.bf16.msra.mxu0 0
  %585 = vmatpush.bf16.msra.mxu0 0
  %586 = vmatpush.bf16.msra.mxu0 0
  %587 = vmatpush.bf16.msra.mxu0 0
  %588 = vmatpush.bf16.msra.mxu0 %v63
  %589 = vmatpush.bf16.msra.mxu0 %v62
  %590 = vmatmul.bf16.gmra.mxu0 %v580
  %v591 = vpop.f32.mrf.mxu0
  %v592 = vadd.f32 %v52, %v591
  %v593 = vpop.f32.mrf.mxu0
  %594 = vdwg.mxu0
  %595 = vmatpush.bf16.msra.mxu0 0
  %596 = vmatpush.bf16.msra.mxu0 0
  %597 = vmatpush.bf16.msra.mxu0 0
  %598 = vmatpush.bf16.msra.mxu0 0
  %599 = vmatpush.bf16.msra.mxu0 0
  %600 = vmatpush.bf16.msra.mxu0 0
  %601 = vmatpush.bf16.msra.mxu0 %v95
  %602 = vmatpush.bf16.msra.mxu0 %v94
  %603 = vmatmul.bf16.gmra.mxu0 %v580
  %v604 = vpop.f32.mrf.mxu0
  %v605 = vadd.f32 %v84, %v604
  %v606 = vpop.f32.mrf.mxu0
  %607 = vdwg.mxu0
  %608 = vmatpush.bf16.msra.mxu0 0
  %609 = vmatpush.bf16.msra.mxu0 0
  %610 = vmatpush.bf16.msra.mxu0 0
  %611 = vmatpush.bf16.msra.mxu0 0
  %612 = vmatpush.bf16.msra.mxu0 0
  %613 = vmatpush.bf16.msra.mxu0 0
  %614 = vmatpush.bf16.msra.mxu0 %v123
  %615 = vmatpush.bf16.msra.mxu0 %v122
  %616 = vmatmul.bf16.gmra.mxu0 %v580
  %v617 = vpop.f32.mrf.mxu0
  %v618 = vadd.f32 %v112, %v617
  %v619 = vpop.f32.mrf.mxu0
  %620 = vdwg.mxu0
  %s621 = scalar_lea.vmem %s0, 4
  %v622 = vld [vmem:[%s621] sm:$0x1]
  %v623 = vunpack.c.l.bf16 %v622
  %s624 = scalar_lea.vmem %s0, 12
  %v625 = vld [vmem:[%s624] sm:$0x1]
  %v626 = vunpack.c.l.bf16 %v625
  %s627 = scalar_lea.vmem %s0, 20
  %v628 = vld [vmem:[%s627] sm:$0x1]
  %v629 = vunpack.c.l.bf16 %v628
  %v630 = vadd.f32 %v623, %v592
  %v631 = vxor.u32 %v630, 2147483648
  %v632 = vmul.f32 %v631, 1.442695
  %v633 = vpow.pop %v632
  %v634 = vadd.f32 %v633, 1.0
  %v635 = vrcp.pop %v634
  %v636 = vmul.f32 %v634, %v635
  %v637 = vsub.f32 1.0, %v636
  %v638 = vmul.f32 %v635, %v637
  %v639 = vadd.f32 %v635, %v638
  %vm640 = vweird.f32 %v634
  %vm641 = vweird.f32 %v635
  %vm642 = vmor %vm640, %vm641
  %v643 = vsel %vm642, %v635, %v639
  %v644 = vand.u32 2147483647, %v634
  %vm645 = vcmp.eq.f32.partialorder %v644, 8.507059e+37
  %v646 = vand.u32 %v634, 2147483648
  %v647 = vor.u32 1.1754944e-38, %v646
  %v648 = vsel %vm645, %v647, %v643
  %v649 = vmul.f32 1.0, %v648
  %v650 = vadd.f32 %v626, %v605
  %v651 = vxor.u32 %v650, 2147483648
  %v652 = vmul.f32 %v651, 1.442695
  %v653 = vpow.pop %v652
  %v654 = vadd.f32 %v653, 1.0
  %v655 = vrcp.pop %v654
  %v656 = vmul.f32 %v654, %v655
  %v657 = vsub.f32 1.0, %v656
  %v658 = vmul.f32 %v655, %v657
  %v659 = vadd.f32 %v655, %v658
  %vm660 = vweird.f32 %v654
  %vm661 = vweird.f32 %v655
  %vm662 = vmor %vm660, %vm661
  %v663 = vsel %vm662, %v655, %v659
  %v664 = vand.u32 2147483647, %v654
  %vm665 = vcmp.eq.f32.partialorder %v664, 8.507059e+37
  %v666 = vand.u32 %v654, 2147483648
  %v667 = vor.u32 1.1754944e-38, %v666
  %v668 = vsel %vm665, %v667, %v663
  %v669 = vmul.f32 1.0, %v668
  %v670 = vmul.f32 %v649, %v618
  %v671 = vadd.f32 %v629, %v670
  %v672 = vtanh.pop %v671
  %v673 = vsub.f32 1.0, %v669
  %v674 = vmul.f32 %v673, %v672
  %v675 = vmul.f32 %v669, %v574
  %v676 = vadd.f32 %v674, %v675
  %s677 = sadd.s32 %s48, 4
  %v678 = vstv %s677
  %vm679 = vcmp.gt.s32.totalorder %v28, %v678
  %v680 = vsel %vm679, 1, 0
  %v681 = vcvt.s32.f32 %v680
  %683 = vset.pattern.permute.xlu0 0
  %684 = vperm.xlu0 %683, %v681
  %v685 = vpop.permute.xlu0 %684
  %v687 = vmul.f32 %v685, %v676
  %v688 = vsub.f32 1.0, %v681
  %690 = vset.pattern.permute.xlu0 0
  %691 = vperm.xlu0 %690, %v688
  %v692 = vpop.permute.xlu0 %691
  %v694 = vmul.f32 %v692, %v574
  %v695 = vadd.f32 %v687, %v694
  %v696 = vmul.f32 %v695, %v685
  %s697 = scalar_lea.vmem %s5, 8
  %698 = vst.msk [vmem:[%s697] sm:$0x3] %vm213, %v696
  %v699 = vpack.c.bf16 %v695, %v695
  %v701 = vsel %vm66, %v699, 0
  %703 = vmatpush.bf16.msra.mxu0 0
  %704 = vmatpush.bf16.msra.mxu0 0
  %705 = vmatpush.bf16.msra.mxu0 0
  %706 = vmatpush.bf16.msra.mxu0 0
  %707 = vmatpush.bf16.msra.mxu0 0
  %708 = vmatpush.bf16.msra.mxu0 0
  %709 = vmatpush.bf16.msra.mxu0 %v63
  %710 = vmatpush.bf16.msra.mxu0 %v62
  %711 = vmatmul.bf16.gmra.mxu0 %v701
  %v712 = vpop.f32.mrf.mxu0
  %v713 = vadd.f32 %v52, %v712
  %v714 = vpop.f32.mrf.mxu0
  %715 = vdwg.mxu0
  %716 = vmatpush.bf16.msra.mxu0 0
  %717 = vmatpush.bf16.msra.mxu0 0
  %718 = vmatpush.bf16.msra.mxu0 0
  %719 = vmatpush.bf16.msra.mxu0 0
  %720 = vmatpush.bf16.msra.mxu0 0
  %721 = vmatpush.bf16.msra.mxu0 0
  %722 = vmatpush.bf16.msra.mxu0 %v95
  %723 = vmatpush.bf16.msra.mxu0 %v94
  %724 = vmatmul.bf16.gmra.mxu0 %v701
  %v725 = vpop.f32.mrf.mxu0
  %v726 = vadd.f32 %v84, %v725
  %v727 = vpop.f32.mrf.mxu0
  %728 = vdwg.mxu0
  %729 = vmatpush.bf16.msra.mxu0 0
  %730 = vmatpush.bf16.msra.mxu0 0
  %731 = vmatpush.bf16.msra.mxu0 0
  %732 = vmatpush.bf16.msra.mxu0 0
  %733 = vmatpush.bf16.msra.mxu0 0
  %734 = vmatpush.bf16.msra.mxu0 0
  %735 = vmatpush.bf16.msra.mxu0 %v123
  %736 = vmatpush.bf16.msra.mxu0 %v122
  %737 = vmatmul.bf16.gmra.mxu0 %v701
  %v738 = vpop.f32.mrf.mxu0
  %v739 = vadd.f32 %v112, %v738
  %v740 = vpop.f32.mrf.mxu0
  %741 = vdwg.mxu0
  %s742 = scalar_lea.vmem %s0, 5
  %v743 = vld [vmem:[%s742] sm:$0x1]
  %v744 = vunpack.c.l.bf16 %v743
  %s745 = scalar_lea.vmem %s0, 13
  %v746 = vld [vmem:[%s745] sm:$0x1]
  %v747 = vunpack.c.l.bf16 %v746
  %s748 = scalar_lea.vmem %s0, 21
  %v749 = vld [vmem:[%s748] sm:$0x1]
  %v750 = vunpack.c.l.bf16 %v749
  %v751 = vadd.f32 %v744, %v713
  %v752 = vxor.u32 %v751, 2147483648
  %v753 = vmul.f32 %v752, 1.442695
  %v754 = vpow.pop %v753
  %v755 = vadd.f32 %v754, 1.0
  %v756 = vrcp.pop %v755
  %v757 = vmul.f32 %v755, %v756
  %v758 = vsub.f32 1.0, %v757
  %v759 = vmul.f32 %v756, %v758
  %v760 = vadd.f32 %v756, %v759
  %vm761 = vweird.f32 %v755
  %vm762 = vweird.f32 %v756
  %vm763 = vmor %vm761, %vm762
  %v764 = vsel %vm763, %v756, %v760
  %v765 = vand.u32 2147483647, %v755
  %vm766 = vcmp.eq.f32.partialorder %v765, 8.507059e+37
  %v767 = vand.u32 %v755, 2147483648
  %v768 = vor.u32 1.1754944e-38, %v767
  %v769 = vsel %vm766, %v768, %v764
  %v770 = vmul.f32 1.0, %v769
  %v771 = vadd.f32 %v747, %v726
  %v772 = vxor.u32 %v771, 2147483648
  %v773 = vmul.f32 %v772, 1.442695
  %v774 = vpow.pop %v773
  %v775 = vadd.f32 %v774, 1.0
  %v776 = vrcp.pop %v775
  %v777 = vmul.f32 %v775, %v776
  %v778 = vsub.f32 1.0, %v777
  %v779 = vmul.f32 %v776, %v778
  %v780 = vadd.f32 %v776, %v779
  %vm781 = vweird.f32 %v775
  %vm782 = vweird.f32 %v776
  %vm783 = vmor %vm781, %vm782
  %v784 = vsel %vm783, %v776, %v780
  %v785 = vand.u32 2147483647, %v775
  %vm786 = vcmp.eq.f32.partialorder %v785, 8.507059e+37
  %v787 = vand.u32 %v775, 2147483648
  %v788 = vor.u32 1.1754944e-38, %v787
  %v789 = vsel %vm786, %v788, %v784
  %v790 = vmul.f32 1.0, %v789
  %v791 = vmul.f32 %v770, %v739
  %v792 = vadd.f32 %v750, %v791
  %v793 = vtanh.pop %v792
  %v794 = vsub.f32 1.0, %v790
  %v795 = vmul.f32 %v794, %v793
  %v796 = vmul.f32 %v790, %v695
  %v797 = vadd.f32 %v795, %v796
  %s798 = sadd.s32 %s48, 5
  %v799 = vstv %s798
  %vm800 = vcmp.gt.s32.totalorder %v28, %v799
  %v801 = vsel %vm800, 1, 0
  %v802 = vcvt.s32.f32 %v801
  %804 = vset.pattern.permute.xlu0 0
  %805 = vperm.xlu0 %804, %v802
  %v806 = vpop.permute.xlu0 %805
  %v808 = vmul.f32 %v806, %v797
  %v809 = vsub.f32 1.0, %v802
  %811 = vset.pattern.permute.xlu0 0
  %812 = vperm.xlu0 %811, %v809
  %v813 = vpop.permute.xlu0 %812
  %v815 = vmul.f32 %v813, %v695
  %v816 = vadd.f32 %v808, %v815
  %v817 = vmul.f32 %v816, %v806
  %s818 = scalar_lea.vmem %s5, 10
  %819 = vst.msk [vmem:[%s818] sm:$0x3] %vm213, %v817
  %v820 = vpack.c.bf16 %v816, %v816
  %v822 = vsel %vm66, %v820, 0
  %824 = vmatpush.bf16.msra.mxu0 0
  %825 = vmatpush.bf16.msra.mxu0 0
  %826 = vmatpush.bf16.msra.mxu0 0
  %827 = vmatpush.bf16.msra.mxu0 0
  %828 = vmatpush.bf16.msra.mxu0 0
  %829 = vmatpush.bf16.msra.mxu0 0
  %830 = vmatpush.bf16.msra.mxu0 %v63
  %831 = vmatpush.bf16.msra.mxu0 %v62
  %832 = vmatmul.bf16.gmra.mxu0 %v822
  %v833 = vpop.f32.mrf.mxu0
  %v834 = vadd.f32 %v52, %v833
  %v835 = vpop.f32.mrf.mxu0
  %836 = vdwg.mxu0
  %837 = vmatpush.bf16.msra.mxu0 0
  %838 = vmatpush.bf16.msra.mxu0 0
  %839 = vmatpush.bf16.msra.mxu0 0
  %840 = vmatpush.bf16.msra.mxu0 0
  %841 = vmatpush.bf16.msra.mxu0 0
  %842 = vmatpush.bf16.msra.mxu0 0
  %843 = vmatpush.bf16.msra.mxu0 %v95
  %844 = vmatpush.bf16.msra.mxu0 %v94
  %845 = vmatmul.bf16.gmra.mxu0 %v822
  %v846 = vpop.f32.mrf.mxu0
  %v847 = vadd.f32 %v84, %v846
  %v848 = vpop.f32.mrf.mxu0
  %849 = vdwg.mxu0
  %850 = vmatpush.bf16.msra.mxu0 0
  %851 = vmatpush.bf16.msra.mxu0 0
  %852 = vmatpush.bf16.msra.mxu0 0
  %853 = vmatpush.bf16.msra.mxu0 0
  %854 = vmatpush.bf16.msra.mxu0 0
  %855 = vmatpush.bf16.msra.mxu0 0
  %856 = vmatpush.bf16.msra.mxu0 %v123
  %857 = vmatpush.bf16.msra.mxu0 %v122
  %858 = vmatmul.bf16.gmra.mxu0 %v822
  %v859 = vpop.f32.mrf.mxu0
  %v860 = vadd.f32 %v112, %v859
  %v861 = vpop.f32.mrf.mxu0
  %862 = vdwg.mxu0
  %s863 = scalar_lea.vmem %s0, 6
  %v864 = vld [vmem:[%s863] sm:$0x1]
  %v865 = vunpack.c.l.bf16 %v864
  %s866 = scalar_lea.vmem %s0, 14
  %v867 = vld [vmem:[%s866] sm:$0x1]
  %v868 = vunpack.c.l.bf16 %v867
  %s869 = scalar_lea.vmem %s0, 22
  %v870 = vld [vmem:[%s869] sm:$0x1]
  %v871 = vunpack.c.l.bf16 %v870
  %v872 = vadd.f32 %v865, %v834
  %v873 = vxor.u32 %v872, 2147483648
  %v874 = vmul.f32 %v873, 1.442695
  %v875 = vpow.pop %v874
  %v876 = vadd.f32 %v875, 1.0
  %v877 = vrcp.pop %v876
  %v878 = vmul.f32 %v876, %v877
  %v879 = vsub.f32 1.0, %v878
  %v880 = vmul.f32 %v877, %v879
  %v881 = vadd.f32 %v877, %v880
  %vm882 = vweird.f32 %v876
  %vm883 = vweird.f32 %v877
  %vm884 = vmor %vm882, %vm883
  %v885 = vsel %vm884, %v877, %v881
  %v886 = vand.u32 2147483647, %v876
  %vm887 = vcmp.eq.f32.partialorder %v886, 8.507059e+37
  %v888 = vand.u32 %v876, 2147483648
  %v889 = vor.u32 1.1754944e-38, %v888
  %v890 = vsel %vm887, %v889, %v885
  %v891 = vmul.f32 1.0, %v890
  %v892 = vadd.f32 %v868, %v847
  %v893 = vxor.u32 %v892, 2147483648
  %v894 = vmul.f32 %v893, 1.442695
  %v895 = vpow.pop %v894
  %v896 = vadd.f32 %v895, 1.0
  %v897 = vrcp.pop %v896
  %v898 = vmul.f32 %v896, %v897
  %v899 = vsub.f32 1.0, %v898
  %v900 = vmul.f32 %v897, %v899
  %v901 = vadd.f32 %v897, %v900
  %vm902 = vweird.f32 %v896
  %vm903 = vweird.f32 %v897
  %vm904 = vmor %vm902, %vm903
  %v905 = vsel %vm904, %v897, %v901
  %v906 = vand.u32 2147483647, %v896
  %vm907 = vcmp.eq.f32.partialorder %v906, 8.507059e+37
  %v908 = vand.u32 %v896, 2147483648
  %v909 = vor.u32 1.1754944e-38, %v908
  %v910 = vsel %vm907, %v909, %v905
  %v911 = vmul.f32 1.0, %v910
  %v912 = vmul.f32 %v891, %v860
  %v913 = vadd.f32 %v871, %v912
  %v914 = vtanh.pop %v913
  %v915 = vsub.f32 1.0, %v911
  %v916 = vmul.f32 %v915, %v914
  %v917 = vmul.f32 %v911, %v816
  %v918 = vadd.f32 %v916, %v917
  %s919 = sadd.s32 %s48, 6
  %v920 = vstv %s919
  %vm921 = vcmp.gt.s32.totalorder %v28, %v920
  %v922 = vsel %vm921, 1, 0
  %v923 = vcvt.s32.f32 %v922
  %925 = vset.pattern.permute.xlu0 0
  %926 = vperm.xlu0 %925, %v923
  %v927 = vpop.permute.xlu0 %926
  %v929 = vmul.f32 %v927, %v918
  %v930 = vsub.f32 1.0, %v923
  %932 = vset.pattern.permute.xlu0 0
  %933 = vperm.xlu0 %932, %v930
  %v934 = vpop.permute.xlu0 %933
  %v936 = vmul.f32 %v934, %v816
  %v937 = vadd.f32 %v929, %v936
  %v938 = vmul.f32 %v937, %v927
  %s939 = scalar_lea.vmem %s5, 12
  %940 = vst.msk [vmem:[%s939] sm:$0x3] %vm213, %v938
  %v941 = vpack.c.bf16 %v937, %v937
  %v943 = vsel %vm66, %v941, 0
  %945 = vmatpush.bf16.msra.mxu0 0
  %946 = vmatpush.bf16.msra.mxu0 0
  %947 = vmatpush.bf16.msra.mxu0 0
  %948 = vmatpush.bf16.msra.mxu0 0
  %949 = vmatpush.bf16.msra.mxu0 0
  %950 = vmatpush.bf16.msra.mxu0 0
  %951 = vmatpush.bf16.msra.mxu0 %v63
  %952 = vmatpush.bf16.msra.mxu0 %v62
  %953 = vmatmul.bf16.gmra.mxu0 %v943
  %v954 = vpop.f32.mrf.mxu0
  %v955 = vadd.f32 %v52, %v954
  %v956 = vpop.f32.mrf.mxu0
  %957 = vdwg.mxu0
  %958 = vmatpush.bf16.msra.mxu0 0
  %959 = vmatpush.bf16.msra.mxu0 0
  %960 = vmatpush.bf16.msra.mxu0 0
  %961 = vmatpush.bf16.msra.mxu0 0
  %962 = vmatpush.bf16.msra.mxu0 0
  %963 = vmatpush.bf16.msra.mxu0 0
  %964 = vmatpush.bf16.msra.mxu0 %v95
  %965 = vmatpush.bf16.msra.mxu0 %v94
  %966 = vmatmul.bf16.gmra.mxu0 %v943
  %v967 = vpop.f32.mrf.mxu0
  %v968 = vadd.f32 %v84, %v967
  %v969 = vpop.f32.mrf.mxu0
  %970 = vdwg.mxu0
  %971 = vmatpush.bf16.msra.mxu0 0
  %972 = vmatpush.bf16.msra.mxu0 0
  %973 = vmatpush.bf16.msra.mxu0 0
  %974 = vmatpush.bf16.msra.mxu0 0
  %975 = vmatpush.bf16.msra.mxu0 0
  %976 = vmatpush.bf16.msra.mxu0 0
  %977 = vmatpush.bf16.msra.mxu0 %v123
  %978 = vmatpush.bf16.msra.mxu0 %v122
  %979 = vmatmul.bf16.gmra.mxu0 %v943
  %v980 = vpop.f32.mrf.mxu0
  %v981 = vadd.f32 %v112, %v980
  %v982 = vpop.f32.mrf.mxu0
  %983 = vdwg.mxu0
  %s984 = scalar_lea.vmem %s0, 7
  %v985 = vld [vmem:[%s984] sm:$0x1]
  %v986 = vunpack.c.l.bf16 %v985
  %s987 = scalar_lea.vmem %s0, 15
  %v988 = vld [vmem:[%s987] sm:$0x1]
  %v989 = vunpack.c.l.bf16 %v988
  %s990 = scalar_lea.vmem %s0, 23
  %v991 = vld [vmem:[%s990] sm:$0x1]
  %v992 = vunpack.c.l.bf16 %v991
  %v993 = vadd.f32 %v986, %v955
  %v994 = vxor.u32 %v993, 2147483648
  %v995 = vmul.f32 %v994, 1.442695
  %v996 = vpow.pop %v995
  %v997 = vadd.f32 %v996, 1.0
  %v998 = vrcp.pop %v997
  %v999 = vmul.f32 %v997, %v998
  %v1000 = vsub.f32 1.0, %v999
  %v1001 = vmul.f32 %v998, %v1000
  %v1002 = vadd.f32 %v998, %v1001
  %vm1003 = vweird.f32 %v997
  %vm1004 = vweird.f32 %v998
  %vm1005 = vmor %vm1003, %vm1004
  %v1006 = vsel %vm1005, %v998, %v1002
  %v1007 = vand.u32 2147483647, %v997
  %vm1008 = vcmp.eq.f32.partialorder %v1007, 8.507059e+37
  %v1009 = vand.u32 %v997, 2147483648
  %v1010 = vor.u32 1.1754944e-38, %v1009
  %v1011 = vsel %vm1008, %v1010, %v1006
  %v1012 = vmul.f32 1.0, %v1011
  %v1013 = vadd.f32 %v989, %v968
  %v1014 = vxor.u32 %v1013, 2147483648
  %v1015 = vmul.f32 %v1014, 1.442695
  %v1016 = vpow.pop %v1015
  %v1017 = vadd.f32 %v1016, 1.0
  %v1018 = vrcp.pop %v1017
  %v1019 = vmul.f32 %v1017, %v1018
  %v1020 = vsub.f32 1.0, %v1019
  %v1021 = vmul.f32 %v1018, %v1020
  %v1022 = vadd.f32 %v1018, %v1021
  %vm1023 = vweird.f32 %v1017
  %vm1024 = vweird.f32 %v1018
  %vm1025 = vmor %vm1023, %vm1024
  %v1026 = vsel %vm1025, %v1018, %v1022
  %v1027 = vand.u32 2147483647, %v1017
  %vm1028 = vcmp.eq.f32.partialorder %v1027, 8.507059e+37
  %v1029 = vand.u32 %v1017, 2147483648
  %v1030 = vor.u32 1.1754944e-38, %v1029
  %v1031 = vsel %vm1028, %v1030, %v1026
  %v1032 = vmul.f32 1.0, %v1031
  %v1033 = vmul.f32 %v1012, %v981
  %v1034 = vadd.f32 %v992, %v1033
  %v1035 = vtanh.pop %v1034
  %v1036 = vsub.f32 1.0, %v1032
  %v1037 = vmul.f32 %v1036, %v1035
  %v1038 = vmul.f32 %v1032, %v937
  %v1039 = vadd.f32 %v1037, %v1038
  %s1040 = sadd.s32 %s48, 7
  %v1041 = vstv %s1040
  %vm1042 = vcmp.gt.s32.totalorder %v28, %v1041
  %v1043 = vsel %vm1042, 1, 0
  %v1044 = vcvt.s32.f32 %v1043
  %1046 = vset.pattern.permute.xlu0 0
  %1047 = vperm.xlu0 %1046, %v1044
  %v1048 = vpop.permute.xlu0 %1047
  %v1050 = vmul.f32 %v1048, %v1039
  %v1051 = vsub.f32 1.0, %v1044
  %1053 = vset.pattern.permute.xlu0 0
  %1054 = vperm.xlu0 %1053, %v1051
  %v1055 = vpop.permute.xlu0 %1054
  %v1057 = vmul.f32 %v1055, %v937
  %v1058 = vadd.f32 %v1050, %v1057
  %v1059 = vmul.f32 %v1058, %v1048
  %s1060 = scalar_lea.vmem %s5, 14
  %1061 = vst.msk [vmem:[%s1060] sm:$0x3] %vm213, %v1059
  %1062 = vst.msk [vmem:[#allocation2] sm:$0x3] %vm213, %v1058
  // Predicated region
  $region26: #{transfer_net_forward.8} parent=0 // pred_check
    _
  $region27: #{transfer_net_forward.8} parent=0 // pred_check_branch
    %1064 = sbr.rel (0) target = $region29
  $region28: #{transfer_net_forward.8} parent=0 // pred_region
    _
  $region29: #{transfer_net_forward.8} parent=0 // pred_fallthru
    _
  // Predicated region
  $region30: #{transfer_net_forward.8} parent=0 // pred_check
    _
  $region31: #{transfer_net_forward.8} parent=0 // pred_check_branch
    %1066 = sbr.rel (0) target = $region33
  $region32: #{transfer_net_forward.8} parent=0 // pred_region
    _
  $region33: #{transfer_net_forward.8} parent=0 // pred_fallthru
    _

</llo_original>
